<compile_context>
chip_gen: v6e
topology: v6e:2x2x1
jax: 0.10.0
libtpu: 0.0.40
codegen_flags: <defaults>
</compile_context>

<pallas_src>
import functools

import jax
import jax.numpy as jnp
import numpy as np
from jax import lax
from jax.experimental import pallas as pl
from jax.experimental.pallas import tpu as pltpu

KSIZE = 7
PAD = KSIZE // 2
NTAPS = KSIZE * KSIZE


def _rotate_lanes(a, s):
    """result[..., i] = a[..., (i + s) % n], s a static Python int."""
    n = a.shape[-1]
    s = s % n
    if s == 0:
        return a
    return jnp.concatenate([a[..., s:], a[..., :s]], axis=-1)


def _tree_reduce(v, op):
    """Fold (k, hw) -> (1, hw) with `op` as a balanced tree (dense, high ILP)."""
    while v.shape[0] > 1:
        k = v.shape[0]
        half = k // 2
        folded = op(v[:half], v[half:2 * half])
        if k % 2:
            folded = jnp.concatenate([folded, v[2 * half:]], axis=0)
        v = folded
    return v


def _spatial_attention_kernel(w_ref, mask_ref, x_ref, o_ref, sum_ref, max_ref,
                              *, c_total, width):
    # w_ref   : (2*49,) f32 in SMEM  (index = ch*49 + ky*7 + kx, ch0=avg ch1=max)
    # mask_ref: (49, 1, H*W) f32 tap-validity masks (zero padding / row wrap)
    # x_ref   : (nb, cb, H*W) block of the input
    # o_ref   : (nb, H*W) lane-dense output block
    # sum/max : (nb, H*W) f32 channel accumulators (persist across the C axis)
    c_idx = pl.program_id(1)
    n_cblk = pl.num_programs(1)
    nb, cb, hw = x_ref.shape

    # ---- per-C-block partial sum / max, lane-dense -------------------------
    part_s, part_m = [], []
    for n in range(nb):
        xn = x_ref[n].astype(jnp.float32)                   # (cb, hw)
        part_s.append(_tree_reduce(xn, jnp.add))            # (1, hw)
        part_m.append(_tree_reduce(xn, jnp.maximum))        # (1, hw)
    part_sum = part_s[0] if nb == 1 else jnp.concatenate(part_s, axis=0)
    part_max = part_m[0] if nb == 1 else jnp.concatenate(part_m, axis=0)

    @pl.when(c_idx == 0)
    def _init():
        sum_ref[...] = part_sum
        max_ref[...] = part_max

    @pl.when(c_idx > 0)
    def _accumulate():
        sum_ref[...] = sum_ref[...] + part_sum
        max_ref[...] = jnp.maximum(max_ref[...], part_max)

    # ---- finalize: 7x7 conv over (avg, max) + sigmoid, lane-dense store ----
    @pl.when(c_idx == n_cblk - 1)
    def _finalize():
        avg = sum_ref[...] * jnp.float32(1.0 / c_total)     # (nb, hw)
        mxv = max_ref[...]

        # Hoist the 98 SMEM weight scalars out of the tap loop.
        w_avg = [w_ref[t] for t in range(NTAPS)]
        w_max = [w_ref[NTAPS + t] for t in range(NTAPS)]

        # 4 independent accumulators break the 49-deep serial add chain.
        accs = [jnp.zeros((nb, hw), jnp.float32) for _ in range(4)]
        t = 0
        for ky in range(KSIZE):
            dy = ky - PAD
            for kx in range(KSIZE):
                dx = kx - PAD
                shift = dy * width + dx
                # Combine the two "channels" before shifting: one lane
                # rotation + one mask multiply per tap (cross-lane work off
                # the VALU-critical path).
                comb = w_avg[t] * avg + w_max[t] * mxv
                accs[t % 4] = accs[t % 4] + _rotate_lanes(comb, shift) * mask_ref[t]
                t += 1
        acc = (accs[0] + accs[1]) + (accs[2] + accs[3])
        o_ref[...] = jax.nn.sigmoid(acc).astype(o_ref.dtype)


def _tap_masks(h, w):
    """(49, 1, H*W) f32: 1 where source pixel (y+dy, x+dx) is inside the image."""
    hw = h * w
    i = np.arange(hw)
    y, x = i // w, i % w
    masks = np.zeros((NTAPS, 1, hw), np.float32)
    t = 0
    for ky in range(KSIZE):
        dy = ky - PAD
        for kx in range(KSIZE):
            dx = kx - PAD
            ok = (y + dy >= 0) & (y + dy < h) & (x + dx >= 0) & (x + dx < w)
            masks[t, 0, :] = ok.astype(np.float32)
            t += 1
    return jnp.asarray(masks)


def _pick_batch_block(n):
    # Output block is (nb, H*W): nb must equal N or be a multiple of 8.
    if n <= 8:
        return n
    for cand in (64, 56, 48, 40, 32, 24, 16, 8):
        if n % cand == 0:
            return cand
    return n


def _pick_channel_block(c, nb, hw, itemsize, budget_bytes=4 << 20, max_unroll=64):
    # x block is (nb, cb, H*W): cb must equal C or be a multiple of 8.  Keep the
    # (double-buffered) block well inside scoped VMEM on every TPU generation.
    if c <= max_unroll and nb * c * hw * itemsize <= budget_bytes:
        return c
    best = None
    for d in range(8, min(c, max_unroll) + 1, 8):
        if c % d == 0 and nb * d * hw * itemsize <= budget_bytes:
            best = d
    return best if best is not None else c


def spatial_attention(x, weight):
    """x: (N, C, H, W); weight: (1, 2, 7, 7), no bias.  Returns (N, 1, H, W)."""
    n, c, h, w = x.shape
    hw = h * w
    x_flat = x.reshape(n, c, hw)                        # lane-dense channel view
    w_flat = weight.reshape(-1).astype(jnp.float32)     # (98,)
    masks = _tap_masks(h, w)                            # (49, 1, hw)

    itemsize = jnp.dtype(x.dtype).itemsize
    nb = _pick_batch_block(n)
    cb = _pick_channel_block(c, nb, hw, itemsize)
    grid = (n // nb, c // cb)
    # NOTE: on v7x (2 TensorCores) the batch axis is the parallel one; with a
    # tiny test batch (grid[0]==1) only one core is used, which is fine here.

    kernel = functools.partial(_spatial_attention_kernel, c_total=c, width=w)

    out_flat = pl.pallas_call(
        kernel,
        out_shape=jax.ShapeDtypeStruct((n, hw), x.dtype),
        grid=grid,
        in_specs=[
            pl.BlockSpec(memory_space=pltpu.MemorySpace.SMEM),     # conv weights
            pl.BlockSpec((NTAPS, 1, hw), lambda i, j: (0, 0, 0)),  # tap masks
            pl.BlockSpec((nb, cb, hw), lambda i, j: (i, j, 0)),    # x
        ],
        out_specs=pl.BlockSpec((nb, hw), lambda i, j: (i, 0)),
        scratch_shapes=[
            pltpu.VMEM((nb, hw), jnp.float32),   # channel-sum accumulator
            pltpu.VMEM((nb, hw), jnp.float32),   # channel-max accumulator
        ],
        compiler_params=pltpu.CompilerParams(
            dimension_semantics=("parallel", "arbitrary"),
            vmem_limit_bytes=48 * 1024 * 1024,   # > 16/32 MiB defaults, < 64 MiB v7x
        ),
    )(w_flat, masks, x_flat)

    return out_flat.reshape(n, 1, h, w)


def reference(x, weight):
    """Pure-JAX reference matching the PyTorch forward exactly."""
    avg = jnp.mean(x, axis=1, keepdims=True)
    mx = jnp.max(x, axis=1, keepdims=True)
    cat = jnp.concatenate([avg, mx], axis=1)
    out = lax.conv_general_dilated(
        cat, weight, window_strides=(1, 1),
        padding=[(PAD, PAD), (PAD, PAD)],
        dimension_numbers=("NCHW", "OIHW", "NCHW"))
    return jax.nn.sigmoid(out)


if __name__ == "__main__":
    key = jax.random.PRNGKey(0)
    k_x, k_w = jax.random.split(key)

    N, C, H, W = 2, 4, 16, 16
    x = jax.random.normal(k_x, (N, C, H, W), dtype=jnp.float32)
    # Deterministic synthetic weight for nn.Conv2d(2, 1, 7, bias=False).
    weight = jax.random.normal(k_w, (1, 2, KSIZE, KSIZE), dtype=jnp.float32) * 0.1

    out = jax.block_until_ready(spatial_attention(x, weight))
    ref = jax.block_until_ready(reference(x, weight))

    assert out.shape == (N, 1, H, W)
    assert jnp.allclose(out, ref, atol=1e-5, rtol=1e-5), "mismatch vs reference"
    print("KERNEL_OK")
</pallas_src>

<mosaic_0001>
module attributes {stable_mosaic.version = 11 : i64} {
  func.func @_spatial_attention_kernel(%arg0: i32, %arg1: i32, %arg2: memref<98xf32, #tpu.memory_space<smem>>, %arg3: memref<49x1x256xf32, #tpu.memory_space<vmem>>, %arg4: memref<2x4x256xf32, #tpu.memory_space<vmem>>, %arg5: memref<2x256xf32, #tpu.memory_space<vmem>>, %arg6: memref<2x256xf32, #tpu.memory_space<vmem>>, %arg7: memref<2x256xf32, #tpu.memory_space<vmem>>) attributes {dimension_semantics = [#tpu.dimension_semantics<parallel>, #tpu.dimension_semantics<arbitrary>], iteration_bounds = array<i64: 1, 1>, scalar_prefetch = 0 : i64, scratch_operands = 2 : i64, tpu.core_type = #tpu.core_type<tc>, window_params = [{transform_indices = @transform_0, window_bounds = array<i64: 98>}, {pipeline_mode = #tpu.pipeline_mode<synchronous>, transform_indices = @transform_1, window_bounds = array<i64: 49, 1, 256>}, {transform_indices = @transform_2, window_bounds = array<i64: 2, 4, 256>}, {transform_indices = @transform_3, window_bounds = array<i64: 2, 256>}]} {
    %c0 = arith.constant 0 : index
    %c0_0 = arith.constant 0 : index
    %c0_1 = arith.constant 0 : index
    %0 = vector.load %arg4[%c0, %c0_0, %c0_1] : memref<2x4x256xf32, #tpu.memory_space<vmem>>, vector<1x4x256xf32>
    %1 = vector.shape_cast %0 : vector<1x4x256xf32> to vector<4x256xf32>
    %2 = vector.extract_strided_slice %1 {offsets = [0, 0], sizes = [2, 256], strides = [1, 1]} : vector<4x256xf32> to vector<2x256xf32>
    %3 = vector.extract_strided_slice %1 {offsets = [2, 0], sizes = [2, 256], strides = [1, 1]} : vector<4x256xf32> to vector<2x256xf32>
    %4 = arith.addf %2, %3 : vector<2x256xf32>
    %5 = vector.extract_strided_slice %4 {offsets = [0, 0], sizes = [1, 256], strides = [1, 1]} : vector<2x256xf32> to vector<1x256xf32>
    %6 = vector.extract_strided_slice %4 {offsets = [1, 0], sizes = [1, 256], strides = [1, 1]} : vector<2x256xf32> to vector<1x256xf32>
    %7 = arith.addf %5, %6 : vector<1x256xf32>
    %8 = vector.extract_strided_slice %1 {offsets = [0, 0], sizes = [2, 256], strides = [1, 1]} : vector<4x256xf32> to vector<2x256xf32>
    %9 = vector.extract_strided_slice %1 {offsets = [2, 0], sizes = [2, 256], strides = [1, 1]} : vector<4x256xf32> to vector<2x256xf32>
    %10 = arith.maximumf %8, %9 : vector<2x256xf32>
    %11 = vector.extract_strided_slice %10 {offsets = [0, 0], sizes = [1, 256], strides = [1, 1]} : vector<2x256xf32> to vector<1x256xf32>
    %12 = vector.extract_strided_slice %10 {offsets = [1, 0], sizes = [1, 256], strides = [1, 1]} : vector<2x256xf32> to vector<1x256xf32>
    %13 = arith.maximumf %11, %12 : vector<1x256xf32>
    %c1 = arith.constant 1 : index
    %c0_2 = arith.constant 0 : index
    %c0_3 = arith.constant 0 : index
    %14 = vector.load %arg4[%c1, %c0_2, %c0_3] : memref<2x4x256xf32, #tpu.memory_space<vmem>>, vector<1x4x256xf32>
    %15 = vector.shape_cast %14 : vector<1x4x256xf32> to vector<4x256xf32>
    %16 = vector.extract_strided_slice %15 {offsets = [0, 0], sizes = [2, 256], strides = [1, 1]} : vector<4x256xf32> to vector<2x256xf32>
    %17 = vector.extract_strided_slice %15 {offsets = [2, 0], sizes = [2, 256], strides = [1, 1]} : vector<4x256xf32> to vector<2x256xf32>
    %18 = arith.addf %16, %17 : vector<2x256xf32>
    %19 = vector.extract_strided_slice %18 {offsets = [0, 0], sizes = [1, 256], strides = [1, 1]} : vector<2x256xf32> to vector<1x256xf32>
    %20 = vector.extract_strided_slice %18 {offsets = [1, 0], sizes = [1, 256], strides = [1, 1]} : vector<2x256xf32> to vector<1x256xf32>
    %21 = arith.addf %19, %20 : vector<1x256xf32>
    %22 = vector.extract_strided_slice %15 {offsets = [0, 0], sizes = [2, 256], strides = [1, 1]} : vector<4x256xf32> to vector<2x256xf32>
    %23 = vector.extract_strided_slice %15 {offsets = [2, 0], sizes = [2, 256], strides = [1, 1]} : vector<4x256xf32> to vector<2x256xf32>
    %24 = arith.maximumf %22, %23 : vector<2x256xf32>
    %25 = vector.extract_strided_slice %24 {offsets = [0, 0], sizes = [1, 256], strides = [1, 1]} : vector<2x256xf32> to vector<1x256xf32>
    %26 = vector.extract_strided_slice %24 {offsets = [1, 0], sizes = [1, 256], strides = [1, 1]} : vector<2x256xf32> to vector<1x256xf32>
    %27 = arith.maximumf %25, %26 : vector<1x256xf32>
    %28 = tpu.concatenate %7, %21 in 0 : vector<1x256xf32>, vector<1x256xf32> -> vector<2x256xf32>
    %29 = tpu.concatenate %13, %27 in 0 : vector<1x256xf32>, vector<1x256xf32> -> vector<2x256xf32>
    %c0_i32 = arith.constant 0 : i32
    %30 = arith.cmpi eq, %arg1, %c0_i32 : i32
    %31 = arith.extui %30 : i1 to i32
    %c0_i32_4 = arith.constant 0 : i32
    %32 = arith.cmpi ne, %31, %c0_i32_4 : i32
    scf.if %32 {
      %c0_9 = arith.constant 0 : index
      %c0_10 = arith.constant 0 : index
      %39 = vector.load %arg6[%c0_9, %c0_10] : memref<2x256xf32, #tpu.memory_space<vmem>>, vector<2x256xf32>
      tpu.vector_store %arg6[%c0_9, %c0_10], %28 {strides = array<i32>} : memref<2x256xf32, #tpu.memory_space<vmem>>, vector<2x256xf32>,
      %c0_11 = arith.constant 0 : index
      %c0_12 = arith.constant 0 : index
      %40 = vector.load %arg7[%c0_11, %c0_12] : memref<2x256xf32, #tpu.memory_space<vmem>>, vector<2x256xf32>
      tpu.vector_store %arg7[%c0_11, %c0_12], %29 {strides = array<i32>} : memref<2x256xf32, #tpu.memory_space<vmem>>, vector<2x256xf32>,
    } else {
    }
    %c0_i32_5 = arith.constant 0 : i32
    %33 = arith.cmpi sgt, %arg1, %c0_i32_5 : i32
    %34 = arith.extui %33 : i1 to i32
    %c0_i32_6 = arith.constant 0 : i32
    %35 = arith.cmpi ne, %34, %c0_i32_6 : i32
    scf.if %35 {
      %c0_9 = arith.constant 0 : index
      %c0_10 = arith.constant 0 : index
      %39 = vector.load %arg6[%c0_9, %c0_10] : memref<2x256xf32, #tpu.memory_space<vmem>>, vector<2x256xf32>
      %40 = arith.addf %39, %28 : vector<2x256xf32>
      %c0_11 = arith.constant 0 : index
      %c0_12 = arith.constant 0 : index
      %41 = vector.load %arg6[%c0_11, %c0_12] : memref<2x256xf32, #tpu.memory_space<vmem>>, vector<2x256xf32>
      tpu.vector_store %arg6[%c0_11, %c0_12], %40 {strides = array<i32>} : memref<2x256xf32, #tpu.memory_space<vmem>>, vector<2x256xf32>,
      %c0_13 = arith.constant 0 : index
      %c0_14 = arith.constant 0 : index
      %42 = vector.load %arg7[%c0_13, %c0_14] : memref<2x256xf32, #tpu.memory_space<vmem>>, vector<2x256xf32>
      %43 = arith.maximumf %42, %29 : vector<2x256xf32>
      %c0_15 = arith.constant 0 : index
      %c0_16 = arith.constant 0 : index
      %44 = vector.load %arg7[%c0_15, %c0_16] : memref<2x256xf32, #tpu.memory_space<vmem>>, vector<2x256xf32>
      tpu.vector_store %arg7[%c0_15, %c0_16], %43 {strides = array<i32>} : memref<2x256xf32, #tpu.memory_space<vmem>>, vector<2x256xf32>,
    } else {
    }
    %c0_i32_7 = arith.constant 0 : i32
    %36 = arith.cmpi eq, %arg1, %c0_i32_7 : i32
    %37 = arith.extui %36 : i1 to i32
    %c0_i32_8 = arith.constant 0 : i32
    %38 = arith.cmpi ne, %37, %c0_i32_8 : i32
    scf.if %38 {
      %c0_9 = arith.constant 0 : index
      %c0_10 = arith.constant 0 : index
      %39 = vector.load %arg6[%c0_9, %c0_10] : memref<2x256xf32, #tpu.memory_space<vmem>>, vector<2x256xf32>
      %cst = arith.constant 2.500000e-01 : f32
      %40 = vector.broadcast %cst : f32 to vector<2x256xf32>
      %41 = arith.mulf %39, %40 : vector<2x256xf32>
      %c0_11 = arith.constant 0 : index
      %c0_12 = arith.constant 0 : index
      %42 = vector.load %arg7[%c0_11, %c0_12] : memref<2x256xf32, #tpu.memory_space<vmem>>, vector<2x256xf32>
      %c0_13 = arith.constant 0 : index
      %43 = memref.load %arg2[%c0_13] : memref<98xf32, #tpu.memory_space<smem>>
      %c1_14 = arith.constant 1 : index
      %44 = memref.load %arg2[%c1_14] : memref<98xf32, #tpu.memory_space<smem>>
      %c2 = arith.constant 2 : index
      %45 = memref.load %arg2[%c2] : memref<98xf32, #tpu.memory_space<smem>>
      %c3 = arith.constant 3 : index
      %46 = memref.load %arg2[%c3] : memref<98xf32, #tpu.memory_space<smem>>
      %c4 = arith.constant 4 : index
      %47 = memref.load %arg2[%c4] : memref<98xf32, #tpu.memory_space<smem>>
      %c5 = arith.constant 5 : index
      %48 = memref.load %arg2[%c5] : memref<98xf32, #tpu.memory_space<smem>>
      %c6 = arith.constant 6 : index
      %49 = memref.load %arg2[%c6] : memref<98xf32, #tpu.memory_space<smem>>
      %c7 = arith.constant 7 : index
      %50 = memref.load %arg2[%c7] : memref<98xf32, #tpu.memory_space<smem>>
      %c8 = arith.constant 8 : index
      %51 = memref.load %arg2[%c8] : memref<98xf32, #tpu.memory_space<smem>>
      %c9 = arith.constant 9 : index
      %52 = memref.load %arg2[%c9] : memref<98xf32, #tpu.memory_space<smem>>
      %c10 = arith.constant 10 : index
      %53 = memref.load %arg2[%c10] : memref<98xf32, #tpu.memory_space<smem>>
      %c11 = arith.constant 11 : index
      %54 = memref.load %arg2[%c11] : memref<98xf32, #tpu.memory_space<smem>>
      %c12 = arith.constant 12 : index
      %55 = memref.load %arg2[%c12] : memref<98xf32, #tpu.memory_space<smem>>
      %c13 = arith.constant 13 : index
      %56 = memref.load %arg2[%c13] : memref<98xf32, #tpu.memory_space<smem>>
      %c14 = arith.constant 14 : index
      %57 = memref.load %arg2[%c14] : memref<98xf32, #tpu.memory_space<smem>>
      %c15 = arith.constant 15 : index
      %58 = memref.load %arg2[%c15] : memref<98xf32, #tpu.memory_space<smem>>
      %c16 = arith.constant 16 : index
      %59 = memref.load %arg2[%c16] : memref<98xf32, #tpu.memory_space<smem>>
      %c17 = arith.constant 17 : index
      %60 = memref.load %arg2[%c17] : memref<98xf32, #tpu.memory_space<smem>>
      %c18 = arith.constant 18 : index
      %61 = memref.load %arg2[%c18] : memref<98xf32, #tpu.memory_space<smem>>
      %c19 = arith.constant 19 : index
      %62 = memref.load %arg2[%c19] : memref<98xf32, #tpu.memory_space<smem>>
      %c20 = arith.constant 20 : index
      %63 = memref.load %arg2[%c20] : memref<98xf32, #tpu.memory_space<smem>>
      %c21 = arith.constant 21 : index
      %64 = memref.load %arg2[%c21] : memref<98xf32, #tpu.memory_space<smem>>
      %c22 = arith.constant 22 : index
      %65 = memref.load %arg2[%c22] : memref<98xf32, #tpu.memory_space<smem>>
      %c23 = arith.constant 23 : index
      %66 = memref.load %arg2[%c23] : memref<98xf32, #tpu.memory_space<smem>>
      %c24 = arith.constant 24 : index
      %67 = memref.load %arg2[%c24] : memref<98xf32, #tpu.memory_space<smem>>
      %c25 = arith.constant 25 : index
      %68 = memref.load %arg2[%c25] : memref<98xf32, #tpu.memory_space<smem>>
      %c26 = arith.constant 26 : index
      %69 = memref.load %arg2[%c26] : memref<98xf32, #tpu.memory_space<smem>>
      %c27 = arith.constant 27 : index
      %70 = memref.load %arg2[%c27] : memref<98xf32, #tpu.memory_space<smem>>
      %c28 = arith.constant 28 : index
      %71 = memref.load %arg2[%c28] : memref<98xf32, #tpu.memory_space<smem>>
      %c29 = arith.constant 29 : index
      %72 = memref.load %arg2[%c29] : memref<98xf32, #tpu.memory_space<smem>>
      %c30 = arith.constant 30 : index
      %73 = memref.load %arg2[%c30] : memref<98xf32, #tpu.memory_space<smem>>
      %c31 = arith.constant 31 : index
      %74 = memref.load %arg2[%c31] : memref<98xf32, #tpu.memory_space<smem>>
      %c32 = arith.constant 32 : index
      %75 = memref.load %arg2[%c32] : memref<98xf32, #tpu.memory_space<smem>>
      %c33 = arith.constant 33 : index
      %76 = memref.load %arg2[%c33] : memref<98xf32, #tpu.memory_space<smem>>
      %c34 = arith.constant 34 : index
      %77 = memref.load %arg2[%c34] : memref<98xf32, #tpu.memory_space<smem>>
      %c35 = arith.constant 35 : index
      %78 = memref.load %arg2[%c35] : memref<98xf32, #tpu.memory_space<smem>>
      %c36 = arith.constant 36 : index
      %79 = memref.load %arg2[%c36] : memref<98xf32, #tpu.memory_space<smem>>
      %c37 = arith.constant 37 : index
      %80 = memref.load %arg2[%c37] : memref<98xf32, #tpu.memory_space<smem>>
      %c38 = arith.constant 38 : index
      %81 = memref.load %arg2[%c38] : memref<98xf32, #tpu.memory_space<smem>>
      %c39 = arith.constant 39 : index
      %82 = memref.load %arg2[%c39] : memref<98xf32, #tpu.memory_space<smem>>
      %c40 = arith.constant 40 : index
      %83 = memref.load %arg2[%c40] : memref<98xf32, #tpu.memory_space<smem>>
      %c41 = arith.constant 41 : index
      %84 = memref.load %arg2[%c41] : memref<98xf32, #tpu.memory_space<smem>>
      %c42 = arith.constant 42 : index
      %85 = memref.load %arg2[%c42] : memref<98xf32, #tpu.memory_space<smem>>
      %c43 = arith.constant 43 : index
      %86 = memref.load %arg2[%c43] : memref<98xf32, #tpu.memory_space<smem>>
      %c44 = arith.constant 44 : index
      %87 = memref.load %arg2[%c44] : memref<98xf32, #tpu.memory_space<smem>>
      %c45 = arith.constant 45 : index
      %88 = memref.load %arg2[%c45] : memref<98xf32, #tpu.memory_space<smem>>
      %c46 = arith.constant 46 : index
      %89 = memref.load %arg2[%c46] : memref<98xf32, #tpu.memory_space<smem>>
      %c47 = arith.constant 47 : index
      %90 = memref.load %arg2[%c47] : memref<98xf32, #tpu.memory_space<smem>>
      %c48 = arith.constant 48 : index
      %91 = memref.load %arg2[%c48] : memref<98xf32, #tpu.memory_space<smem>>
      %c49 = arith.constant 49 : index
      %92 = memref.load %arg2[%c49] : memref<98xf32, #tpu.memory_space<smem>>
      %c50 = arith.constant 50 : index
      %93 = memref.load %arg2[%c50] : memref<98xf32, #tpu.memory_space<smem>>
      %c51 = arith.constant 51 : index
      %94 = memref.load %arg2[%c51] : memref<98xf32, #tpu.memory_space<smem>>
      %c52 = arith.constant 52 : index
      %95 = memref.load %arg2[%c52] : memref<98xf32, #tpu.memory_space<smem>>
      %c53 = arith.constant 53 : index
      %96 = memref.load %arg2[%c53] : memref<98xf32, #tpu.memory_space<smem>>
      %c54 = arith.constant 54 : index
      %97 = memref.load %arg2[%c54] : memref<98xf32, #tpu.memory_space<smem>>
      %c55 = arith.constant 55 : index
      %98 = memref.load %arg2[%c55] : memref<98xf32, #tpu.memory_space<smem>>
      %c56 = arith.constant 56 : index
      %99 = memref.load %arg2[%c56] : memref<98xf32, #tpu.memory_space<smem>>
      %c57 = arith.constant 57 : index
      %100 = memref.load %arg2[%c57] : memref<98xf32, #tpu.memory_space<smem>>
      %c58 = arith.constant 58 : index
      %101 = memref.load %arg2[%c58] : memref<98xf32, #tpu.memory_space<smem>>
      %c59 = arith.constant 59 : index
      %102 = memref.load %arg2[%c59] : memref<98xf32, #tpu.memory_space<smem>>
      %c60 = arith.constant 60 : index
      %103 = memref.load %arg2[%c60] : memref<98xf32, #tpu.memory_space<smem>>
      %c61 = arith.constant 61 : index
      %104 = memref.load %arg2[%c61] : memref<98xf32, #tpu.memory_space<smem>>
      %c62 = arith.constant 62 : index
      %105 = memref.load %arg2[%c62] : memref<98xf32, #tpu.memory_space<smem>>
      %c63 = arith.constant 63 : index
      %106 = memref.load %arg2[%c63] : memref<98xf32, #tpu.memory_space<smem>>
      %c64 = arith.constant 64 : index
      %107 = memref.load %arg2[%c64] : memref<98xf32, #tpu.memory_space<smem>>
      %c65 = arith.constant 65 : index
      %108 = memref.load %arg2[%c65] : memref<98xf32, #tpu.memory_space<smem>>
      %c66 = arith.constant 66 : index
      %109 = memref.load %arg2[%c66] : memref<98xf32, #tpu.memory_space<smem>>
      %c67 = arith.constant 67 : index
      %110 = memref.load %arg2[%c67] : memref<98xf32, #tpu.memory_space<smem>>
      %c68 = arith.constant 68 : index
      %111 = memref.load %arg2[%c68] : memref<98xf32, #tpu.memory_space<smem>>
      %c69 = arith.constant 69 : index
      %112 = memref.load %arg2[%c69] : memref<98xf32, #tpu.memory_space<smem>>
      %c70 = arith.constant 70 : index
      %113 = memref.load %arg2[%c70] : memref<98xf32, #tpu.memory_space<smem>>
      %c71 = arith.constant 71 : index
      %114 = memref.load %arg2[%c71] : memref<98xf32, #tpu.memory_space<smem>>
      %c72 = arith.constant 72 : index
      %115 = memref.load %arg2[%c72] : memref<98xf32, #tpu.memory_space<smem>>
      %c73 = arith.constant 73 : index
      %116 = memref.load %arg2[%c73] : memref<98xf32, #tpu.memory_space<smem>>
      %c74 = arith.constant 74 : index
      %117 = memref.load %arg2[%c74] : memref<98xf32, #tpu.memory_space<smem>>
      %c75 = arith.constant 75 : index
      %118 = memref.load %arg2[%c75] : memref<98xf32, #tpu.memory_space<smem>>
      %c76 = arith.constant 76 : index
      %119 = memref.load %arg2[%c76] : memref<98xf32, #tpu.memory_space<smem>>
      %c77 = arith.constant 77 : index
      %120 = memref.load %arg2[%c77] : memref<98xf32, #tpu.memory_space<smem>>
      %c78 = arith.constant 78 : index
      %121 = memref.load %arg2[%c78] : memref<98xf32, #tpu.memory_space<smem>>
      %c79 = arith.constant 79 : index
      %122 = memref.load %arg2[%c79] : memref<98xf32, #tpu.memory_space<smem>>
      %c80 = arith.constant 80 : index
      %123 = memref.load %arg2[%c80] : memref<98xf32, #tpu.memory_space<smem>>
      %c81 = arith.constant 81 : index
      %124 = memref.load %arg2[%c81] : memref<98xf32, #tpu.memory_space<smem>>
      %c82 = arith.constant 82 : index
      %125 = memref.load %arg2[%c82] : memref<98xf32, #tpu.memory_space<smem>>
      %c83 = arith.constant 83 : index
      %126 = memref.load %arg2[%c83] : memref<98xf32, #tpu.memory_space<smem>>
      %c84 = arith.constant 84 : index
      %127 = memref.load %arg2[%c84] : memref<98xf32, #tpu.memory_space<smem>>
      %c85 = arith.constant 85 : index
      %128 = memref.load %arg2[%c85] : memref<98xf32, #tpu.memory_space<smem>>
      %c86 = arith.constant 86 : index
      %129 = memref.load %arg2[%c86] : memref<98xf32, #tpu.memory_space<smem>>
      %c87 = arith.constant 87 : index
      %130 = memref.load %arg2[%c87] : memref<98xf32, #tpu.memory_space<smem>>
      %c88 = arith.constant 88 : index
      %131 = memref.load %arg2[%c88] : memref<98xf32, #tpu.memory_space<smem>>
      %c89 = arith.constant 89 : index
      %132 = memref.load %arg2[%c89] : memref<98xf32, #tpu.memory_space<smem>>
      %c90 = arith.constant 90 : index
      %133 = memref.load %arg2[%c90] : memref<98xf32, #tpu.memory_space<smem>>
      %c91 = arith.constant 91 : index
      %134 = memref.load %arg2[%c91] : memref<98xf32, #tpu.memory_space<smem>>
      %c92 = arith.constant 92 : index
      %135 = memref.load %arg2[%c92] : memref<98xf32, #tpu.memory_space<smem>>
      %c93 = arith.constant 93 : index
      %136 = memref.load %arg2[%c93] : memref<98xf32, #tpu.memory_space<smem>>
      %c94 = arith.constant 94 : index
      %137 = memref.load %arg2[%c94] : memref<98xf32, #tpu.memory_space<smem>>
      %c95 = arith.constant 95 : index
      %138 = memref.load %arg2[%c95] : memref<98xf32, #tpu.memory_space<smem>>
      %c96 = arith.constant 96 : index
      %139 = memref.load %arg2[%c96] : memref<98xf32, #tpu.memory_space<smem>>
      %c97 = arith.constant 97 : index
      %140 = memref.load %arg2[%c97] : memref<98xf32, #tpu.memory_space<smem>>
      %cst_15 = arith.constant 0.000000e+00 : f32
      %141 = vector.broadcast %cst_15 : f32 to vector<2x256xf32>
      %cst_16 = arith.constant 0.000000e+00 : f32
      %142 = vector.broadcast %cst_16 : f32 to vector<2x256xf32>
      %cst_17 = arith.constant 0.000000e+00 : f32
      %143 = vector.broadcast %cst_17 : f32 to vector<2x256xf32>
      %cst_18 = arith.constant 0.000000e+00 : f32
      %144 = vector.broadcast %cst_18 : f32 to vector<2x256xf32>
      %145 = vector.broadcast %43 : f32 to vector<2x256xf32>
      %146 = arith.mulf %145, %41 : vector<2x256xf32>
      %147 = vector.broadcast %92 : f32 to vector<2x256xf32>
      %148 = arith.mulf %147, %42 : vector<2x256xf32>
      %149 = arith.addf %146, %148 : vector<2x256xf32>
      %150 = vector.extract_strided_slice %149 {offsets = [0, 205], sizes = [2, 51], strides = [1, 1]} : vector<2x256xf32> to vector<2x51xf32>
      %151 = vector.extract_strided_slice %149 {offsets = [0, 0], sizes = [2, 205], strides = [1, 1]} : vector<2x256xf32> to vector<2x205xf32>
      %152 = tpu.concatenate %150, %151 in 1 : vector<2x51xf32>, vector<2x205xf32> -> vector<2x256xf32>
      %c0_19 = arith.constant 0 : index
      %c0_20 = arith.constant 0 : index
      %c0_21 = arith.constant 0 : index
      %153 = vector.load %arg3[%c0_19, %c0_20, %c0_21] : memref<49x1x256xf32, #tpu.memory_space<vmem>>, vector<1x1x256xf32>
      %154 = vector.shape_cast %153 : vector<1x1x256xf32> to vector<1x256xf32>
      %155 = vector.broadcast %154 : vector<1x256xf32> to vector<2x256xf32>
      %156 = arith.mulf %152, %155 : vector<2x256xf32>
      %157 = arith.addf %141, %156 : vector<2x256xf32>
      %158 = vector.broadcast %44 : f32 to vector<2x256xf32>
      %159 = arith.mulf %158, %41 : vector<2x256xf32>
      %160 = vector.broadcast %93 : f32 to vector<2x256xf32>
      %161 = arith.mulf %160, %42 : vector<2x256xf32>
      %162 = arith.addf %159, %161 : vector<2x256xf32>
      %163 = vector.extract_strided_slice %162 {offsets = [0, 206], sizes = [2, 50], strides = [1, 1]} : vector<2x256xf32> to vector<2x50xf32>
      %164 = vector.extract_strided_slice %162 {offsets = [0, 0], sizes = [2, 206], strides = [1, 1]} : vector<2x256xf32> to vector<2x206xf32>
      %165 = tpu.concatenate %163, %164 in 1 : vector<2x50xf32>, vector<2x206xf32> -> vector<2x256xf32>
      %c1_22 = arith.constant 1 : index
      %c0_23 = arith.constant 0 : index
      %c0_24 = arith.constant 0 : index
      %166 = vector.load %arg3[%c1_22, %c0_23, %c0_24] : memref<49x1x256xf32, #tpu.memory_space<vmem>>, vector<1x1x256xf32>
      %167 = vector.shape_cast %166 : vector<1x1x256xf32> to vector<1x256xf32>
      %168 = vector.broadcast %167 : vector<1x256xf32> to vector<2x256xf32>
      %169 = arith.mulf %165, %168 : vector<2x256xf32>
      %170 = arith.addf %142, %169 : vector<2x256xf32>
      %171 = vector.broadcast %45 : f32 to vector<2x256xf32>
      %172 = arith.mulf %171, %41 : vector<2x256xf32>
      %173 = vector.broadcast %94 : f32 to vector<2x256xf32>
      %174 = arith.mulf %173, %42 : vector<2x256xf32>
      %175 = arith.addf %172, %174 : vector<2x256xf32>
      %176 = vector.extract_strided_slice %175 {offsets = [0, 207], sizes = [2, 49], strides = [1, 1]} : vector<2x256xf32> to vector<2x49xf32>
      %177 = vector.extract_strided_slice %175 {offsets = [0, 0], sizes = [2, 207], strides = [1, 1]} : vector<2x256xf32> to vector<2x207xf32>
      %178 = tpu.concatenate %176, %177 in 1 : vector<2x49xf32>, vector<2x207xf32> -> vector<2x256xf32>
      %c2_25 = arith.constant 2 : index
      %c0_26 = arith.constant 0 : index
      %c0_27 = arith.constant 0 : index
      %179 = vector.load %arg3[%c2_25, %c0_26, %c0_27] : memref<49x1x256xf32, #tpu.memory_space<vmem>>, vector<1x1x256xf32>
      %180 = vector.shape_cast %179 : vector<1x1x256xf32> to vector<1x256xf32>
      %181 = vector.broadcast %180 : vector<1x256xf32> to vector<2x256xf32>
      %182 = arith.mulf %178, %181 : vector<2x256xf32>
      %183 = arith.addf %143, %182 : vector<2x256xf32>
      %184 = vector.broadcast %46 : f32 to vector<2x256xf32>
      %185 = arith.mulf %184, %41 : vector<2x256xf32>
      %186 = vector.broadcast %95 : f32 to vector<2x256xf32>
      %187 = arith.mulf %186, %42 : vector<2x256xf32>
      %188 = arith.addf %185, %187 : vector<2x256xf32>
      %189 = vector.extract_strided_slice %188 {offsets = [0, 208], sizes = [2, 48], strides = [1, 1]} : vector<2x256xf32> to vector<2x48xf32>
      %190 = vector.extract_strided_slice %188 {offsets = [0, 0], sizes = [2, 208], strides = [1, 1]} : vector<2x256xf32> to vector<2x208xf32>
      %191 = tpu.concatenate %189, %190 in 1 : vector<2x48xf32>, vector<2x208xf32> -> vector<2x256xf32>
      %c3_28 = arith.constant 3 : index
      %c0_29 = arith.constant 0 : index
      %c0_30 = arith.constant 0 : index
      %192 = vector.load %arg3[%c3_28, %c0_29, %c0_30] : memref<49x1x256xf32, #tpu.memory_space<vmem>>, vector<1x1x256xf32>
      %193 = vector.shape_cast %192 : vector<1x1x256xf32> to vector<1x256xf32>
      %194 = vector.broadcast %193 : vector<1x256xf32> to vector<2x256xf32>
      %195 = arith.mulf %191, %194 : vector<2x256xf32>
      %196 = arith.addf %144, %195 : vector<2x256xf32>
      %197 = vector.broadcast %47 : f32 to vector<2x256xf32>
      %198 = arith.mulf %197, %41 : vector<2x256xf32>
      %199 = vector.broadcast %96 : f32 to vector<2x256xf32>
      %200 = arith.mulf %199, %42 : vector<2x256xf32>
      %201 = arith.addf %198, %200 : vector<2x256xf32>
      %202 = vector.extract_strided_slice %201 {offsets = [0, 209], sizes = [2, 47], strides = [1, 1]} : vector<2x256xf32> to vector<2x47xf32>
      %203 = vector.extract_strided_slice %201 {offsets = [0, 0], sizes = [2, 209], strides = [1, 1]} : vector<2x256xf32> to vector<2x209xf32>
      %204 = tpu.concatenate %202, %203 in 1 : vector<2x47xf32>, vector<2x209xf32> -> vector<2x256xf32>
      %c4_31 = arith.constant 4 : index
      %c0_32 = arith.constant 0 : index
      %c0_33 = arith.constant 0 : index
      %205 = vector.load %arg3[%c4_31, %c0_32, %c0_33] : memref<49x1x256xf32, #tpu.memory_space<vmem>>, vector<1x1x256xf32>
      %206 = vector.shape_cast %205 : vector<1x1x256xf32> to vector<1x256xf32>
      %207 = vector.broadcast %206 : vector<1x256xf32> to vector<2x256xf32>
      %208 = arith.mulf %204, %207 : vector<2x256xf32>
      %209 = arith.addf %157, %208 : vector<2x256xf32>
      %210 = vector.broadcast %48 : f32 to vector<2x256xf32>
      %211 = arith.mulf %210, %41 : vector<2x256xf32>
      %212 = vector.broadcast %97 : f32 to vector<2x256xf32>
      %213 = arith.mulf %212, %42 : vector<2x256xf32>
      %214 = arith.addf %211, %213 : vector<2x256xf32>
      %215 = vector.extract_strided_slice %214 {offsets = [0, 210], sizes = [2, 46], strides = [1, 1]} : vector<2x256xf32> to vector<2x46xf32>
      %216 = vector.extract_strided_slice %214 {offsets = [0, 0], sizes = [2, 210], strides = [1, 1]} : vector<2x256xf32> to vector<2x210xf32>
      %217 = tpu.concatenate %215, %216 in 1 : vector<2x46xf32>, vector<2x210xf32> -> vector<2x256xf32>
      %c5_34 = arith.constant 5 : index
      %c0_35 = arith.constant 0 : index
      %c0_36 = arith.constant 0 : index
      %218 = vector.load %arg3[%c5_34, %c0_35, %c0_36] : memref<49x1x256xf32, #tpu.memory_space<vmem>>, vector<1x1x256xf32>
      %219 = vector.shape_cast %218 : vector<1x1x256xf32> to vector<1x256xf32>
      %220 = vector.broadcast %219 : vector<1x256xf32> to vector<2x256xf32>
      %221 = arith.mulf %217, %220 : vector<2x256xf32>
      %222 = arith.addf %170, %221 : vector<2x256xf32>
      %223 = vector.broadcast %49 : f32 to vector<2x256xf32>
      %224 = arith.mulf %223, %41 : vector<2x256xf32>
      %225 = vector.broadcast %98 : f32 to vector<2x256xf32>
      %226 = arith.mulf %225, %42 : vector<2x256xf32>
      %227 = arith.addf %224, %226 : vector<2x256xf32>
      %228 = vector.extract_strided_slice %227 {offsets = [0, 211], sizes = [2, 45], strides = [1, 1]} : vector<2x256xf32> to vector<2x45xf32>
      %229 = vector.extract_strided_slice %227 {offsets = [0, 0], sizes = [2, 211], strides = [1, 1]} : vector<2x256xf32> to vector<2x211xf32>
      %230 = tpu.concatenate %228, %229 in 1 : vector<2x45xf32>, vector<2x211xf32> -> vector<2x256xf32>
      %c6_37 = arith.constant 6 : index
      %c0_38 = arith.constant 0 : index
      %c0_39 = arith.constant 0 : index
      %231 = vector.load %arg3[%c6_37, %c0_38, %c0_39] : memref<49x1x256xf32, #tpu.memory_space<vmem>>, vector<1x1x256xf32>
      %232 = vector.shape_cast %231 : vector<1x1x256xf32> to vector<1x256xf32>
      %233 = vector.broadcast %232 : vector<1x256xf32> to vector<2x256xf32>
      %234 = arith.mulf %230, %233 : vector<2x256xf32>
      %235 = arith.addf %183, %234 : vector<2x256xf32>
      %236 = vector.broadcast %50 : f32 to vector<2x256xf32>
      %237 = arith.mulf %236, %41 : vector<2x256xf32>
      %238 = vector.broadcast %99 : f32 to vector<2x256xf32>
      %239 = arith.mulf %238, %42 : vector<2x256xf32>
      %240 = arith.addf %237, %239 : vector<2x256xf32>
      %241 = vector.extract_strided_slice %240 {offsets = [0, 221], sizes = [2, 35], strides = [1, 1]} : vector<2x256xf32> to vector<2x35xf32>
      %242 = vector.extract_strided_slice %240 {offsets = [0, 0], sizes = [2, 221], strides = [1, 1]} : vector<2x256xf32> to vector<2x221xf32>
      %243 = tpu.concatenate %241, %242 in 1 : vector<2x35xf32>, vector<2x221xf32> -> vector<2x256xf32>
      %c7_40 = arith.constant 7 : index
      %c0_41 = arith.constant 0 : index
      %c0_42 = arith.constant 0 : index
      %244 = vector.load %arg3[%c7_40, %c0_41, %c0_42] : memref<49x1x256xf32, #tpu.memory_space<vmem>>, vector<1x1x256xf32>
      %245 = vector.shape_cast %244 : vector<1x1x256xf32> to vector<1x256xf32>
      %246 = vector.broadcast %245 : vector<1x256xf32> to vector<2x256xf32>
      %247 = arith.mulf %243, %246 : vector<2x256xf32>
      %248 = arith.addf %196, %247 : vector<2x256xf32>
      %249 = vector.broadcast %51 : f32 to vector<2x256xf32>
      %250 = arith.mulf %249, %41 : vector<2x256xf32>
      %251 = vector.broadcast %100 : f32 to vector<2x256xf32>
      %252 = arith.mulf %251, %42 : vector<2x256xf32>
      %253 = arith.addf %250, %252 : vector<2x256xf32>
      %254 = vector.extract_strided_slice %253 {offsets = [0, 222], sizes = [2, 34], strides = [1, 1]} : vector<2x256xf32> to vector<2x34xf32>
      %255 = vector.extract_strided_slice %253 {offsets = [0, 0], sizes = [2, 222], strides = [1, 1]} : vector<2x256xf32> to vector<2x222xf32>
      %256 = tpu.concatenate %254, %255 in 1 : vector<2x34xf32>, vector<2x222xf32> -> vector<2x256xf32>
      %c8_43 = arith.constant 8 : index
      %c0_44 = arith.constant 0 : index
      %c0_45 = arith.constant 0 : index
      %257 = vector.load %arg3[%c8_43, %c0_44, %c0_45] : memref<49x1x256xf32, #tpu.memory_space<vmem>>, vector<1x1x256xf32>
      %258 = vector.shape_cast %257 : vector<1x1x256xf32> to vector<1x256xf32>
      %259 = vector.broadcast %258 : vector<1x256xf32> to vector<2x256xf32>
      %260 = arith.mulf %256, %259 : vector<2x256xf32>
      %261 = arith.addf %209, %260 : vector<2x256xf32>
      %262 = vector.broadcast %52 : f32 to vector<2x256xf32>
      %263 = arith.mulf %262, %41 : vector<2x256xf32>
      %264 = vector.broadcast %101 : f32 to vector<2x256xf32>
      %265 = arith.mulf %264, %42 : vector<2x256xf32>
      %266 = arith.addf %263, %265 : vector<2x256xf32>
      %267 = vector.extract_strided_slice %266 {offsets = [0, 223], sizes = [2, 33], strides = [1, 1]} : vector<2x256xf32> to vector<2x33xf32>
      %268 = vector.extract_strided_slice %266 {offsets = [0, 0], sizes = [2, 223], strides = [1, 1]} : vector<2x256xf32> to vector<2x223xf32>
      %269 = tpu.concatenate %267, %268 in 1 : vector<2x33xf32>, vector<2x223xf32> -> vector<2x256xf32>
      %c9_46 = arith.constant 9 : index
      %c0_47 = arith.constant 0 : index
      %c0_48 = arith.constant 0 : index
      %270 = vector.load %arg3[%c9_46, %c0_47, %c0_48] : memref<49x1x256xf32, #tpu.memory_space<vmem>>, vector<1x1x256xf32>
      %271 = vector.shape_cast %270 : vector<1x1x256xf32> to vector<1x256xf32>
      %272 = vector.broadcast %271 : vector<1x256xf32> to vector<2x256xf32>
      %273 = arith.mulf %269, %272 : vector<2x256xf32>
      %274 = arith.addf %222, %273 : vector<2x256xf32>
      %275 = vector.broadcast %53 : f32 to vector<2x256xf32>
      %276 = arith.mulf %275, %41 : vector<2x256xf32>
      %277 = vector.broadcast %102 : f32 to vector<2x256xf32>
      %278 = arith.mulf %277, %42 : vector<2x256xf32>
      %279 = arith.addf %276, %278 : vector<2x256xf32>
      %280 = vector.extract_strided_slice %279 {offsets = [0, 224], sizes = [2, 32], strides = [1, 1]} : vector<2x256xf32> to vector<2x32xf32>
      %281 = vector.extract_strided_slice %279 {offsets = [0, 0], sizes = [2, 224], strides = [1, 1]} : vector<2x256xf32> to vector<2x224xf32>
      %282 = tpu.concatenate %280, %281 in 1 : vector<2x32xf32>, vector<2x224xf32> -> vector<2x256xf32>
      %c10_49 = arith.constant 10 : index
      %c0_50 = arith.constant 0 : index
      %c0_51 = arith.constant 0 : index
      %283 = vector.load %arg3[%c10_49, %c0_50, %c0_51] : memref<49x1x256xf32, #tpu.memory_space<vmem>>, vector<1x1x256xf32>
      %284 = vector.shape_cast %283 : vector<1x1x256xf32> to vector<1x256xf32>
      %285 = vector.broadcast %284 : vector<1x256xf32> to vector<2x256xf32>
      %286 = arith.mulf %282, %285 : vector<2x256xf32>
      %287 = arith.addf %235, %286 : vector<2x256xf32>
      %288 = vector.broadcast %54 : f32 to vector<2x256xf32>
      %289 = arith.mulf %288, %41 : vector<2x256xf32>
      %290 = vector.broadcast %103 : f32 to vector<2x256xf32>
      %291 = arith.mulf %290, %42 : vector<2x256xf32>
      %292 = arith.addf %289, %291 : vector<2x256xf32>
      %293 = vector.extract_strided_slice %292 {offsets = [0, 225], sizes = [2, 31], strides = [1, 1]} : vector<2x256xf32> to vector<2x31xf32>
      %294 = vector.extract_strided_slice %292 {offsets = [0, 0], sizes = [2, 225], strides = [1, 1]} : vector<2x256xf32> to vector<2x225xf32>
      %295 = tpu.concatenate %293, %294 in 1 : vector<2x31xf32>, vector<2x225xf32> -> vector<2x256xf32>
      %c11_52 = arith.constant 11 : index
      %c0_53 = arith.constant 0 : index
      %c0_54 = arith.constant 0 : index
      %296 = vector.load %arg3[%c11_52, %c0_53, %c0_54] : memref<49x1x256xf32, #tpu.memory_space<vmem>>, vector<1x1x256xf32>
      %297 = vector.shape_cast %296 : vector<1x1x256xf32> to vector<1x256xf32>
      %298 = vector.broadcast %297 : vector<1x256xf32> to vector<2x256xf32>
      %299 = arith.mulf %295, %298 : vector<2x256xf32>
      %300 = arith.addf %248, %299 : vector<2x256xf32>
      %301 = vector.broadcast %55 : f32 to vector<2x256xf32>
      %302 = arith.mulf %301, %41 : vector<2x256xf32>
      %303 = vector.broadcast %104 : f32 to vector<2x256xf32>
      %304 = arith.mulf %303, %42 : vector<2x256xf32>
      %305 = arith.addf %302, %304 : vector<2x256xf32>
      %306 = vector.extract_strided_slice %305 {offsets = [0, 226], sizes = [2, 30], strides = [1, 1]} : vector<2x256xf32> to vector<2x30xf32>
      %307 = vector.extract_strided_slice %305 {offsets = [0, 0], sizes = [2, 226], strides = [1, 1]} : vector<2x256xf32> to vector<2x226xf32>
      %308 = tpu.concatenate %306, %307 in 1 : vector<2x30xf32>, vector<2x226xf32> -> vector<2x256xf32>
      %c12_55 = arith.constant 12 : index
      %c0_56 = arith.constant 0 : index
      %c0_57 = arith.constant 0 : index
      %309 = vector.load %arg3[%c12_55, %c0_56, %c0_57] : memref<49x1x256xf32, #tpu.memory_space<vmem>>, vector<1x1x256xf32>
      %310 = vector.shape_cast %309 : vector<1x1x256xf32> to vector<1x256xf32>
      %311 = vector.broadcast %310 : vector<1x256xf32> to vector<2x256xf32>
      %312 = arith.mulf %308, %311 : vector<2x256xf32>
      %313 = arith.addf %261, %312 : vector<2x256xf32>
      %314 = vector.broadcast %56 : f32 to vector<2x256xf32>
      %315 = arith.mulf %314, %41 : vector<2x256xf32>
      %316 = vector.broadcast %105 : f32 to vector<2x256xf32>
      %317 = arith.mulf %316, %42 : vector<2x256xf32>
      %318 = arith.addf %315, %317 : vector<2x256xf32>
      %319 = vector.extract_strided_slice %318 {offsets = [0, 227], sizes = [2, 29], strides = [1, 1]} : vector<2x256xf32> to vector<2x29xf32>
      %320 = vector.extract_strided_slice %318 {offsets = [0, 0], sizes = [2, 227], strides = [1, 1]} : vector<2x256xf32> to vector<2x227xf32>
      %321 = tpu.concatenate %319, %320 in 1 : vector<2x29xf32>, vector<2x227xf32> -> vector<2x256xf32>
      %c13_58 = arith.constant 13 : index
      %c0_59 = arith.constant 0 : index
      %c0_60 = arith.constant 0 : index
      %322 = vector.load %arg3[%c13_58, %c0_59, %c0_60] : memref<49x1x256xf32, #tpu.memory_space<vmem>>, vector<1x1x256xf32>
      %323 = vector.shape_cast %322 : vector<1x1x256xf32> to vector<1x256xf32>
      %324 = vector.broadcast %323 : vector<1x256xf32> to vector<2x256xf32>
      %325 = arith.mulf %321, %324 : vector<2x256xf32>
      %326 = arith.addf %274, %325 : vector<2x256xf32>
      %327 = vector.broadcast %57 : f32 to vector<2x256xf32>
      %328 = arith.mulf %327, %41 : vector<2x256xf32>
      %329 = vector.broadcast %106 : f32 to vector<2x256xf32>
      %330 = arith.mulf %329, %42 : vector<2x256xf32>
      %331 = arith.addf %328, %330 : vector<2x256xf32>
      %332 = vector.extract_strided_slice %331 {offsets = [0, 237], sizes = [2, 19], strides = [1, 1]} : vector<2x256xf32> to vector<2x19xf32>
      %333 = vector.extract_strided_slice %331 {offsets = [0, 0], sizes = [2, 237], strides = [1, 1]} : vector<2x256xf32> to vector<2x237xf32>
      %334 = tpu.concatenate %332, %333 in 1 : vector<2x19xf32>, vector<2x237xf32> -> vector<2x256xf32>
      %c14_61 = arith.constant 14 : index
      %c0_62 = arith.constant 0 : index
      %c0_63 = arith.constant 0 : index
      %335 = vector.load %arg3[%c14_61, %c0_62, %c0_63] : memref<49x1x256xf32, #tpu.memory_space<vmem>>, vector<1x1x256xf32>
      %336 = vector.shape_cast %335 : vector<1x1x256xf32> to vector<1x256xf32>
      %337 = vector.broadcast %336 : vector<1x256xf32> to vector<2x256xf32>
      %338 = arith.mulf %334, %337 : vector<2x256xf32>
      %339 = arith.addf %287, %338 : vector<2x256xf32>
      %340 = vector.broadcast %58 : f32 to vector<2x256xf32>
      %341 = arith.mulf %340, %41 : vector<2x256xf32>
      %342 = vector.broadcast %107 : f32 to vector<2x256xf32>
      %343 = arith.mulf %342, %42 : vector<2x256xf32>
      %344 = arith.addf %341, %343 : vector<2x256xf32>
      %345 = vector.extract_strided_slice %344 {offsets = [0, 238], sizes = [2, 18], strides = [1, 1]} : vector<2x256xf32> to vector<2x18xf32>
      %346 = vector.extract_strided_slice %344 {offsets = [0, 0], sizes = [2, 238], strides = [1, 1]} : vector<2x256xf32> to vector<2x238xf32>
      %347 = tpu.concatenate %345, %346 in 1 : vector<2x18xf32>, vector<2x238xf32> -> vector<2x256xf32>
      %c15_64 = arith.constant 15 : index
      %c0_65 = arith.constant 0 : index
      %c0_66 = arith.constant 0 : index
      %348 = vector.load %arg3[%c15_64, %c0_65, %c0_66] : memref<49x1x256xf32, #tpu.memory_space<vmem>>, vector<1x1x256xf32>
      %349 = vector.shape_cast %348 : vector<1x1x256xf32> to vector<1x256xf32>
      %350 = vector.broadcast %349 : vector<1x256xf32> to vector<2x256xf32>
      %351 = arith.mulf %347, %350 : vector<2x256xf32>
      %352 = arith.addf %300, %351 : vector<2x256xf32>
      %353 = vector.broadcast %59 : f32 to vector<2x256xf32>
      %354 = arith.mulf %353, %41 : vector<2x256xf32>
      %355 = vector.broadcast %108 : f32 to vector<2x256xf32>
      %356 = arith.mulf %355, %42 : vector<2x256xf32>
      %357 = arith.addf %354, %356 : vector<2x256xf32>
      %358 = vector.extract_strided_slice %357 {offsets = [0, 239], sizes = [2, 17], strides = [1, 1]} : vector<2x256xf32> to vector<2x17xf32>
      %359 = vector.extract_strided_slice %357 {offsets = [0, 0], sizes = [2, 239], strides = [1, 1]} : vector<2x256xf32> to vector<2x239xf32>
      %360 = tpu.concatenate %358, %359 in 1 : vector<2x17xf32>, vector<2x239xf32> -> vector<2x256xf32>
      %c16_67 = arith.constant 16 : index
      %c0_68 = arith.constant 0 : index
      %c0_69 = arith.constant 0 : index
      %361 = vector.load %arg3[%c16_67, %c0_68, %c0_69] : memref<49x1x256xf32, #tpu.memory_space<vmem>>, vector<1x1x256xf32>
      %362 = vector.shape_cast %361 : vector<1x1x256xf32> to vector<1x256xf32>
      %363 = vector.broadcast %362 : vector<1x256xf32> to vector<2x256xf32>
      %364 = arith.mulf %360, %363 : vector<2x256xf32>
      %365 = arith.addf %313, %364 : vector<2x256xf32>
      %366 = vector.broadcast %60 : f32 to vector<2x256xf32>
      %367 = arith.mulf %366, %41 : vector<2x256xf32>
      %368 = vector.broadcast %109 : f32 to vector<2x256xf32>
      %369 = arith.mulf %368, %42 : vector<2x256xf32>
      %370 = arith.addf %367, %369 : vector<2x256xf32>
      %371 = vector.extract_strided_slice %370 {offsets = [0, 240], sizes = [2, 16], strides = [1, 1]} : vector<2x256xf32> to vector<2x16xf32>
      %372 = vector.extract_strided_slice %370 {offsets = [0, 0], sizes = [2, 240], strides = [1, 1]} : vector<2x256xf32> to vector<2x240xf32>
      %373 = tpu.concatenate %371, %372 in 1 : vector<2x16xf32>, vector<2x240xf32> -> vector<2x256xf32>
      %c17_70 = arith.constant 17 : index
      %c0_71 = arith.constant 0 : index
      %c0_72 = arith.constant 0 : index
      %374 = vector.load %arg3[%c17_70, %c0_71, %c0_72] : memref<49x1x256xf32, #tpu.memory_space<vmem>>, vector<1x1x256xf32>
      %375 = vector.shape_cast %374 : vector<1x1x256xf32> to vector<1x256xf32>
      %376 = vector.broadcast %375 : vector<1x256xf32> to vector<2x256xf32>
      %377 = arith.mulf %373, %376 : vector<2x256xf32>
      %378 = arith.addf %326, %377 : vector<2x256xf32>
      %379 = vector.broadcast %61 : f32 to vector<2x256xf32>
      %380 = arith.mulf %379, %41 : vector<2x256xf32>
      %381 = vector.broadcast %110 : f32 to vector<2x256xf32>
      %382 = arith.mulf %381, %42 : vector<2x256xf32>
      %383 = arith.addf %380, %382 : vector<2x256xf32>
      %384 = vector.extract_strided_slice %383 {offsets = [0, 241], sizes = [2, 15], strides = [1, 1]} : vector<2x256xf32> to vector<2x15xf32>
      %385 = vector.extract_strided_slice %383 {offsets = [0, 0], sizes = [2, 241], strides = [1, 1]} : vector<2x256xf32> to vector<2x241xf32>
      %386 = tpu.concatenate %384, %385 in 1 : vector<2x15xf32>, vector<2x241xf32> -> vector<2x256xf32>
      %c18_73 = arith.constant 18 : index
      %c0_74 = arith.constant 0 : index
      %c0_75 = arith.constant 0 : index
      %387 = vector.load %arg3[%c18_73, %c0_74, %c0_75] : memref<49x1x256xf32, #tpu.memory_space<vmem>>, vector<1x1x256xf32>
      %388 = vector.shape_cast %387 : vector<1x1x256xf32> to vector<1x256xf32>
      %389 = vector.broadcast %388 : vector<1x256xf32> to vector<2x256xf32>
      %390 = arith.mulf %386, %389 : vector<2x256xf32>
      %391 = arith.addf %339, %390 : vector<2x256xf32>
      %392 = vector.broadcast %62 : f32 to vector<2x256xf32>
      %393 = arith.mulf %392, %41 : vector<2x256xf32>
      %394 = vector.broadcast %111 : f32 to vector<2x256xf32>
      %395 = arith.mulf %394, %42 : vector<2x256xf32>
      %396 = arith.addf %393, %395 : vector<2x256xf32>
      %397 = vector.extract_strided_slice %396 {offsets = [0, 242], sizes = [2, 14], strides = [1, 1]} : vector<2x256xf32> to vector<2x14xf32>
      %398 = vector.extract_strided_slice %396 {offsets = [0, 0], sizes = [2, 242], strides = [1, 1]} : vector<2x256xf32> to vector<2x242xf32>
      %399 = tpu.concatenate %397, %398 in 1 : vector<2x14xf32>, vector<2x242xf32> -> vector<2x256xf32>
      %c19_76 = arith.constant 19 : index
      %c0_77 = arith.constant 0 : index
      %c0_78 = arith.constant 0 : index
      %400 = vector.load %arg3[%c19_76, %c0_77, %c0_78] : memref<49x1x256xf32, #tpu.memory_space<vmem>>, vector<1x1x256xf32>
      %401 = vector.shape_cast %400 : vector<1x1x256xf32> to vector<1x256xf32>
      %402 = vector.broadcast %401 : vector<1x256xf32> to vector<2x256xf32>
      %403 = arith.mulf %399, %402 : vector<2x256xf32>
      %404 = arith.addf %352, %403 : vector<2x256xf32>
      %405 = vector.broadcast %63 : f32 to vector<2x256xf32>
      %406 = arith.mulf %405, %41 : vector<2x256xf32>
      %407 = vector.broadcast %112 : f32 to vector<2x256xf32>
      %408 = arith.mulf %407, %42 : vector<2x256xf32>
      %409 = arith.addf %406, %408 : vector<2x256xf32>
      %410 = vector.extract_strided_slice %409 {offsets = [0, 243], sizes = [2, 13], strides = [1, 1]} : vector<2x256xf32> to vector<2x13xf32>
      %411 = vector.extract_strided_slice %409 {offsets = [0, 0], sizes = [2, 243], strides = [1, 1]} : vector<2x256xf32> to vector<2x243xf32>
      %412 = tpu.concatenate %410, %411 in 1 : vector<2x13xf32>, vector<2x243xf32> -> vector<2x256xf32>
      %c20_79 = arith.constant 20 : index
      %c0_80 = arith.constant 0 : index
      %c0_81 = arith.constant 0 : index
      %413 = vector.load %arg3[%c20_79, %c0_80, %c0_81] : memref<49x1x256xf32, #tpu.memory_space<vmem>>, vector<1x1x256xf32>
      %414 = vector.shape_cast %413 : vector<1x1x256xf32> to vector<1x256xf32>
      %415 = vector.broadcast %414 : vector<1x256xf32> to vector<2x256xf32>
      %416 = arith.mulf %412, %415 : vector<2x256xf32>
      %417 = arith.addf %365, %416 : vector<2x256xf32>
      %418 = vector.broadcast %64 : f32 to vector<2x256xf32>
      %419 = arith.mulf %418, %41 : vector<2x256xf32>
      %420 = vector.broadcast %113 : f32 to vector<2x256xf32>
      %421 = arith.mulf %420, %42 : vector<2x256xf32>
      %422 = arith.addf %419, %421 : vector<2x256xf32>
      %423 = vector.extract_strided_slice %422 {offsets = [0, 253], sizes = [2, 3], strides = [1, 1]} : vector<2x256xf32> to vector<2x3xf32>
      %424 = vector.extract_strided_slice %422 {offsets = [0, 0], sizes = [2, 253], strides = [1, 1]} : vector<2x256xf32> to vector<2x253xf32>
      %425 = tpu.concatenate %423, %424 in 1 : vector<2x3xf32>, vector<2x253xf32> -> vector<2x256xf32>
      %c21_82 = arith.constant 21 : index
      %c0_83 = arith.constant 0 : index
      %c0_84 = arith.constant 0 : index
      %426 = vector.load %arg3[%c21_82, %c0_83, %c0_84] : memref<49x1x256xf32, #tpu.memory_space<vmem>>, vector<1x1x256xf32>
      %427 = vector.shape_cast %426 : vector<1x1x256xf32> to vector<1x256xf32>
      %428 = vector.broadcast %427 : vector<1x256xf32> to vector<2x256xf32>
      %429 = arith.mulf %425, %428 : vector<2x256xf32>
      %430 = arith.addf %378, %429 : vector<2x256xf32>
      %431 = vector.broadcast %65 : f32 to vector<2x256xf32>
      %432 = arith.mulf %431, %41 : vector<2x256xf32>
      %433 = vector.broadcast %114 : f32 to vector<2x256xf32>
      %434 = arith.mulf %433, %42 : vector<2x256xf32>
      %435 = arith.addf %432, %434 : vector<2x256xf32>
      %436 = vector.extract_strided_slice %435 {offsets = [0, 254], sizes = [2, 2], strides = [1, 1]} : vector<2x256xf32> to vector<2x2xf32>
      %437 = vector.extract_strided_slice %435 {offsets = [0, 0], sizes = [2, 254], strides = [1, 1]} : vector<2x256xf32> to vector<2x254xf32>
      %438 = tpu.concatenate %436, %437 in 1 : vector<2x2xf32>, vector<2x254xf32> -> vector<2x256xf32>
      %c22_85 = arith.constant 22 : index
      %c0_86 = arith.constant 0 : index
      %c0_87 = arith.constant 0 : index
      %439 = vector.load %arg3[%c22_85, %c0_86, %c0_87] : memref<49x1x256xf32, #tpu.memory_space<vmem>>, vector<1x1x256xf32>
      %440 = vector.shape_cast %439 : vector<1x1x256xf32> to vector<1x256xf32>
      %441 = vector.broadcast %440 : vector<1x256xf32> to vector<2x256xf32>
      %442 = arith.mulf %438, %441 : vector<2x256xf32>
      %443 = arith.addf %391, %442 : vector<2x256xf32>
      %444 = vector.broadcast %66 : f32 to vector<2x256xf32>
      %445 = arith.mulf %444, %41 : vector<2x256xf32>
      %446 = vector.broadcast %115 : f32 to vector<2x256xf32>
      %447 = arith.mulf %446, %42 : vector<2x256xf32>
      %448 = arith.addf %445, %447 : vector<2x256xf32>
      %449 = vector.extract_strided_slice %448 {offsets = [0, 255], sizes = [2, 1], strides = [1, 1]} : vector<2x256xf32> to vector<2x1xf32>
      %450 = vector.extract_strided_slice %448 {offsets = [0, 0], sizes = [2, 255], strides = [1, 1]} : vector<2x256xf32> to vector<2x255xf32>
      %451 = tpu.concatenate %449, %450 in 1 : vector<2x1xf32>, vector<2x255xf32> -> vector<2x256xf32>
      %c23_88 = arith.constant 23 : index
      %c0_89 = arith.constant 0 : index
      %c0_90 = arith.constant 0 : index
      %452 = vector.load %arg3[%c23_88, %c0_89, %c0_90] : memref<49x1x256xf32, #tpu.memory_space<vmem>>, vector<1x1x256xf32>
      %453 = vector.shape_cast %452 : vector<1x1x256xf32> to vector<1x256xf32>
      %454 = vector.broadcast %453 : vector<1x256xf32> to vector<2x256xf32>
      %455 = arith.mulf %451, %454 : vector<2x256xf32>
      %456 = arith.addf %404, %455 : vector<2x256xf32>
      %457 = vector.broadcast %67 : f32 to vector<2x256xf32>
      %458 = arith.mulf %457, %41 : vector<2x256xf32>
      %459 = vector.broadcast %116 : f32 to vector<2x256xf32>
      %460 = arith.mulf %459, %42 : vector<2x256xf32>
      %461 = arith.addf %458, %460 : vector<2x256xf32>
      %c24_91 = arith.constant 24 : index
      %c0_92 = arith.constant 0 : index
      %c0_93 = arith.constant 0 : index
      %462 = vector.load %arg3[%c24_91, %c0_92, %c0_93] : memref<49x1x256xf32, #tpu.memory_space<vmem>>, vector<1x1x256xf32>
      %463 = vector.shape_cast %462 : vector<1x1x256xf32> to vector<1x256xf32>
      %464 = vector.broadcast %463 : vector<1x256xf32> to vector<2x256xf32>
      %465 = arith.mulf %461, %464 : vector<2x256xf32>
      %466 = arith.addf %417, %465 : vector<2x256xf32>
      %467 = vector.broadcast %68 : f32 to vector<2x256xf32>
      %468 = arith.mulf %467, %41 : vector<2x256xf32>
      %469 = vector.broadcast %117 : f32 to vector<2x256xf32>
      %470 = arith.mulf %469, %42 : vector<2x256xf32>
      %471 = arith.addf %468, %470 : vector<2x256xf32>
      %472 = vector.extract_strided_slice %471 {offsets = [0, 1], sizes = [2, 255], strides = [1, 1]} : vector<2x256xf32> to vector<2x255xf32>
      %473 = vector.extract_strided_slice %471 {offsets = [0, 0], sizes = [2, 1], strides = [1, 1]} : vector<2x256xf32> to vector<2x1xf32>
      %474 = tpu.concatenate %472, %473 in 1 : vector<2x255xf32>, vector<2x1xf32> -> vector<2x256xf32>
      %c25_94 = arith.constant 25 : index
      %c0_95 = arith.constant 0 : index
      %c0_96 = arith.constant 0 : index
      %475 = vector.load %arg3[%c25_94, %c0_95, %c0_96] : memref<49x1x256xf32, #tpu.memory_space<vmem>>, vector<1x1x256xf32>
      %476 = vector.shape_cast %475 : vector<1x1x256xf32> to vector<1x256xf32>
      %477 = vector.broadcast %476 : vector<1x256xf32> to vector<2x256xf32>
      %478 = arith.mulf %474, %477 : vector<2x256xf32>
      %479 = arith.addf %430, %478 : vector<2x256xf32>
      %480 = vector.broadcast %69 : f32 to vector<2x256xf32>
      %481 = arith.mulf %480, %41 : vector<2x256xf32>
      %482 = vector.broadcast %118 : f32 to vector<2x256xf32>
      %483 = arith.mulf %482, %42 : vector<2x256xf32>
      %484 = arith.addf %481, %483 : vector<2x256xf32>
      %485 = vector.extract_strided_slice %484 {offsets = [0, 2], sizes = [2, 254], strides = [1, 1]} : vector<2x256xf32> to vector<2x254xf32>
      %486 = vector.extract_strided_slice %484 {offsets = [0, 0], sizes = [2, 2], strides = [1, 1]} : vector<2x256xf32> to vector<2x2xf32>
      %487 = tpu.concatenate %485, %486 in 1 : vector<2x254xf32>, vector<2x2xf32> -> vector<2x256xf32>
      %c26_97 = arith.constant 26 : index
      %c0_98 = arith.constant 0 : index
      %c0_99 = arith.constant 0 : index
      %488 = vector.load %arg3[%c26_97, %c0_98, %c0_99] : memref<49x1x256xf32, #tpu.memory_space<vmem>>, vector<1x1x256xf32>
      %489 = vector.shape_cast %488 : vector<1x1x256xf32> to vector<1x256xf32>
      %490 = vector.broadcast %489 : vector<1x256xf32> to vector<2x256xf32>
      %491 = arith.mulf %487, %490 : vector<2x256xf32>
      %492 = arith.addf %443, %491 : vector<2x256xf32>
      %493 = vector.broadcast %70 : f32 to vector<2x256xf32>
      %494 = arith.mulf %493, %41 : vector<2x256xf32>
      %495 = vector.broadcast %119 : f32 to vector<2x256xf32>
      %496 = arith.mulf %495, %42 : vector<2x256xf32>
      %497 = arith.addf %494, %496 : vector<2x256xf32>
      %498 = vector.extract_strided_slice %497 {offsets = [0, 3], sizes = [2, 253], strides = [1, 1]} : vector<2x256xf32> to vector<2x253xf32>
      %499 = vector.extract_strided_slice %497 {offsets = [0, 0], sizes = [2, 3], strides = [1, 1]} : vector<2x256xf32> to vector<2x3xf32>
      %500 = tpu.concatenate %498, %499 in 1 : vector<2x253xf32>, vector<2x3xf32> -> vector<2x256xf32>
      %c27_100 = arith.constant 27 : index
      %c0_101 = arith.constant 0 : index
      %c0_102 = arith.constant 0 : index
      %501 = vector.load %arg3[%c27_100, %c0_101, %c0_102] : memref<49x1x256xf32, #tpu.memory_space<vmem>>, vector<1x1x256xf32>
      %502 = vector.shape_cast %501 : vector<1x1x256xf32> to vector<1x256xf32>
      %503 = vector.broadcast %502 : vector<1x256xf32> to vector<2x256xf32>
      %504 = arith.mulf %500, %503 : vector<2x256xf32>
      %505 = arith.addf %456, %504 : vector<2x256xf32>
      %506 = vector.broadcast %71 : f32 to vector<2x256xf32>
      %507 = arith.mulf %506, %41 : vector<2x256xf32>
      %508 = vector.broadcast %120 : f32 to vector<2x256xf32>
      %509 = arith.mulf %508, %42 : vector<2x256xf32>
      %510 = arith.addf %507, %509 : vector<2x256xf32>
      %511 = vector.extract_strided_slice %510 {offsets = [0, 13], sizes = [2, 243], strides = [1, 1]} : vector<2x256xf32> to vector<2x243xf32>
      %512 = vector.extract_strided_slice %510 {offsets = [0, 0], sizes = [2, 13], strides = [1, 1]} : vector<2x256xf32> to vector<2x13xf32>
      %513 = tpu.concatenate %511, %512 in 1 : vector<2x243xf32>, vector<2x13xf32> -> vector<2x256xf32>
      %c28_103 = arith.constant 28 : index
      %c0_104 = arith.constant 0 : index
      %c0_105 = arith.constant 0 : index
      %514 = vector.load %arg3[%c28_103, %c0_104, %c0_105] : memref<49x1x256xf32, #tpu.memory_space<vmem>>, vector<1x1x256xf32>
      %515 = vector.shape_cast %514 : vector<1x1x256xf32> to vector<1x256xf32>
      %516 = vector.broadcast %515 : vector<1x256xf32> to vector<2x256xf32>
      %517 = arith.mulf %513, %516 : vector<2x256xf32>
      %518 = arith.addf %466, %517 : vector<2x256xf32>
      %519 = vector.broadcast %72 : f32 to vector<2x256xf32>
      %520 = arith.mulf %519, %41 : vector<2x256xf32>
      %521 = vector.broadcast %121 : f32 to vector<2x256xf32>
      %522 = arith.mulf %521, %42 : vector<2x256xf32>
      %523 = arith.addf %520, %522 : vector<2x256xf32>
      %524 = vector.extract_strided_slice %523 {offsets = [0, 14], sizes = [2, 242], strides = [1, 1]} : vector<2x256xf32> to vector<2x242xf32>
      %525 = vector.extract_strided_slice %523 {offsets = [0, 0], sizes = [2, 14], strides = [1, 1]} : vector<2x256xf32> to vector<2x14xf32>
      %526 = tpu.concatenate %524, %525 in 1 : vector<2x242xf32>, vector<2x14xf32> -> vector<2x256xf32>
      %c29_106 = arith.constant 29 : index
      %c0_107 = arith.constant 0 : index
      %c0_108 = arith.constant 0 : index
      %527 = vector.load %arg3[%c29_106, %c0_107, %c0_108] : memref<49x1x256xf32, #tpu.memory_space<vmem>>, vector<1x1x256xf32>
      %528 = vector.shape_cast %527 : vector<1x1x256xf32> to vector<1x256xf32>
      %529 = vector.broadcast %528 : vector<1x256xf32> to vector<2x256xf32>
      %530 = arith.mulf %526, %529 : vector<2x256xf32>
      %531 = arith.addf %479, %530 : vector<2x256xf32>
      %532 = vector.broadcast %73 : f32 to vector<2x256xf32>
      %533 = arith.mulf %532, %41 : vector<2x256xf32>
      %534 = vector.broadcast %122 : f32 to vector<2x256xf32>
      %535 = arith.mulf %534, %42 : vector<2x256xf32>
      %536 = arith.addf %533, %535 : vector<2x256xf32>
      %537 = vector.extract_strided_slice %536 {offsets = [0, 15], sizes = [2, 241], strides = [1, 1]} : vector<2x256xf32> to vector<2x241xf32>
      %538 = vector.extract_strided_slice %536 {offsets = [0, 0], sizes = [2, 15], strides = [1, 1]} : vector<2x256xf32> to vector<2x15xf32>
      %539 = tpu.concatenate %537, %538 in 1 : vector<2x241xf32>, vector<2x15xf32> -> vector<2x256xf32>
      %c30_109 = arith.constant 30 : index
      %c0_110 = arith.constant 0 : index
      %c0_111 = arith.constant 0 : index
      %540 = vector.load %arg3[%c30_109, %c0_110, %c0_111] : memref<49x1x256xf32, #tpu.memory_space<vmem>>, vector<1x1x256xf32>
      %541 = vector.shape_cast %540 : vector<1x1x256xf32> to vector<1x256xf32>
      %542 = vector.broadcast %541 : vector<1x256xf32> to vector<2x256xf32>
      %543 = arith.mulf %539, %542 : vector<2x256xf32>
      %544 = arith.addf %492, %543 : vector<2x256xf32>
      %545 = vector.broadcast %74 : f32 to vector<2x256xf32>
      %546 = arith.mulf %545, %41 : vector<2x256xf32>
      %547 = vector.broadcast %123 : f32 to vector<2x256xf32>
      %548 = arith.mulf %547, %42 : vector<2x256xf32>
      %549 = arith.addf %546, %548 : vector<2x256xf32>
      %550 = vector.extract_strided_slice %549 {offsets = [0, 16], sizes = [2, 240], strides = [1, 1]} : vector<2x256xf32> to vector<2x240xf32>
      %551 = vector.extract_strided_slice %549 {offsets = [0, 0], sizes = [2, 16], strides = [1, 1]} : vector<2x256xf32> to vector<2x16xf32>
      %552 = tpu.concatenate %550, %551 in 1 : vector<2x240xf32>, vector<2x16xf32> -> vector<2x256xf32>
      %c31_112 = arith.constant 31 : index
      %c0_113 = arith.constant 0 : index
      %c0_114 = arith.constant 0 : index
      %553 = vector.load %arg3[%c31_112, %c0_113, %c0_114] : memref<49x1x256xf32, #tpu.memory_space<vmem>>, vector<1x1x256xf32>
      %554 = vector.shape_cast %553 : vector<1x1x256xf32> to vector<1x256xf32>
      %555 = vector.broadcast %554 : vector<1x256xf32> to vector<2x256xf32>
      %556 = arith.mulf %552, %555 : vector<2x256xf32>
      %557 = arith.addf %505, %556 : vector<2x256xf32>
      %558 = vector.broadcast %75 : f32 to vector<2x256xf32>
      %559 = arith.mulf %558, %41 : vector<2x256xf32>
      %560 = vector.broadcast %124 : f32 to vector<2x256xf32>
      %561 = arith.mulf %560, %42 : vector<2x256xf32>
      %562 = arith.addf %559, %561 : vector<2x256xf32>
      %563 = vector.extract_strided_slice %562 {offsets = [0, 17], sizes = [2, 239], strides = [1, 1]} : vector<2x256xf32> to vector<2x239xf32>
      %564 = vector.extract_strided_slice %562 {offsets = [0, 0], sizes = [2, 17], strides = [1, 1]} : vector<2x256xf32> to vector<2x17xf32>
      %565 = tpu.concatenate %563, %564 in 1 : vector<2x239xf32>, vector<2x17xf32> -> vector<2x256xf32>
      %c32_115 = arith.constant 32 : index
      %c0_116 = arith.constant 0 : index
      %c0_117 = arith.constant 0 : index
      %566 = vector.load %arg3[%c32_115, %c0_116, %c0_117] : memref<49x1x256xf32, #tpu.memory_space<vmem>>, vector<1x1x256xf32>
      %567 = vector.shape_cast %566 : vector<1x1x256xf32> to vector<1x256xf32>
      %568 = vector.broadcast %567 : vector<1x256xf32> to vector<2x256xf32>
      %569 = arith.mulf %565, %568 : vector<2x256xf32>
      %570 = arith.addf %518, %569 : vector<2x256xf32>
      %571 = vector.broadcast %76 : f32 to vector<2x256xf32>
      %572 = arith.mulf %571, %41 : vector<2x256xf32>
      %573 = vector.broadcast %125 : f32 to vector<2x256xf32>
      %574 = arith.mulf %573, %42 : vector<2x256xf32>
      %575 = arith.addf %572, %574 : vector<2x256xf32>
      %576 = vector.extract_strided_slice %575 {offsets = [0, 18], sizes = [2, 238], strides = [1, 1]} : vector<2x256xf32> to vector<2x238xf32>
      %577 = vector.extract_strided_slice %575 {offsets = [0, 0], sizes = [2, 18], strides = [1, 1]} : vector<2x256xf32> to vector<2x18xf32>
      %578 = tpu.concatenate %576, %577 in 1 : vector<2x238xf32>, vector<2x18xf32> -> vector<2x256xf32>
      %c33_118 = arith.constant 33 : index
      %c0_119 = arith.constant 0 : index
      %c0_120 = arith.constant 0 : index
      %579 = vector.load %arg3[%c33_118, %c0_119, %c0_120] : memref<49x1x256xf32, #tpu.memory_space<vmem>>, vector<1x1x256xf32>
      %580 = vector.shape_cast %579 : vector<1x1x256xf32> to vector<1x256xf32>
      %581 = vector.broadcast %580 : vector<1x256xf32> to vector<2x256xf32>
      %582 = arith.mulf %578, %581 : vector<2x256xf32>
      %583 = arith.addf %531, %582 : vector<2x256xf32>
      %584 = vector.broadcast %77 : f32 to vector<2x256xf32>
      %585 = arith.mulf %584, %41 : vector<2x256xf32>
      %586 = vector.broadcast %126 : f32 to vector<2x256xf32>
      %587 = arith.mulf %586, %42 : vector<2x256xf32>
      %588 = arith.addf %585, %587 : vector<2x256xf32>
      %589 = vector.extract_strided_slice %588 {offsets = [0, 19], sizes = [2, 237], strides = [1, 1]} : vector<2x256xf32> to vector<2x237xf32>
      %590 = vector.extract_strided_slice %588 {offsets = [0, 0], sizes = [2, 19], strides = [1, 1]} : vector<2x256xf32> to vector<2x19xf32>
      %591 = tpu.concatenate %589, %590 in 1 : vector<2x237xf32>, vector<2x19xf32> -> vector<2x256xf32>
      %c34_121 = arith.constant 34 : index
      %c0_122 = arith.constant 0 : index
      %c0_123 = arith.constant 0 : index
      %592 = vector.load %arg3[%c34_121, %c0_122, %c0_123] : memref<49x1x256xf32, #tpu.memory_space<vmem>>, vector<1x1x256xf32>
      %593 = vector.shape_cast %592 : vector<1x1x256xf32> to vector<1x256xf32>
      %594 = vector.broadcast %593 : vector<1x256xf32> to vector<2x256xf32>
      %595 = arith.mulf %591, %594 : vector<2x256xf32>
      %596 = arith.addf %544, %595 : vector<2x256xf32>
      %597 = vector.broadcast %78 : f32 to vector<2x256xf32>
      %598 = arith.mulf %597, %41 : vector<2x256xf32>
      %599 = vector.broadcast %127 : f32 to vector<2x256xf32>
      %600 = arith.mulf %599, %42 : vector<2x256xf32>
      %601 = arith.addf %598, %600 : vector<2x256xf32>
      %602 = vector.extract_strided_slice %601 {offsets = [0, 29], sizes = [2, 227], strides = [1, 1]} : vector<2x256xf32> to vector<2x227xf32>
      %603 = vector.extract_strided_slice %601 {offsets = [0, 0], sizes = [2, 29], strides = [1, 1]} : vector<2x256xf32> to vector<2x29xf32>
      %604 = tpu.concatenate %602, %603 in 1 : vector<2x227xf32>, vector<2x29xf32> -> vector<2x256xf32>
      %c35_124 = arith.constant 35 : index
      %c0_125 = arith.constant 0 : index
      %c0_126 = arith.constant 0 : index
      %605 = vector.load %arg3[%c35_124, %c0_125, %c0_126] : memref<49x1x256xf32, #tpu.memory_space<vmem>>, vector<1x1x256xf32>
      %606 = vector.shape_cast %605 : vector<1x1x256xf32> to vector<1x256xf32>
      %607 = vector.broadcast %606 : vector<1x256xf32> to vector<2x256xf32>
      %608 = arith.mulf %604, %607 : vector<2x256xf32>
      %609 = arith.addf %557, %608 : vector<2x256xf32>
      %610 = vector.broadcast %79 : f32 to vector<2x256xf32>
      %611 = arith.mulf %610, %41 : vector<2x256xf32>
      %612 = vector.broadcast %128 : f32 to vector<2x256xf32>
      %613 = arith.mulf %612, %42 : vector<2x256xf32>
      %614 = arith.addf %611, %613 : vector<2x256xf32>
      %615 = vector.extract_strided_slice %614 {offsets = [0, 30], sizes = [2, 226], strides = [1, 1]} : vector<2x256xf32> to vector<2x226xf32>
      %616 = vector.extract_strided_slice %614 {offsets = [0, 0], sizes = [2, 30], strides = [1, 1]} : vector<2x256xf32> to vector<2x30xf32>
      %617 = tpu.concatenate %615, %616 in 1 : vector<2x226xf32>, vector<2x30xf32> -> vector<2x256xf32>
      %c36_127 = arith.constant 36 : index
      %c0_128 = arith.constant 0 : index
      %c0_129 = arith.constant 0 : index
      %618 = vector.load %arg3[%c36_127, %c0_128, %c0_129] : memref<49x1x256xf32, #tpu.memory_space<vmem>>, vector<1x1x256xf32>
      %619 = vector.shape_cast %618 : vector<1x1x256xf32> to vector<1x256xf32>
      %620 = vector.broadcast %619 : vector<1x256xf32> to vector<2x256xf32>
      %621 = arith.mulf %617, %620 : vector<2x256xf32>
      %622 = arith.addf %570, %621 : vector<2x256xf32>
      %623 = vector.broadcast %80 : f32 to vector<2x256xf32>
      %624 = arith.mulf %623, %41 : vector<2x256xf32>
      %625 = vector.broadcast %129 : f32 to vector<2x256xf32>
      %626 = arith.mulf %625, %42 : vector<2x256xf32>
      %627 = arith.addf %624, %626 : vector<2x256xf32>
      %628 = vector.extract_strided_slice %627 {offsets = [0, 31], sizes = [2, 225], strides = [1, 1]} : vector<2x256xf32> to vector<2x225xf32>
      %629 = vector.extract_strided_slice %627 {offsets = [0, 0], sizes = [2, 31], strides = [1, 1]} : vector<2x256xf32> to vector<2x31xf32>
      %630 = tpu.concatenate %628, %629 in 1 : vector<2x225xf32>, vector<2x31xf32> -> vector<2x256xf32>
      %c37_130 = arith.constant 37 : index
      %c0_131 = arith.constant 0 : index
      %c0_132 = arith.constant 0 : index
      %631 = vector.load %arg3[%c37_130, %c0_131, %c0_132] : memref<49x1x256xf32, #tpu.memory_space<vmem>>, vector<1x1x256xf32>
      %632 = vector.shape_cast %631 : vector<1x1x256xf32> to vector<1x256xf32>
      %633 = vector.broadcast %632 : vector<1x256xf32> to vector<2x256xf32>
      %634 = arith.mulf %630, %633 : vector<2x256xf32>
      %635 = arith.addf %583, %634 : vector<2x256xf32>
      %636 = vector.broadcast %81 : f32 to vector<2x256xf32>
      %637 = arith.mulf %636, %41 : vector<2x256xf32>
      %638 = vector.broadcast %130 : f32 to vector<2x256xf32>
      %639 = arith.mulf %638, %42 : vector<2x256xf32>
      %640 = arith.addf %637, %639 : vector<2x256xf32>
      %641 = vector.extract_strided_slice %640 {offsets = [0, 32], sizes = [2, 224], strides = [1, 1]} : vector<2x256xf32> to vector<2x224xf32>
      %642 = vector.extract_strided_slice %640 {offsets = [0, 0], sizes = [2, 32], strides = [1, 1]} : vector<2x256xf32> to vector<2x32xf32>
      %643 = tpu.concatenate %641, %642 in 1 : vector<2x224xf32>, vector<2x32xf32> -> vector<2x256xf32>
      %c38_133 = arith.constant 38 : index
      %c0_134 = arith.constant 0 : index
      %c0_135 = arith.constant 0 : index
      %644 = vector.load %arg3[%c38_133, %c0_134, %c0_135] : memref<49x1x256xf32, #tpu.memory_space<vmem>>, vector<1x1x256xf32>
      %645 = vector.shape_cast %644 : vector<1x1x256xf32> to vector<1x256xf32>
      %646 = vector.broadcast %645 : vector<1x256xf32> to vector<2x256xf32>
      %647 = arith.mulf %643, %646 : vector<2x256xf32>
      %648 = arith.addf %596, %647 : vector<2x256xf32>
      %649 = vector.broadcast %82 : f32 to vector<2x256xf32>
      %650 = arith.mulf %649, %41 : vector<2x256xf32>
      %651 = vector.broadcast %131 : f32 to vector<2x256xf32>
      %652 = arith.mulf %651, %42 : vector<2x256xf32>
      %653 = arith.addf %650, %652 : vector<2x256xf32>
      %654 = vector.extract_strided_slice %653 {offsets = [0, 33], sizes = [2, 223], strides = [1, 1]} : vector<2x256xf32> to vector<2x223xf32>
      %655 = vector.extract_strided_slice %653 {offsets = [0, 0], sizes = [2, 33], strides = [1, 1]} : vector<2x256xf32> to vector<2x33xf32>
      %656 = tpu.concatenate %654, %655 in 1 : vector<2x223xf32>, vector<2x33xf32> -> vector<2x256xf32>
      %c39_136 = arith.constant 39 : index
      %c0_137 = arith.constant 0 : index
      %c0_138 = arith.constant 0 : index
      %657 = vector.load %arg3[%c39_136, %c0_137, %c0_138] : memref<49x1x256xf32, #tpu.memory_space<vmem>>, vector<1x1x256xf32>
      %658 = vector.shape_cast %657 : vector<1x1x256xf32> to vector<1x256xf32>
      %659 = vector.broadcast %658 : vector<1x256xf32> to vector<2x256xf32>
      %660 = arith.mulf %656, %659 : vector<2x256xf32>
      %661 = arith.addf %609, %660 : vector<2x256xf32>
      %662 = vector.broadcast %83 : f32 to vector<2x256xf32>
      %663 = arith.mulf %662, %41 : vector<2x256xf32>
      %664 = vector.broadcast %132 : f32 to vector<2x256xf32>
      %665 = arith.mulf %664, %42 : vector<2x256xf32>
      %666 = arith.addf %663, %665 : vector<2x256xf32>
      %667 = vector.extract_strided_slice %666 {offsets = [0, 34], sizes = [2, 222], strides = [1, 1]} : vector<2x256xf32> to vector<2x222xf32>
      %668 = vector.extract_strided_slice %666 {offsets = [0, 0], sizes = [2, 34], strides = [1, 1]} : vector<2x256xf32> to vector<2x34xf32>
      %669 = tpu.concatenate %667, %668 in 1 : vector<2x222xf32>, vector<2x34xf32> -> vector<2x256xf32>
      %c40_139 = arith.constant 40 : index
      %c0_140 = arith.constant 0 : index
      %c0_141 = arith.constant 0 : index
      %670 = vector.load %arg3[%c40_139, %c0_140, %c0_141] : memref<49x1x256xf32, #tpu.memory_space<vmem>>, vector<1x1x256xf32>
      %671 = vector.shape_cast %670 : vector<1x1x256xf32> to vector<1x256xf32>
      %672 = vector.broadcast %671 : vector<1x256xf32> to vector<2x256xf32>
      %673 = arith.mulf %669, %672 : vector<2x256xf32>
      %674 = arith.addf %622, %673 : vector<2x256xf32>
      %675 = vector.broadcast %84 : f32 to vector<2x256xf32>
      %676 = arith.mulf %675, %41 : vector<2x256xf32>
      %677 = vector.broadcast %133 : f32 to vector<2x256xf32>
      %678 = arith.mulf %677, %42 : vector<2x256xf32>
      %679 = arith.addf %676, %678 : vector<2x256xf32>
      %680 = vector.extract_strided_slice %679 {offsets = [0, 35], sizes = [2, 221], strides = [1, 1]} : vector<2x256xf32> to vector<2x221xf32>
      %681 = vector.extract_strided_slice %679 {offsets = [0, 0], sizes = [2, 35], strides = [1, 1]} : vector<2x256xf32> to vector<2x35xf32>
      %682 = tpu.concatenate %680, %681 in 1 : vector<2x221xf32>, vector<2x35xf32> -> vector<2x256xf32>
      %c41_142 = arith.constant 41 : index
      %c0_143 = arith.constant 0 : index
      %c0_144 = arith.constant 0 : index
      %683 = vector.load %arg3[%c41_142, %c0_143, %c0_144] : memref<49x1x256xf32, #tpu.memory_space<vmem>>, vector<1x1x256xf32>
      %684 = vector.shape_cast %683 : vector<1x1x256xf32> to vector<1x256xf32>
      %685 = vector.broadcast %684 : vector<1x256xf32> to vector<2x256xf32>
      %686 = arith.mulf %682, %685 : vector<2x256xf32>
      %687 = arith.addf %635, %686 : vector<2x256xf32>
      %688 = vector.broadcast %85 : f32 to vector<2x256xf32>
      %689 = arith.mulf %688, %41 : vector<2x256xf32>
      %690 = vector.broadcast %134 : f32 to vector<2x256xf32>
      %691 = arith.mulf %690, %42 : vector<2x256xf32>
      %692 = arith.addf %689, %691 : vector<2x256xf32>
      %693 = vector.extract_strided_slice %692 {offsets = [0, 45], sizes = [2, 211], strides = [1, 1]} : vector<2x256xf32> to vector<2x211xf32>
      %694 = vector.extract_strided_slice %692 {offsets = [0, 0], sizes = [2, 45], strides = [1, 1]} : vector<2x256xf32> to vector<2x45xf32>
      %695 = tpu.concatenate %693, %694 in 1 : vector<2x211xf32>, vector<2x45xf32> -> vector<2x256xf32>
      %c42_145 = arith.constant 42 : index
      %c0_146 = arith.constant 0 : index
      %c0_147 = arith.constant 0 : index
      %696 = vector.load %arg3[%c42_145, %c0_146, %c0_147] : memref<49x1x256xf32, #tpu.memory_space<vmem>>, vector<1x1x256xf32>
      %697 = vector.shape_cast %696 : vector<1x1x256xf32> to vector<1x256xf32>
      %698 = vector.broadcast %697 : vector<1x256xf32> to vector<2x256xf32>
      %699 = arith.mulf %695, %698 : vector<2x256xf32>
      %700 = arith.addf %648, %699 : vector<2x256xf32>
      %701 = vector.broadcast %86 : f32 to vector<2x256xf32>
      %702 = arith.mulf %701, %41 : vector<2x256xf32>
      %703 = vector.broadcast %135 : f32 to vector<2x256xf32>
      %704 = arith.mulf %703, %42 : vector<2x256xf32>
      %705 = arith.addf %702, %704 : vector<2x256xf32>
      %706 = vector.extract_strided_slice %705 {offsets = [0, 46], sizes = [2, 210], strides = [1, 1]} : vector<2x256xf32> to vector<2x210xf32>
      %707 = vector.extract_strided_slice %705 {offsets = [0, 0], sizes = [2, 46], strides = [1, 1]} : vector<2x256xf32> to vector<2x46xf32>
      %708 = tpu.concatenate %706, %707 in 1 : vector<2x210xf32>, vector<2x46xf32> -> vector<2x256xf32>
      %c43_148 = arith.constant 43 : index
      %c0_149 = arith.constant 0 : index
      %c0_150 = arith.constant 0 : index
      %709 = vector.load %arg3[%c43_148, %c0_149, %c0_150] : memref<49x1x256xf32, #tpu.memory_space<vmem>>, vector<1x1x256xf32>
      %710 = vector.shape_cast %709 : vector<1x1x256xf32> to vector<1x256xf32>
      %711 = vector.broadcast %710 : vector<1x256xf32> to vector<2x256xf32>
      %712 = arith.mulf %708, %711 : vector<2x256xf32>
      %713 = arith.addf %661, %712 : vector<2x256xf32>
      %714 = vector.broadcast %87 : f32 to vector<2x256xf32>
      %715 = arith.mulf %714, %41 : vector<2x256xf32>
      %716 = vector.broadcast %136 : f32 to vector<2x256xf32>
      %717 = arith.mulf %716, %42 : vector<2x256xf32>
      %718 = arith.addf %715, %717 : vector<2x256xf32>
      %719 = vector.extract_strided_slice %718 {offsets = [0, 47], sizes = [2, 209], strides = [1, 1]} : vector<2x256xf32> to vector<2x209xf32>
      %720 = vector.extract_strided_slice %718 {offsets = [0, 0], sizes = [2, 47], strides = [1, 1]} : vector<2x256xf32> to vector<2x47xf32>
      %721 = tpu.concatenate %719, %720 in 1 : vector<2x209xf32>, vector<2x47xf32> -> vector<2x256xf32>
      %c44_151 = arith.constant 44 : index
      %c0_152 = arith.constant 0 : index
      %c0_153 = arith.constant 0 : index
      %722 = vector.load %arg3[%c44_151, %c0_152, %c0_153] : memref<49x1x256xf32, #tpu.memory_space<vmem>>, vector<1x1x256xf32>
      %723 = vector.shape_cast %722 : vector<1x1x256xf32> to vector<1x256xf32>
      %724 = vector.broadcast %723 : vector<1x256xf32> to vector<2x256xf32>
      %725 = arith.mulf %721, %724 : vector<2x256xf32>
      %726 = arith.addf %674, %725 : vector<2x256xf32>
      %727 = vector.broadcast %88 : f32 to vector<2x256xf32>
      %728 = arith.mulf %727, %41 : vector<2x256xf32>
      %729 = vector.broadcast %137 : f32 to vector<2x256xf32>
      %730 = arith.mulf %729, %42 : vector<2x256xf32>
      %731 = arith.addf %728, %730 : vector<2x256xf32>
      %732 = vector.extract_strided_slice %731 {offsets = [0, 48], sizes = [2, 208], strides = [1, 1]} : vector<2x256xf32> to vector<2x208xf32>
      %733 = vector.extract_strided_slice %731 {offsets = [0, 0], sizes = [2, 48], strides = [1, 1]} : vector<2x256xf32> to vector<2x48xf32>
      %734 = tpu.concatenate %732, %733 in 1 : vector<2x208xf32>, vector<2x48xf32> -> vector<2x256xf32>
      %c45_154 = arith.constant 45 : index
      %c0_155 = arith.constant 0 : index
      %c0_156 = arith.constant 0 : index
      %735 = vector.load %arg3[%c45_154, %c0_155, %c0_156] : memref<49x1x256xf32, #tpu.memory_space<vmem>>, vector<1x1x256xf32>
      %736 = vector.shape_cast %735 : vector<1x1x256xf32> to vector<1x256xf32>
      %737 = vector.broadcast %736 : vector<1x256xf32> to vector<2x256xf32>
      %738 = arith.mulf %734, %737 : vector<2x256xf32>
      %739 = arith.addf %687, %738 : vector<2x256xf32>
      %740 = vector.broadcast %89 : f32 to vector<2x256xf32>
      %741 = arith.mulf %740, %41 : vector<2x256xf32>
      %742 = vector.broadcast %138 : f32 to vector<2x256xf32>
      %743 = arith.mulf %742, %42 : vector<2x256xf32>
      %744 = arith.addf %741, %743 : vector<2x256xf32>
      %745 = vector.extract_strided_slice %744 {offsets = [0, 49], sizes = [2, 207], strides = [1, 1]} : vector<2x256xf32> to vector<2x207xf32>
      %746 = vector.extract_strided_slice %744 {offsets = [0, 0], sizes = [2, 49], strides = [1, 1]} : vector<2x256xf32> to vector<2x49xf32>
      %747 = tpu.concatenate %745, %746 in 1 : vector<2x207xf32>, vector<2x49xf32> -> vector<2x256xf32>
      %c46_157 = arith.constant 46 : index
      %c0_158 = arith.constant 0 : index
      %c0_159 = arith.constant 0 : index
      %748 = vector.load %arg3[%c46_157, %c0_158, %c0_159] : memref<49x1x256xf32, #tpu.memory_space<vmem>>, vector<1x1x256xf32>
      %749 = vector.shape_cast %748 : vector<1x1x256xf32> to vector<1x256xf32>
      %750 = vector.broadcast %749 : vector<1x256xf32> to vector<2x256xf32>
      %751 = arith.mulf %747, %750 : vector<2x256xf32>
      %752 = arith.addf %700, %751 : vector<2x256xf32>
      %753 = vector.broadcast %90 : f32 to vector<2x256xf32>
      %754 = arith.mulf %753, %41 : vector<2x256xf32>
      %755 = vector.broadcast %139 : f32 to vector<2x256xf32>
      %756 = arith.mulf %755, %42 : vector<2x256xf32>
      %757 = arith.addf %754, %756 : vector<2x256xf32>
      %758 = vector.extract_strided_slice %757 {offsets = [0, 50], sizes = [2, 206], strides = [1, 1]} : vector<2x256xf32> to vector<2x206xf32>
      %759 = vector.extract_strided_slice %757 {offsets = [0, 0], sizes = [2, 50], strides = [1, 1]} : vector<2x256xf32> to vector<2x50xf32>
      %760 = tpu.concatenate %758, %759 in 1 : vector<2x206xf32>, vector<2x50xf32> -> vector<2x256xf32>
      %c47_160 = arith.constant 47 : index
      %c0_161 = arith.constant 0 : index
      %c0_162 = arith.constant 0 : index
      %761 = vector.load %arg3[%c47_160, %c0_161, %c0_162] : memref<49x1x256xf32, #tpu.memory_space<vmem>>, vector<1x1x256xf32>
      %762 = vector.shape_cast %761 : vector<1x1x256xf32> to vector<1x256xf32>
      %763 = vector.broadcast %762 : vector<1x256xf32> to vector<2x256xf32>
      %764 = arith.mulf %760, %763 : vector<2x256xf32>
      %765 = arith.addf %713, %764 : vector<2x256xf32>
      %766 = vector.broadcast %91 : f32 to vector<2x256xf32>
      %767 = arith.mulf %766, %41 : vector<2x256xf32>
      %768 = vector.broadcast %140 : f32 to vector<2x256xf32>
      %769 = arith.mulf %768, %42 : vector<2x256xf32>
      %770 = arith.addf %767, %769 : vector<2x256xf32>
      %771 = vector.extract_strided_slice %770 {offsets = [0, 51], sizes = [2, 205], strides = [1, 1]} : vector<2x256xf32> to vector<2x205xf32>
      %772 = vector.extract_strided_slice %770 {offsets = [0, 0], sizes = [2, 51], strides = [1, 1]} : vector<2x256xf32> to vector<2x51xf32>
      %773 = tpu.concatenate %771, %772 in 1 : vector<2x205xf32>, vector<2x51xf32> -> vector<2x256xf32>
      %c48_163 = arith.constant 48 : index
      %c0_164 = arith.constant 0 : index
      %c0_165 = arith.constant 0 : index
      %774 = vector.load %arg3[%c48_163, %c0_164, %c0_165] : memref<49x1x256xf32, #tpu.memory_space<vmem>>, vector<1x1x256xf32>
      %775 = vector.shape_cast %774 : vector<1x1x256xf32> to vector<1x256xf32>
      %776 = vector.broadcast %775 : vector<1x256xf32> to vector<2x256xf32>
      %777 = arith.mulf %773, %776 : vector<2x256xf32>
      %778 = arith.addf %726, %777 : vector<2x256xf32>
      %779 = arith.addf %778, %739 : vector<2x256xf32>
      %780 = arith.addf %752, %765 : vector<2x256xf32>
      %781 = arith.addf %779, %780 : vector<2x256xf32>
      %782 = arith.negf %781 : vector<2x256xf32>
      %783 = math.exp %782 : vector<2x256xf32>
      %cst_166 = arith.constant 1.000000e+00 : f32
      %784 = vector.broadcast %cst_166 : f32 to vector<2x256xf32>
      %785 = arith.addf %784, %783 : vector<2x256xf32>
      %786 = arith.divf %784, %785 : vector<2x256xf32>
      %c0_167 = arith.constant 0 : index
      %c0_168 = arith.constant 0 : index
      %787 = vector.load %arg5[%c0_167, %c0_168] : memref<2x256xf32, #tpu.memory_space<vmem>>, vector<2x256xf32>
      tpu.vector_store %arg5[%c0_167, %c0_168], %786 {strides = array<i32>} : memref<2x256xf32, #tpu.memory_space<vmem>>, vector<2x256xf32>,
    } else {
    }
    return
  }
  func.func @transform_0(%arg0: i32, %arg1: i32) -> i32 {
    %c0_i32 = arith.constant 0 : i32
    %c0_i32_0 = arith.constant 0 : i32
    return %c0_i32 : i32
  }
  func.func @transform_1(%arg0: i32, %arg1: i32) -> (i32, i32, i32) {
    %c0_i32 = arith.constant 0 : i32
    %c0_i32_0 = arith.constant 0 : i32
    %c0_i32_1 = arith.constant 0 : i32
    %c0_i32_2 = arith.constant 0 : i32
    return %c0_i32, %c0_i32_0, %c0_i32_1 : i32, i32, i32
  }
  func.func @transform_2(%arg0: i32, %arg1: i32) -> (i32, i32, i32) {
    %c0_i32 = arith.constant 0 : i32
    %c0_i32_0 = arith.constant 0 : i32
    return %arg0, %arg1, %c0_i32 : i32, i32, i32
  }
  func.func @transform_3(%arg0: i32, %arg1: i32) -> (i32, i32) {
    %c0_i32 = arith.constant 0 : i32
    %c0_i32_0 = arith.constant 0 : i32
    return %arg0, %c0_i32 : i32, i32
  }
}

</mosaic_0001>

<llo_original>
// kernel: tpu_custom_call.1
$region0: #{tpu_custom_call.1}
  #allocation0 [shape = 'u32[]', space=smem, size = 0x4, offset = 0x4, fixed_abs, tag = 'smem constant byte address 0x4 - core index']
  #allocation1 [shape = 'u32[144,128]{1,0:T(1,128)}', space=vmem, size = 0x12000, scoped, tag = 'internal scratch']
  #allocation2 [shape = 'f32[2,256]{1,0:T(2,128)}', space=vmem, size = 0x800, scoped, tag = 'scratch operand']
  #allocation3 [shape = 'f32[2,256]{1,0:T(2,128)}', space=vmem, size = 0x800, scoped, tag = 'scratch operand']
  %s0 = inlined_call_operand.hbm [shape: f32[98], index: 0, kind: input, shape index: {}]
  %s1 = inlined_call_operand.hbm [shape: f32[49,1,256], index: 1, kind: input, shape index: {}]
  %s2 = inlined_call_operand.hbm [shape: f32[2,4,256], index: 2, kind: input, shape index: {}]
  %s3 = inlined_call_operand.hbm [shape: f32[2,256], index: 3, kind: output, shape index: {}]
  %s4 = sld [smem:[#allocation0]]
  $region46: #{tpu_custom_call.1} parent=0
    _
  %s6 = ssub.s32 1, %s4
  %s7 = scalar_select 0, %s6, %s4
  $region1: #{tpu_custom_call.1} parent=0
    #allocation4 [shape = 'u8[512]{0}', space=smem, size = 0x200, scoped, tag = 'input window, operand 0, single buffered']
    #allocation5 [shape = 's32[1]{0}', space=sflag, size = 0x4, scoped, tag = 'scoped memory for tpu_custom_call.1']
    #allocation6 [shape = 's32[1]{0}', space=sflag, size = 0x4, scoped, tag = 'scoped memory for tpu_custom_call.1']
    #allocation7 [shape = 's32[1]{0}', space=sflag, size = 0x4, scoped, tag = 'scoped memory for tpu_custom_call.1']
    #allocation8 [shape = 'u8[50176]{0}', space=vmem, size = 0xc400, scoped, tag = 'input window, operand 1, single buffered']
    #allocation9 [shape = 'u8[8192]{0}', space=vmem, size = 0x2000, scoped, tag = 'input window, operand 2, single buffered']
    #allocation10 [shape = 's32[1]{0}', space=sflag, size = 0x4, scoped, tag = 'scoped memory for tpu_custom_call.1']
    #allocation11 [shape = 'u8[2048]{0}', space=vmem, size = 0x800, scoped, tag = 'output window, operand 0, single buffered']
    %8 = vsyncpa [#allocation7], 0
    %9 = vsyncpa [#allocation5], 0
    %10 = vsyncpa [#allocation10], 0
    %11 = vsyncpa [#allocation6], 0
    // Predicated region
    $region2: #{tpu_custom_call.1} parent=1 // pred_check
      _
    $region3: #{tpu_custom_call.1} parent=1 // pred_check_branch
      %13 = sbr.rel (0) target = $region5
    $region4: #{tpu_custom_call.1} parent=1 // pred_region
      %s15 = ssub.s32 16, 16
      %16 = vsyncadd [#allocation7], %s15
      %19 = dma.hbm_to_smem %s0, 16, [#allocation4], [#allocation7]
    $region5: #{tpu_custom_call.1} parent=1 // pred_fallthru
      _
    // Predicated region
    $region6: #{tpu_custom_call.1} parent=1 // pred_check
      _
    $region7: #{tpu_custom_call.1} parent=1 // pred_check_branch
      %21 = sbr.rel (0) target = $region9
    $region8: #{tpu_custom_call.1} parent=1 // pred_region
      %s23 = ssub.s32 1568, 1568
      %24 = vsyncadd [#allocation5], %s23
      %s25 = sshll.u32 [#allocation8], 4
      %s26 = int_to_ptr.vmem [resolvable:$true] %s25
      %31 = dma.hbm_to_vmem [thread:$0]  %s1, 1568, %s26, [#allocation5], 32, 32, 2
    $region9: #{tpu_custom_call.1} parent=1 // pred_fallthru
      _
    // Predicated region
    $region10: #{tpu_custom_call.1} parent=1 // pred_check
      _
    $region11: #{tpu_custom_call.1} parent=1 // pred_check_branch
      %33 = sbr.rel (0) target = $region13
    $region12: #{tpu_custom_call.1} parent=1 // pred_region
      %s35 = ssub.s32 256, 256
      %36 = vsyncadd [#allocation10], %s35
      %s37 = sshll.u32 [#allocation9], 4
      %s38 = int_to_ptr.vmem [resolvable:$true] %s37
      %43 = dma.hbm_to_vmem [thread:$0]  %s2, 256, %s38, [#allocation10], 128, 128, 8
    $region13: #{tpu_custom_call.1} parent=1 // pred_fallthru
      _
    // Predicated region
    $region14: #{tpu_custom_call.1} parent=1 // pred_check
      _
    $region15: #{tpu_custom_call.1} parent=1 // pred_check_branch
      %45 = sbr.rel (0) target = $region17
    $region16: #{tpu_custom_call.1} parent=1 // pred_region
      %46 = dma.done [#allocation7], 16
    $region17: #{tpu_custom_call.1} parent=1 // pred_fallthru
      _
    // Predicated region
    $region18: #{tpu_custom_call.1} parent=1 // pred_check
      _
    $region19: #{tpu_custom_call.1} parent=1 // pred_check_branch
      %48 = sbr.rel (0) target = $region21
    $region20: #{tpu_custom_call.1} parent=1 // pred_region
      %49 = dma.done [#allocation5], 1568
    $region21: #{tpu_custom_call.1} parent=1 // pred_fallthru
      _
    // Predicated region
    $region22: #{tpu_custom_call.1} parent=1 // pred_check
      _
    $region23: #{tpu_custom_call.1} parent=1 // pred_check_branch
      %51 = sbr.rel (0) target = $region25
    $region24: #{tpu_custom_call.1} parent=1 // pred_region
      %52 = dma.done [#allocation10], 256
    $region25: #{tpu_custom_call.1} parent=1 // pred_fallthru
      _
    %53 = sfence
    %v54 = vld [vmem:[#allocation9] sm:$0xff]
    %v56 = vrot.slane %v54, 6
    %v57 = vrot.slane %v56, 4
    %v59 = vadd.f32 %v54, %v57
    %v61 = vrot.slane %v59, 5
    %v62 = vrot.slane %v61, 4
    %v64 = vadd.f32 %v59, %v62
    %v65 = vmax.f32 %v54, %v57
    %v67 = vrot.slane %v65, 5
    %v68 = vrot.slane %v67, 4
    %v70 = vmax.f32 %v65, %v68
    %s71 = scalar_lea.vmem [#allocation9], 8
    %v72 = vld [vmem:[%s71] sm:$0xff]
    %v74 = vrot.slane %v72, 6
    %v75 = vrot.slane %v74, 4
    %v77 = vadd.f32 %v72, %v75
    %v79 = vrot.slane %v77, 5
    %v80 = vrot.slane %v79, 4
    %v82 = vadd.f32 %v77, %v80
    %v83 = vmax.f32 %v72, %v75
    %v85 = vrot.slane %v83, 5
    %v86 = vrot.slane %v85, 4
    %v88 = vmax.f32 %v83, %v86
    %v90 = vlaneseq
    %v91 = vshrl.u32 %v90, 7
    %v92 = vsub.s32 0, %v91
    %v93 = vrot.slane %v64, %v92
    %v94 = vlaneseq
    %v95 = vshrl.u32 %v94, 7
    %v96 = vsub.s32 4, %v95
    %v97 = vrot.slane %v64, %v96
    %v101 = vlaneseq
    %v102 = vshrl.u32 %v101, 7
    %v103 = vsub.s32 0, %v102
    %v104 = vrot.slane %v82, %v103
    %v105 = vlaneseq
    %v106 = vshrl.u32 %v105, 7
    %v107 = vsub.s32 4, %v106
    %v108 = vrot.slane %v82, %v107
    %vm111 = vcmask 1040384
    %v112 = vsel %vm111, %v93, %v104
    %v113 = vsel %vm111, %v97, %v108
    %v115 = vlaneseq
    %v116 = vshrl.u32 %v115, 7
    %v117 = vsub.s32 0, %v116
    %v118 = vrot.slane %v70, %v117
    %v119 = vlaneseq
    %v120 = vshrl.u32 %v119, 7
    %v121 = vsub.s32 4, %v120
    %v122 = vrot.slane %v70, %v121
    %v126 = vlaneseq
    %v127 = vshrl.u32 %v126, 7
    %v128 = vsub.s32 0, %v127
    %v129 = vrot.slane %v88, %v128
    %v130 = vlaneseq
    %v131 = vshrl.u32 %v130, 7
    %v132 = vsub.s32 4, %v131
    %v133 = vrot.slane %v88, %v132
    %v136 = vsel %vm111, %v118, %v129
    %v137 = vsel %vm111, %v122, %v133
    %p138 = scmp.eq.s32.totalorder 0, 0
    // Predicated region
    $region26: #{tpu_custom_call.1} parent=1 // pred_check
      %p139 = pneg %p138
    $region27: #{tpu_custom_call.1} parent=1 // pred_check_branch
      %141 = sbr.rel (%p139) target = $region29
    $region28: #{tpu_custom_call.1} parent=1 // pred_region
      %v144 = vcombine.low %v112, %v113
      %v146 = vunpack.c.l.s4 1983009808
      %v147 = vunpack.c.0.s8 %v146
      %v148 = vlaneseq
      %v149 = vshrl.u32 %v148, 7
      %v150 = vsub.s32 %v147, %v149
      %v151 = vrot.slane %v144, %v150
      %153 = vst [vmem:[#allocation2] sm:$0xf] %v151
      %v156 = vcombine.low %v136, %v137
      %v158 = vunpack.c.l.s4 1983009808
      %v159 = vunpack.c.0.s8 %v158
      %v160 = vlaneseq
      %v161 = vshrl.u32 %v160, 7
      %v162 = vsub.s32 %v159, %v161
      %v163 = vrot.slane %v156, %v162
      %165 = vst [vmem:[#allocation3] sm:$0xf] %v163
    $region29: #{tpu_custom_call.1} parent=1 // pred_fallthru
      _
    %p166 = scmp.gt.s32.totalorder 0, 0
    // Predicated region
    $region30: #{tpu_custom_call.1} parent=1 // pred_check
      %p167 = pneg %p166
    $region31: #{tpu_custom_call.1} parent=1 // pred_check_branch
      %169 = sbr.rel (%p167) target = $region33
    $region32: #{tpu_custom_call.1} parent=1 // pred_region
      %v170 = vld [vmem:[#allocation2] sm:$0xf]
      %v173 = vcombine.low %v112, %v113
      %v175 = vunpack.c.l.s4 1983009808
      %v176 = vunpack.c.0.s8 %v175
      %v177 = vlaneseq
      %v178 = vshrl.u32 %v177, 7
      %v179 = vsub.s32 %v176, %v178
      %v180 = vrot.slane %v173, %v179
      %v182 = vadd.f32 %v170, %v180
      %183 = vst [vmem:[#allocation2] sm:$0xf] %v182
      %v184 = vld [vmem:[#allocation3] sm:$0xf]
      %v187 = vcombine.low %v136, %v137
      %v189 = vunpack.c.l.s4 1983009808
      %v190 = vunpack.c.0.s8 %v189
      %v191 = vlaneseq
      %v192 = vshrl.u32 %v191, 7
      %v193 = vsub.s32 %v190, %v192
      %v194 = vrot.slane %v187, %v193
      %v196 = vmax.f32 %v184, %v194
      %197 = vst [vmem:[#allocation3] sm:$0xf] %v196
    $region33: #{tpu_custom_call.1} parent=1 // pred_fallthru
      _
    // Predicated region
    $region34: #{tpu_custom_call.1} parent=1 // pred_check
      %p198 = pneg %p138
    $region35: #{tpu_custom_call.1} parent=1 // pred_check_branch
      %200 = sbr.rel (%p198) target = $region37
    $region36: #{tpu_custom_call.1} parent=1 // pred_region
      %v201 = vld [vmem:[#allocation2] sm:$0xf]
      %v202 = vmul.f32 %v201, 0.25
      %v203 = vld [vmem:[#allocation3] sm:$0xf]
      %s204 = sld [smem:[#allocation4]]
      %s205 = sld [smem:[#allocation4 + $0x1]]
      %s206 = sld [smem:[#allocation4 + $0x2]]
      %s207 = sld [smem:[#allocation4 + $0x3]]
      %s208 = sld [smem:[#allocation4 + $0x4]]
      %s209 = sld [smem:[#allocation4 + $0x5]]
      %s210 = sld [smem:[#allocation4 + $0x6]]
      %s211 = sld [smem:[#allocation4 + $0x7]]
      %s212 = sld [smem:[#allocation4 + $0x8]]
      %s213 = sld [smem:[#allocation4 + $0x9]]
      %s214 = sld [smem:[#allocation4 + $0xa]]
      %s215 = sld [smem:[#allocation4 + $0xb]]
      %s216 = sld [smem:[#allocation4 + $0xc]]
      %s217 = sld [smem:[#allocation4 + $0xd]]
      %s218 = sld [smem:[#allocation4 + $0xe]]
      %s219 = sld [smem:[#allocation4 + $0xf]]
      %s220 = sld [smem:[#allocation4 + $0x10]]
      %s221 = sld [smem:[#allocation4 + $0x11]]
      %s222 = sld [smem:[#allocation4 + $0x12]]
      %s223 = sld [smem:[#allocation4 + $0x13]]
      %s224 = sld [smem:[#allocation4 + $0x14]]
      %s225 = sld [smem:[#allocation4 + $0x15]]
      %s226 = sld [smem:[#allocation4 + $0x16]]
      %s227 = sld [smem:[#allocation4 + $0x17]]
      %s228 = sld [smem:[#allocation4 + $0x18]]
      %s229 = sld [smem:[#allocation4 + $0x19]]
      %s230 = sld [smem:[#allocation4 + $0x1a]]
      %s231 = sld [smem:[#allocation4 + $0x1b]]
      %s232 = sld [smem:[#allocation4 + $0x1c]]
      %s233 = sld [smem:[#allocation4 + $0x1d]]
      %s234 = sld [smem:[#allocation4 + $0x1e]]
      %s235 = sld [smem:[#allocation4 + $0x1f]]
      %s236 = sld [smem:[#allocation4 + $0x20]]
      %s237 = sld [smem:[#allocation4 + $0x21]]
      %s238 = sld [smem:[#allocation4 + $0x22]]
      %s239 = sld [smem:[#allocation4 + $0x23]]
      %s240 = sld [smem:[#allocation4 + $0x24]]
      %s241 = sld [smem:[#allocation4 + $0x25]]
      %s242 = sld [smem:[#allocation4 + $0x26]]
      %s243 = sld [smem:[#allocation4 + $0x27]]
      %s244 = sld [smem:[#allocation4 + $0x28]]
      %s245 = sld [smem:[#allocation4 + $0x29]]
      %s246 = sld [smem:[#allocation4 + $0x2a]]
      %s247 = sld [smem:[#allocation4 + $0x2b]]
      %s248 = sld [smem:[#allocation4 + $0x2c]]
      %s249 = sld [smem:[#allocation4 + $0x2d]]
      %s250 = sld [smem:[#allocation4 + $0x2e]]
      %s251 = sld [smem:[#allocation4 + $0x2f]]
      %s252 = sld [smem:[#allocation4 + $0x30]]
      %s253 = sld [smem:[#allocation4 + $0x31]]
      %s254 = sld [smem:[#allocation4 + $0x32]]
      %s255 = sld [smem:[#allocation4 + $0x33]]
      %s256 = sld [smem:[#allocation4 + $0x34]]
      %s257 = sld [smem:[#allocation4 + $0x35]]
      %s258 = sld [smem:[#allocation4 + $0x36]]
      %s259 = sld [smem:[#allocation4 + $0x37]]
      %s260 = sld [smem:[#allocation4 + $0x38]]
      %s261 = sld [smem:[#allocation4 + $0x39]]
      %s262 = sld [smem:[#allocation4 + $0x3a]]
      %s263 = sld [smem:[#allocation4 + $0x3b]]
      %s264 = sld [smem:[#allocation4 + $0x3c]]
      %s265 = sld [smem:[#allocation4 + $0x3d]]
      %s266 = sld [smem:[#allocation4 + $0x3e]]
      %s267 = sld [smem:[#allocation4 + $0x3f]]
      %s268 = sld [smem:[#allocation4 + $0x40]]
      %s269 = sld [smem:[#allocation4 + $0x41]]
      %s270 = sld [smem:[#allocation4 + $0x42]]
      %s271 = sld [smem:[#allocation4 + $0x43]]
      %s272 = sld [smem:[#allocation4 + $0x44]]
      %s273 = sld [smem:[#allocation4 + $0x45]]
      %s274 = sld [smem:[#allocation4 + $0x46]]
      %s275 = sld [smem:[#allocation4 + $0x47]]
      %s276 = sld [smem:[#allocation4 + $0x48]]
      %s277 = sld [smem:[#allocation4 + $0x49]]
      %s278 = sld [smem:[#allocation4 + $0x4a]]
      %s279 = sld [smem:[#allocation4 + $0x4b]]
      %s280 = sld [smem:[#allocation4 + $0x4c]]
      %s281 = sld [smem:[#allocation4 + $0x4d]]
      %s282 = sld [smem:[#allocation4 + $0x4e]]
      %s283 = sld [smem:[#allocation4 + $0x4f]]
      %s284 = sld [smem:[#allocation4 + $0x50]]
      %s285 = sld [smem:[#allocation4 + $0x51]]
      %s286 = sld [smem:[#allocation4 + $0x52]]
      %s287 = sld [smem:[#allocation4 + $0x53]]
      %s288 = sld [smem:[#allocation4 + $0x54]]
      %s289 = sld [smem:[#allocation4 + $0x55]]
      %s290 = sld [smem:[#allocation4 + $0x56]]
      %s291 = sld [smem:[#allocation4 + $0x57]]
      %s292 = sld [smem:[#allocation4 + $0x58]]
      %s293 = sld [smem:[#allocation4 + $0x59]]
      %s294 = sld [smem:[#allocation4 + $0x5a]]
      %s295 = sld [smem:[#allocation4 + $0x5b]]
      %s296 = sld [smem:[#allocation4 + $0x5c]]
      %s297 = sld [smem:[#allocation4 + $0x5d]]
      %s298 = sld [smem:[#allocation4 + $0x5e]]
      %s299 = sld [smem:[#allocation4 + $0x5f]]
      %s300 = sld [smem:[#allocation4 + $0x60]]
      %s301 = sld [smem:[#allocation4 + $0x61]]
      %v302 = vstv %s204
      %v303 = vmul.f32 %v302, %v202
      %v304 = vstv %s253
      %v305 = vmul.f32 %v304, %v203
      %v306 = vadd.f32 %v303, %v305
      %v309 = vunpack.c.l.s4 1983009808
      %v310 = vunpack.c.0.s8 %v309
      %v311 = vlaneseq
      %v312 = vshrl.u32 %v311, 7
      %v313 = vsub.s32 %v310, %v312
      %v314 = vrot.slane %v306, %v313
      %v315 = vcombine.high %v314, %v314
      %316 = vrot.lane.b32.xlu0 %v315, 51
      %v317 = vpop.permute.xlu0 %316
      %319 = vrot.lane.b32.xlu0 %v314, 51
      %v320 = vpop.permute.xlu0 %319
      %vm321 = vcmask 416768
      %v322 = vsel %vm321, %v320, %v317
      %v325 = vsel %vm321, %v317, %v320
      %v326 = vld [vmem:[#allocation8] sm:$0x3]
      %v328 = vlaneseq
      %v329 = vshrl.u32 %v328, 7
      %v330 = vsub.s32 0, %v329
      %v331 = vrot.slane %v326, %v330
      %v332 = vlaneseq
      %v333 = vshrl.u32 %v332, 7
      %v334 = vsub.s32 1, %v333
      %v335 = vrot.slane %v326, %v334
      %v338 = vmul.f32 %v325, %v331
      %v339 = vmul.f32 %v322, %v335
      %v340 = vadd.f32 %v338, 0.0
      %v341 = vadd.f32 %v339, 0.0
      %v342 = vstv %s205
      %v343 = vmul.f32 %v342, %v202
      %v344 = vstv %s254
      %v345 = vmul.f32 %v344, %v203
      %v346 = vadd.f32 %v343, %v345
      %v349 = vunpack.c.l.s4 1983009808
      %v350 = vunpack.c.0.s8 %v349
      %v351 = vlaneseq
      %v352 = vshrl.u32 %v351, 7
      %v353 = vsub.s32 %v350, %v352
      %v354 = vrot.slane %v346, %v353
      %v355 = vcombine.high %v354, %v354
      %356 = vrot.lane.b32.xlu0 %v355, 50
      %v357 = vpop.permute.xlu0 %356
      %359 = vrot.lane.b32.xlu0 %v354, 50
      %v360 = vpop.permute.xlu0 %359
      %vm361 = vcmask 408576
      %v362 = vsel %vm361, %v360, %v357
      %v365 = vsel %vm361, %v357, %v360
      %s366 = scalar_lea.vmem [#allocation8], 2
      %v367 = vld [vmem:[%s366] sm:$0x3]
      %v369 = vlaneseq
      %v370 = vshrl.u32 %v369, 7
      %v371 = vsub.s32 0, %v370
      %v372 = vrot.slane %v367, %v371
      %v373 = vlaneseq
      %v374 = vshrl.u32 %v373, 7
      %v375 = vsub.s32 1, %v374
      %v376 = vrot.slane %v367, %v375
      %v379 = vmul.f32 %v365, %v372
      %v380 = vmul.f32 %v362, %v376
      %v381 = vadd.f32 %v379, 0.0
      %v382 = vadd.f32 %v380, 0.0
      %v383 = vstv %s206
      %v384 = vmul.f32 %v383, %v202
      %v385 = vstv %s255
      %v386 = vmul.f32 %v385, %v203
      %v387 = vadd.f32 %v384, %v386
      %v390 = vunpack.c.l.s4 1983009808
      %v391 = vunpack.c.0.s8 %v390
      %v392 = vlaneseq
      %v393 = vshrl.u32 %v392, 7
      %v394 = vsub.s32 %v391, %v393
      %v395 = vrot.slane %v387, %v394
      %v396 = vcombine.high %v395, %v395
      %397 = vrot.lane.b32.xlu0 %v396, 49
      %v398 = vpop.permute.xlu0 %397
      %400 = vrot.lane.b32.xlu0 %v395, 49
      %v401 = vpop.permute.xlu0 %400
      %vm402 = vcmask 400384
      %v403 = vsel %vm402, %v401, %v398
      %v406 = vsel %vm402, %v398, %v401
      %s407 = scalar_lea.vmem [#allocation8], 4
      %v408 = vld [vmem:[%s407] sm:$0x3]
      %v410 = vlaneseq
      %v411 = vshrl.u32 %v410, 7
      %v412 = vsub.s32 0, %v411
      %v413 = vrot.slane %v408, %v412
      %v414 = vlaneseq
      %v415 = vshrl.u32 %v414, 7
      %v416 = vsub.s32 1, %v415
      %v417 = vrot.slane %v408, %v416
      %v420 = vmul.f32 %v406, %v413
      %v421 = vmul.f32 %v403, %v417
      %v422 = vadd.f32 %v420, 0.0
      %v423 = vadd.f32 %v421, 0.0
      %v424 = vstv %s207
      %v425 = vmul.f32 %v424, %v202
      %v426 = vstv %s256
      %v427 = vmul.f32 %v426, %v203
      %v428 = vadd.f32 %v425, %v427
      %v431 = vunpack.c.l.s4 1983009808
      %v432 = vunpack.c.0.s8 %v431
      %v433 = vlaneseq
      %v434 = vshrl.u32 %v433, 7
      %v435 = vsub.s32 %v432, %v434
      %v436 = vrot.slane %v428, %v435
      %v437 = vcombine.high %v436, %v436
      %438 = vrot.lane.b32.xlu0 %v437, 48
      %v439 = vpop.permute.xlu0 %438
      %441 = vrot.lane.b32.xlu0 %v436, 48
      %v442 = vpop.permute.xlu0 %441
      %vm443 = vcmask 392192
      %v444 = vsel %vm443, %v442, %v439
      %v447 = vsel %vm443, %v439, %v442
      %s448 = scalar_lea.vmem [#allocation8], 6
      %v449 = vld [vmem:[%s448] sm:$0x3]
      %v451 = vlaneseq
      %v452 = vshrl.u32 %v451, 7
      %v453 = vsub.s32 0, %v452
      %v454 = vrot.slane %v449, %v453
      %v455 = vlaneseq
      %v456 = vshrl.u32 %v455, 7
      %v457 = vsub.s32 1, %v456
      %v458 = vrot.slane %v449, %v457
      %v461 = vmul.f32 %v447, %v454
      %v462 = vmul.f32 %v444, %v458
      %v463 = vadd.f32 %v461, 0.0
      %v464 = vadd.f32 %v462, 0.0
      %v465 = vstv %s208
      %v466 = vmul.f32 %v465, %v202
      %v467 = vstv %s257
      %v468 = vmul.f32 %v467, %v203
      %v469 = vadd.f32 %v466, %v468
      %v472 = vunpack.c.l.s4 1983009808
      %v473 = vunpack.c.0.s8 %v472
      %v474 = vlaneseq
      %v475 = vshrl.u32 %v474, 7
      %v476 = vsub.s32 %v473, %v475
      %v477 = vrot.slane %v469, %v476
      %v478 = vcombine.high %v477, %v477
      %479 = vrot.lane.b32.xlu0 %v478, 47
      %v480 = vpop.permute.xlu0 %479
      %482 = vrot.lane.b32.xlu0 %v477, 47
      %v483 = vpop.permute.xlu0 %482
      %vm484 = vcmask 384000
      %v485 = vsel %vm484, %v483, %v480
      %v488 = vsel %vm484, %v480, %v483
      %s489 = scalar_lea.vmem [#allocation8], 8
      %v490 = vld [vmem:[%s489] sm:$0x3]
      %v492 = vlaneseq
      %v493 = vshrl.u32 %v492, 7
      %v494 = vsub.s32 0, %v493
      %v495 = vrot.slane %v490, %v494
      %v496 = vlaneseq
      %v497 = vshrl.u32 %v496, 7
      %v498 = vsub.s32 1, %v497
      %v499 = vrot.slane %v490, %v498
      %v502 = vmul.f32 %v488, %v495
      %v503 = vmul.f32 %v485, %v499
      %v504 = vadd.f32 %v340, %v502
      %v505 = vadd.f32 %v341, %v503
      %v506 = vstv %s209
      %v507 = vmul.f32 %v506, %v202
      %v508 = vstv %s258
      %v509 = vmul.f32 %v508, %v203
      %v510 = vadd.f32 %v507, %v509
      %v513 = vunpack.c.l.s4 1983009808
      %v514 = vunpack.c.0.s8 %v513
      %v515 = vlaneseq
      %v516 = vshrl.u32 %v515, 7
      %v517 = vsub.s32 %v514, %v516
      %v518 = vrot.slane %v510, %v517
      %v519 = vcombine.high %v518, %v518
      %520 = vrot.lane.b32.xlu0 %v519, 46
      %v521 = vpop.permute.xlu0 %520
      %523 = vrot.lane.b32.xlu0 %v518, 46
      %v524 = vpop.permute.xlu0 %523
      %vm525 = vcmask 375808
      %v526 = vsel %vm525, %v524, %v521
      %v529 = vsel %vm525, %v521, %v524
      %s530 = scalar_lea.vmem [#allocation8], 10
      %v531 = vld [vmem:[%s530] sm:$0x3]
      %v533 = vlaneseq
      %v534 = vshrl.u32 %v533, 7
      %v535 = vsub.s32 0, %v534
      %v536 = vrot.slane %v531, %v535
      %v537 = vlaneseq
      %v538 = vshrl.u32 %v537, 7
      %v539 = vsub.s32 1, %v538
      %v540 = vrot.slane %v531, %v539
      %v543 = vmul.f32 %v529, %v536
      %v544 = vmul.f32 %v526, %v540
      %v545 = vadd.f32 %v381, %v543
      %v546 = vadd.f32 %v382, %v544
      %v547 = vstv %s210
      %v548 = vmul.f32 %v547, %v202
      %v549 = vstv %s259
      %v550 = vmul.f32 %v549, %v203
      %v551 = vadd.f32 %v548, %v550
      %v554 = vunpack.c.l.s4 1983009808
      %v555 = vunpack.c.0.s8 %v554
      %v556 = vlaneseq
      %v557 = vshrl.u32 %v556, 7
      %v558 = vsub.s32 %v555, %v557
      %v559 = vrot.slane %v551, %v558
      %v560 = vcombine.high %v559, %v559
      %561 = vrot.lane.b32.xlu0 %v560, 45
      %v562 = vpop.permute.xlu0 %561
      %564 = vrot.lane.b32.xlu0 %v559, 45
      %v565 = vpop.permute.xlu0 %564
      %vm566 = vcmask 367616
      %v567 = vsel %vm566, %v565, %v562
      %v570 = vsel %vm566, %v562, %v565
      %s571 = scalar_lea.vmem [#allocation8], 12
      %v572 = vld [vmem:[%s571] sm:$0x3]
      %v574 = vlaneseq
      %v575 = vshrl.u32 %v574, 7
      %v576 = vsub.s32 0, %v575
      %v577 = vrot.slane %v572, %v576
      %v578 = vlaneseq
      %v579 = vshrl.u32 %v578, 7
      %v580 = vsub.s32 1, %v579
      %v581 = vrot.slane %v572, %v580
      %v584 = vmul.f32 %v570, %v577
      %v585 = vmul.f32 %v567, %v581
      %v586 = vadd.f32 %v422, %v584
      %v587 = vadd.f32 %v423, %v585
      %v588 = vstv %s211
      %v589 = vmul.f32 %v588, %v202
      %v590 = vstv %s260
      %v591 = vmul.f32 %v590, %v203
      %v592 = vadd.f32 %v589, %v591
      %v595 = vunpack.c.l.s4 1983009808
      %v596 = vunpack.c.0.s8 %v595
      %v597 = vlaneseq
      %v598 = vshrl.u32 %v597, 7
      %v599 = vsub.s32 %v596, %v598
      %v600 = vrot.slane %v592, %v599
      %v601 = vcombine.high %v600, %v600
      %602 = vrot.lane.b32.xlu0 %v601, 35
      %v603 = vpop.permute.xlu0 %602
      %605 = vrot.lane.b32.xlu0 %v600, 35
      %v606 = vpop.permute.xlu0 %605
      %vm607 = vcmask 285696
      %v608 = vsel %vm607, %v606, %v603
      %v611 = vsel %vm607, %v603, %v606
      %s612 = scalar_lea.vmem [#allocation8], 14
      %v613 = vld [vmem:[%s612] sm:$0x3]
      %v615 = vlaneseq
      %v616 = vshrl.u32 %v615, 7
      %v617 = vsub.s32 0, %v616
      %v618 = vrot.slane %v613, %v617
      %v619 = vlaneseq
      %v620 = vshrl.u32 %v619, 7
      %v621 = vsub.s32 1, %v620
      %v622 = vrot.slane %v613, %v621
      %v625 = vmul.f32 %v611, %v618
      %v626 = vmul.f32 %v608, %v622
      %v627 = vadd.f32 %v463, %v625
      %v628 = vadd.f32 %v464, %v626
      %v629 = vstv %s212
      %v630 = vmul.f32 %v629, %v202
      %v631 = vstv %s261
      %v632 = vmul.f32 %v631, %v203
      %v633 = vadd.f32 %v630, %v632
      %v636 = vunpack.c.l.s4 1983009808
      %v637 = vunpack.c.0.s8 %v636
      %v638 = vlaneseq
      %v639 = vshrl.u32 %v638, 7
      %v640 = vsub.s32 %v637, %v639
      %v641 = vrot.slane %v633, %v640
      %v642 = vcombine.high %v641, %v641
      %643 = vrot.lane.b32.xlu0 %v642, 34
      %v644 = vpop.permute.xlu0 %643
      %646 = vrot.lane.b32.xlu0 %v641, 34
      %v647 = vpop.permute.xlu0 %646
      %vm648 = vcmask 277504
      %v649 = vsel %vm648, %v647, %v644
      %v652 = vsel %vm648, %v644, %v647
      %s653 = scalar_lea.vmem [#allocation8], 16
      %v654 = vld [vmem:[%s653] sm:$0x3]
      %v656 = vlaneseq
      %v657 = vshrl.u32 %v656, 7
      %v658 = vsub.s32 0, %v657
      %v659 = vrot.slane %v654, %v658
      %v660 = vlaneseq
      %v661 = vshrl.u32 %v660, 7
      %v662 = vsub.s32 1, %v661
      %v663 = vrot.slane %v654, %v662
      %v666 = vmul.f32 %v652, %v659
      %v667 = vmul.f32 %v649, %v663
      %v668 = vadd.f32 %v504, %v666
      %v669 = vadd.f32 %v505, %v667
      %v670 = vstv %s213
      %v671 = vmul.f32 %v670, %v202
      %v672 = vstv %s262
      %v673 = vmul.f32 %v672, %v203
      %v674 = vadd.f32 %v671, %v673
      %v677 = vunpack.c.l.s4 1983009808
      %v678 = vunpack.c.0.s8 %v677
      %v679 = vlaneseq
      %v680 = vshrl.u32 %v679, 7
      %v681 = vsub.s32 %v678, %v680
      %v682 = vrot.slane %v674, %v681
      %v683 = vcombine.high %v682, %v682
      %684 = vrot.lane.b32.xlu0 %v683, 33
      %v685 = vpop.permute.xlu0 %684
      %687 = vrot.lane.b32.xlu0 %v682, 33
      %v688 = vpop.permute.xlu0 %687
      %vm689 = vcmask 269312
      %v690 = vsel %vm689, %v688, %v685
      %v693 = vsel %vm689, %v685, %v688
      %s694 = scalar_lea.vmem [#allocation8], 18
      %v695 = vld [vmem:[%s694] sm:$0x3]
      %v697 = vlaneseq
      %v698 = vshrl.u32 %v697, 7
      %v699 = vsub.s32 0, %v698
      %v700 = vrot.slane %v695, %v699
      %v701 = vlaneseq
      %v702 = vshrl.u32 %v701, 7
      %v703 = vsub.s32 1, %v702
      %v704 = vrot.slane %v695, %v703
      %v707 = vmul.f32 %v693, %v700
      %v708 = vmul.f32 %v690, %v704
      %v709 = vadd.f32 %v545, %v707
      %v710 = vadd.f32 %v546, %v708
      %v711 = vstv %s214
      %v712 = vmul.f32 %v711, %v202
      %v713 = vstv %s263
      %v714 = vmul.f32 %v713, %v203
      %v715 = vadd.f32 %v712, %v714
      %v718 = vunpack.c.l.s4 1983009808
      %v719 = vunpack.c.0.s8 %v718
      %v720 = vlaneseq
      %v721 = vshrl.u32 %v720, 7
      %v722 = vsub.s32 %v719, %v721
      %v723 = vrot.slane %v715, %v722
      %v724 = vcombine.high %v723, %v723
      %725 = vrot.lane.b32.xlu0 %v724, 32
      %v726 = vpop.permute.xlu0 %725
      %728 = vrot.lane.b32.xlu0 %v723, 32
      %v729 = vpop.permute.xlu0 %728
      %vm730 = vcmask 261120
      %v731 = vsel %vm730, %v729, %v726
      %v734 = vsel %vm730, %v726, %v729
      %s735 = scalar_lea.vmem [#allocation8], 20
      %v736 = vld [vmem:[%s735] sm:$0x3]
      %v738 = vlaneseq
      %v739 = vshrl.u32 %v738, 7
      %v740 = vsub.s32 0, %v739
      %v741 = vrot.slane %v736, %v740
      %v742 = vlaneseq
      %v743 = vshrl.u32 %v742, 7
      %v744 = vsub.s32 1, %v743
      %v745 = vrot.slane %v736, %v744
      %v748 = vmul.f32 %v734, %v741
      %v749 = vmul.f32 %v731, %v745
      %v750 = vadd.f32 %v586, %v748
      %v751 = vadd.f32 %v587, %v749
      %v752 = vstv %s215
      %v753 = vmul.f32 %v752, %v202
      %v754 = vstv %s264
      %v755 = vmul.f32 %v754, %v203
      %v756 = vadd.f32 %v753, %v755
      %v759 = vunpack.c.l.s4 1983009808
      %v760 = vunpack.c.0.s8 %v759
      %v761 = vlaneseq
      %v762 = vshrl.u32 %v761, 7
      %v763 = vsub.s32 %v760, %v762
      %v764 = vrot.slane %v756, %v763
      %v765 = vcombine.high %v764, %v764
      %766 = vrot.lane.b32.xlu0 %v765, 31
      %v767 = vpop.permute.xlu0 %766
      %769 = vrot.lane.b32.xlu0 %v764, 31
      %v770 = vpop.permute.xlu0 %769
      %vm771 = vcmask 252928
      %v772 = vsel %vm771, %v770, %v767
      %v775 = vsel %vm771, %v767, %v770
      %s776 = scalar_lea.vmem [#allocation8], 22
      %v777 = vld [vmem:[%s776] sm:$0x3]
      %v779 = vlaneseq
      %v780 = vshrl.u32 %v779, 7
      %v781 = vsub.s32 0, %v780
      %v782 = vrot.slane %v777, %v781
      %v783 = vlaneseq
      %v784 = vshrl.u32 %v783, 7
      %v785 = vsub.s32 1, %v784
      %v786 = vrot.slane %v777, %v785
      %v789 = vmul.f32 %v775, %v782
      %v790 = vmul.f32 %v772, %v786
      %v791 = vadd.f32 %v627, %v789
      %v792 = vadd.f32 %v628, %v790
      %v793 = vstv %s216
      %v794 = vmul.f32 %v793, %v202
      %v795 = vstv %s265
      %v796 = vmul.f32 %v795, %v203
      %v797 = vadd.f32 %v794, %v796
      %v800 = vunpack.c.l.s4 1983009808
      %v801 = vunpack.c.0.s8 %v800
      %v802 = vlaneseq
      %v803 = vshrl.u32 %v802, 7
      %v804 = vsub.s32 %v801, %v803
      %v805 = vrot.slane %v797, %v804
      %v806 = vcombine.high %v805, %v805
      %807 = vrot.lane.b32.xlu0 %v806, 30
      %v808 = vpop.permute.xlu0 %807
      %810 = vrot.lane.b32.xlu0 %v805, 30
      %v811 = vpop.permute.xlu0 %810
      %vm812 = vcmask 244736
      %v813 = vsel %vm812, %v811, %v808
      %v816 = vsel %vm812, %v808, %v811
      %s817 = scalar_lea.vmem [#allocation8], 24
      %v818 = vld [vmem:[%s817] sm:$0x3]
      %v820 = vlaneseq
      %v821 = vshrl.u32 %v820, 7
      %v822 = vsub.s32 0, %v821
      %v823 = vrot.slane %v818, %v822
      %v824 = vlaneseq
      %v825 = vshrl.u32 %v824, 7
      %v826 = vsub.s32 1, %v825
      %v827 = vrot.slane %v818, %v826
      %v830 = vmul.f32 %v816, %v823
      %v831 = vmul.f32 %v813, %v827
      %v832 = vadd.f32 %v668, %v830
      %v833 = vadd.f32 %v669, %v831
      %v834 = vstv %s217
      %v835 = vmul.f32 %v834, %v202
      %v836 = vstv %s266
      %v837 = vmul.f32 %v836, %v203
      %v838 = vadd.f32 %v835, %v837
      %v841 = vunpack.c.l.s4 1983009808
      %v842 = vunpack.c.0.s8 %v841
      %v843 = vlaneseq
      %v844 = vshrl.u32 %v843, 7
      %v845 = vsub.s32 %v842, %v844
      %v846 = vrot.slane %v838, %v845
      %v847 = vcombine.high %v846, %v846
      %848 = vrot.lane.b32.xlu0 %v847, 29
      %v849 = vpop.permute.xlu0 %848
      %851 = vrot.lane.b32.xlu0 %v846, 29
      %v852 = vpop.permute.xlu0 %851
      %vm853 = vcmask 236544
      %v854 = vsel %vm853, %v852, %v849
      %v857 = vsel %vm853, %v849, %v852
      %s858 = scalar_lea.vmem [#allocation8], 26
      %v859 = vld [vmem:[%s858] sm:$0x3]
      %v861 = vlaneseq
      %v862 = vshrl.u32 %v861, 7
      %v863 = vsub.s32 0, %v862
      %v864 = vrot.slane %v859, %v863
      %v865 = vlaneseq
      %v866 = vshrl.u32 %v865, 7
      %v867 = vsub.s32 1, %v866
      %v868 = vrot.slane %v859, %v867
      %v871 = vmul.f32 %v857, %v864
      %v872 = vmul.f32 %v854, %v868
      %v873 = vadd.f32 %v709, %v871
      %v874 = vadd.f32 %v710, %v872
      %v875 = vstv %s218
      %v876 = vmul.f32 %v875, %v202
      %v877 = vstv %s267
      %v878 = vmul.f32 %v877, %v203
      %v879 = vadd.f32 %v876, %v878
      %v882 = vunpack.c.l.s4 1983009808
      %v883 = vunpack.c.0.s8 %v882
      %v884 = vlaneseq
      %v885 = vshrl.u32 %v884, 7
      %v886 = vsub.s32 %v883, %v885
      %v887 = vrot.slane %v879, %v886
      %v888 = vcombine.high %v887, %v887
      %889 = vrot.lane.b32.xlu0 %v888, 19
      %v890 = vpop.permute.xlu0 %889
      %892 = vrot.lane.b32.xlu0 %v887, 19
      %v893 = vpop.permute.xlu0 %892
      %vm894 = vcmask 154624
      %v895 = vsel %vm894, %v893, %v890
      %v898 = vsel %vm894, %v890, %v893
      %s899 = scalar_lea.vmem [#allocation8], 28
      %v900 = vld [vmem:[%s899] sm:$0x3]
      %v902 = vlaneseq
      %v903 = vshrl.u32 %v902, 7
      %v904 = vsub.s32 0, %v903
      %v905 = vrot.slane %v900, %v904
      %v906 = vlaneseq
      %v907 = vshrl.u32 %v906, 7
      %v908 = vsub.s32 1, %v907
      %v909 = vrot.slane %v900, %v908
      %v912 = vmul.f32 %v898, %v905
      %v913 = vmul.f32 %v895, %v909
      %v914 = vadd.f32 %v750, %v912
      %v915 = vadd.f32 %v751, %v913
      %v916 = vstv %s219
      %v917 = vmul.f32 %v916, %v202
      %v918 = vstv %s268
      %v919 = vmul.f32 %v918, %v203
      %v920 = vadd.f32 %v917, %v919
      %v923 = vunpack.c.l.s4 1983009808
      %v924 = vunpack.c.0.s8 %v923
      %v925 = vlaneseq
      %v926 = vshrl.u32 %v925, 7
      %v927 = vsub.s32 %v924, %v926
      %v928 = vrot.slane %v920, %v927
      %v929 = vcombine.high %v928, %v928
      %930 = vrot.lane.b32.xlu0 %v929, 18
      %v931 = vpop.permute.xlu0 %930
      %933 = vrot.lane.b32.xlu0 %v928, 18
      %v934 = vpop.permute.xlu0 %933
      %vm935 = vcmask 146432
      %v936 = vsel %vm935, %v934, %v931
      %v939 = vsel %vm935, %v931, %v934
      %s940 = scalar_lea.vmem [#allocation8], 30
      %v941 = vld [vmem:[%s940] sm:$0x3]
      %v943 = vlaneseq
      %v944 = vshrl.u32 %v943, 7
      %v945 = vsub.s32 0, %v944
      %v946 = vrot.slane %v941, %v945
      %v947 = vlaneseq
      %v948 = vshrl.u32 %v947, 7
      %v949 = vsub.s32 1, %v948
      %v950 = vrot.slane %v941, %v949
      %v953 = vmul.f32 %v939, %v946
      %v954 = vmul.f32 %v936, %v950
      %v955 = vadd.f32 %v791, %v953
      %v956 = vadd.f32 %v792, %v954
      %v957 = vstv %s220
      %v958 = vmul.f32 %v957, %v202
      %v959 = vstv %s269
      %v960 = vmul.f32 %v959, %v203
      %v961 = vadd.f32 %v958, %v960
      %v964 = vunpack.c.l.s4 1983009808
      %v965 = vunpack.c.0.s8 %v964
      %v966 = vlaneseq
      %v967 = vshrl.u32 %v966, 7
      %v968 = vsub.s32 %v965, %v967
      %v969 = vrot.slane %v961, %v968
      %v970 = vcombine.high %v969, %v969
      %971 = vrot.lane.b32.xlu0 %v970, 17
      %v972 = vpop.permute.xlu0 %971
      %974 = vrot.lane.b32.xlu0 %v969, 17
      %v975 = vpop.permute.xlu0 %974
      %vm976 = vcmask 138240
      %v977 = vsel %vm976, %v975, %v972
      %v980 = vsel %vm976, %v972, %v975
      %s981 = scalar_lea.vmem [#allocation8], 32
      %v982 = vld [vmem:[%s981] sm:$0x3]
      %v984 = vlaneseq
      %v985 = vshrl.u32 %v984, 7
      %v986 = vsub.s32 0, %v985
      %v987 = vrot.slane %v982, %v986
      %v988 = vlaneseq
      %v989 = vshrl.u32 %v988, 7
      %v990 = vsub.s32 1, %v989
      %v991 = vrot.slane %v982, %v990
      %v994 = vmul.f32 %v980, %v987
      %v995 = vmul.f32 %v977, %v991
      %v996 = vadd.f32 %v832, %v994
      %v997 = vadd.f32 %v833, %v995
      %v998 = vstv %s221
      %v999 = vmul.f32 %v998, %v202
      %v1000 = vstv %s270
      %v1001 = vmul.f32 %v1000, %v203
      %v1002 = vadd.f32 %v999, %v1001
      %v1005 = vunpack.c.l.s4 1983009808
      %v1006 = vunpack.c.0.s8 %v1005
      %v1007 = vlaneseq
      %v1008 = vshrl.u32 %v1007, 7
      %v1009 = vsub.s32 %v1006, %v1008
      %v1010 = vrot.slane %v1002, %v1009
      %v1011 = vcombine.high %v1010, %v1010
      %1012 = vrot.lane.b32.xlu0 %v1011, 16
      %v1013 = vpop.permute.xlu0 %1012
      %1015 = vrot.lane.b32.xlu0 %v1010, 16
      %v1016 = vpop.permute.xlu0 %1015
      %vm1017 = vcmask 130048
      %v1018 = vsel %vm1017, %v1016, %v1013
      %v1021 = vsel %vm1017, %v1013, %v1016
      %s1022 = scalar_lea.vmem [#allocation8], 34
      %v1023 = vld [vmem:[%s1022] sm:$0x3]
      %v1025 = vlaneseq
      %v1026 = vshrl.u32 %v1025, 7
      %v1027 = vsub.s32 0, %v1026
      %v1028 = vrot.slane %v1023, %v1027
      %v1029 = vlaneseq
      %v1030 = vshrl.u32 %v1029, 7
      %v1031 = vsub.s32 1, %v1030
      %v1032 = vrot.slane %v1023, %v1031
      %v1035 = vmul.f32 %v1021, %v1028
      %v1036 = vmul.f32 %v1018, %v1032
      %v1037 = vadd.f32 %v873, %v1035
      %v1038 = vadd.f32 %v874, %v1036
      %v1039 = vstv %s222
      %v1040 = vmul.f32 %v1039, %v202
      %v1041 = vstv %s271
      %v1042 = vmul.f32 %v1041, %v203
      %v1043 = vadd.f32 %v1040, %v1042
      %v1046 = vunpack.c.l.s4 1983009808
      %v1047 = vunpack.c.0.s8 %v1046
      %v1048 = vlaneseq
      %v1049 = vshrl.u32 %v1048, 7
      %v1050 = vsub.s32 %v1047, %v1049
      %v1051 = vrot.slane %v1043, %v1050
      %v1052 = vcombine.high %v1051, %v1051
      %1053 = vrot.lane.b32.xlu0 %v1052, 15
      %v1054 = vpop.permute.xlu0 %1053
      %1056 = vrot.lane.b32.xlu0 %v1051, 15
      %v1057 = vpop.permute.xlu0 %1056
      %vm1058 = vcmask 121856
      %v1059 = vsel %vm1058, %v1057, %v1054
      %v1062 = vsel %vm1058, %v1054, %v1057
      %s1063 = scalar_lea.vmem [#allocation8], 36
      %v1064 = vld [vmem:[%s1063] sm:$0x3]
      %v1066 = vlaneseq
      %v1067 = vshrl.u32 %v1066, 7
      %v1068 = vsub.s32 0, %v1067
      %v1069 = vrot.slane %v1064, %v1068
      %v1070 = vlaneseq
      %v1071 = vshrl.u32 %v1070, 7
      %v1072 = vsub.s32 1, %v1071
      %v1073 = vrot.slane %v1064, %v1072
      %v1076 = vmul.f32 %v1062, %v1069
      %v1077 = vmul.f32 %v1059, %v1073
      %v1078 = vadd.f32 %v914, %v1076
      %v1079 = vadd.f32 %v915, %v1077
      %v1080 = vstv %s223
      %v1081 = vmul.f32 %v1080, %v202
      %v1082 = vstv %s272
      %v1083 = vmul.f32 %v1082, %v203
      %v1084 = vadd.f32 %v1081, %v1083
      %v1087 = vunpack.c.l.s4 1983009808
      %v1088 = vunpack.c.0.s8 %v1087
      %v1089 = vlaneseq
      %v1090 = vshrl.u32 %v1089, 7
      %v1091 = vsub.s32 %v1088, %v1090
      %v1092 = vrot.slane %v1084, %v1091
      %v1093 = vcombine.high %v1092, %v1092
      %1094 = vrot.lane.b32.xlu0 %v1093, 14
      %v1095 = vpop.permute.xlu0 %1094
      %1097 = vrot.lane.b32.xlu0 %v1092, 14
      %v1098 = vpop.permute.xlu0 %1097
      %vm1099 = vcmask 113664
      %v1100 = vsel %vm1099, %v1098, %v1095
      %v1103 = vsel %vm1099, %v1095, %v1098
      %s1104 = scalar_lea.vmem [#allocation8], 38
      %v1105 = vld [vmem:[%s1104] sm:$0x3]
      %v1107 = vlaneseq
      %v1108 = vshrl.u32 %v1107, 7
      %v1109 = vsub.s32 0, %v1108
      %v1110 = vrot.slane %v1105, %v1109
      %v1111 = vlaneseq
      %v1112 = vshrl.u32 %v1111, 7
      %v1113 = vsub.s32 1, %v1112
      %v1114 = vrot.slane %v1105, %v1113
      %v1117 = vmul.f32 %v1103, %v1110
      %v1118 = vmul.f32 %v1100, %v1114
      %v1119 = vadd.f32 %v955, %v1117
      %v1120 = vadd.f32 %v956, %v1118
      %v1121 = vstv %s224
      %v1122 = vmul.f32 %v1121, %v202
      %v1123 = vstv %s273
      %v1124 = vmul.f32 %v1123, %v203
      %v1125 = vadd.f32 %v1122, %v1124
      %v1128 = vunpack.c.l.s4 1983009808
      %v1129 = vunpack.c.0.s8 %v1128
      %v1130 = vlaneseq
      %v1131 = vshrl.u32 %v1130, 7
      %v1132 = vsub.s32 %v1129, %v1131
      %v1133 = vrot.slane %v1125, %v1132
      %v1134 = vcombine.high %v1133, %v1133
      %1135 = vrot.lane.b32.xlu0 %v1134, 13
      %v1136 = vpop.permute.xlu0 %1135
      %1138 = vrot.lane.b32.xlu0 %v1133, 13
      %v1139 = vpop.permute.xlu0 %1138
      %vm1140 = vcmask 105472
      %v1141 = vsel %vm1140, %v1139, %v1136
      %v1144 = vsel %vm1140, %v1136, %v1139
      %s1145 = scalar_lea.vmem [#allocation8], 40
      %v1146 = vld [vmem:[%s1145] sm:$0x3]
      %v1148 = vlaneseq
      %v1149 = vshrl.u32 %v1148, 7
      %v1150 = vsub.s32 0, %v1149
      %v1151 = vrot.slane %v1146, %v1150
      %v1152 = vlaneseq
      %v1153 = vshrl.u32 %v1152, 7
      %v1154 = vsub.s32 1, %v1153
      %v1155 = vrot.slane %v1146, %v1154
      %v1158 = vmul.f32 %v1144, %v1151
      %v1159 = vmul.f32 %v1141, %v1155
      %v1160 = vadd.f32 %v996, %v1158
      %v1161 = vadd.f32 %v997, %v1159
      %v1162 = vstv %s225
      %v1163 = vmul.f32 %v1162, %v202
      %v1164 = vstv %s274
      %v1165 = vmul.f32 %v1164, %v203
      %v1166 = vadd.f32 %v1163, %v1165
      %v1169 = vunpack.c.l.s4 1983009808
      %v1170 = vunpack.c.0.s8 %v1169
      %v1171 = vlaneseq
      %v1172 = vshrl.u32 %v1171, 7
      %v1173 = vsub.s32 %v1170, %v1172
      %v1174 = vrot.slane %v1166, %v1173
      %v1175 = vcombine.high %v1174, %v1174
      %1176 = vrot.lane.b32.xlu0 %v1175, 3
      %v1177 = vpop.permute.xlu0 %1176
      %1179 = vrot.lane.b32.xlu0 %v1174, 3
      %v1180 = vpop.permute.xlu0 %1179
      %vm1181 = vcmask 23552
      %v1182 = vsel %vm1181, %v1180, %v1177
      %v1185 = vsel %vm1181, %v1177, %v1180
      %s1186 = scalar_lea.vmem [#allocation8], 42
      %v1187 = vld [vmem:[%s1186] sm:$0x3]
      %v1189 = vlaneseq
      %v1190 = vshrl.u32 %v1189, 7
      %v1191 = vsub.s32 0, %v1190
      %v1192 = vrot.slane %v1187, %v1191
      %v1193 = vlaneseq
      %v1194 = vshrl.u32 %v1193, 7
      %v1195 = vsub.s32 1, %v1194
      %v1196 = vrot.slane %v1187, %v1195
      %v1199 = vmul.f32 %v1185, %v1192
      %v1200 = vmul.f32 %v1182, %v1196
      %v1201 = vadd.f32 %v1037, %v1199
      %v1202 = vadd.f32 %v1038, %v1200
      %v1203 = vstv %s226
      %v1204 = vmul.f32 %v1203, %v202
      %v1205 = vstv %s275
      %v1206 = vmul.f32 %v1205, %v203
      %v1207 = vadd.f32 %v1204, %v1206
      %v1210 = vunpack.c.l.s4 1983009808
      %v1211 = vunpack.c.0.s8 %v1210
      %v1212 = vlaneseq
      %v1213 = vshrl.u32 %v1212, 7
      %v1214 = vsub.s32 %v1211, %v1213
      %v1215 = vrot.slane %v1207, %v1214
      %v1216 = vcombine.high %v1215, %v1215
      %1217 = vrot.lane.b32.xlu0 %v1216, 2
      %v1218 = vpop.permute.xlu0 %1217
      %1220 = vrot.lane.b32.xlu0 %v1215, 2
      %v1221 = vpop.permute.xlu0 %1220
      %vm1222 = vcmask 15360
      %v1223 = vsel %vm1222, %v1221, %v1218
      %v1226 = vsel %vm1222, %v1218, %v1221
      %s1227 = scalar_lea.vmem [#allocation8], 44
      %v1228 = vld [vmem:[%s1227] sm:$0x3]
      %v1230 = vlaneseq
      %v1231 = vshrl.u32 %v1230, 7
      %v1232 = vsub.s32 0, %v1231
      %v1233 = vrot.slane %v1228, %v1232
      %v1234 = vlaneseq
      %v1235 = vshrl.u32 %v1234, 7
      %v1236 = vsub.s32 1, %v1235
      %v1237 = vrot.slane %v1228, %v1236
      %v1240 = vmul.f32 %v1226, %v1233
      %v1241 = vmul.f32 %v1223, %v1237
      %v1242 = vadd.f32 %v1078, %v1240
      %v1243 = vadd.f32 %v1079, %v1241
      %v1244 = vstv %s227
      %v1245 = vmul.f32 %v1244, %v202
      %v1246 = vstv %s276
      %v1247 = vmul.f32 %v1246, %v203
      %v1248 = vadd.f32 %v1245, %v1247
      %v1251 = vunpack.c.l.s4 1983009808
      %v1252 = vunpack.c.0.s8 %v1251
      %v1253 = vlaneseq
      %v1254 = vshrl.u32 %v1253, 7
      %v1255 = vsub.s32 %v1252, %v1254
      %v1256 = vrot.slane %v1248, %v1255
      %v1257 = vcombine.high %v1256, %v1256
      %1258 = vrot.lane.b32.xlu0 %v1257, 1
      %v1259 = vpop.permute.xlu0 %1258
      %1261 = vrot.lane.b32.xlu0 %v1256, 1
      %v1262 = vpop.permute.xlu0 %1261
      %vm1263 = vcmask 7168
      %v1264 = vsel %vm1263, %v1262, %v1259
      %v1267 = vsel %vm1263, %v1259, %v1262
      %s1268 = scalar_lea.vmem [#allocation8], 46
      %v1269 = vld [vmem:[%s1268] sm:$0x3]
      %v1271 = vlaneseq
      %v1272 = vshrl.u32 %v1271, 7
      %v1273 = vsub.s32 0, %v1272
      %v1274 = vrot.slane %v1269, %v1273
      %v1275 = vlaneseq
      %v1276 = vshrl.u32 %v1275, 7
      %v1277 = vsub.s32 1, %v1276
      %v1278 = vrot.slane %v1269, %v1277
      %v1281 = vmul.f32 %v1267, %v1274
      %v1282 = vmul.f32 %v1264, %v1278
      %v1283 = vadd.f32 %v1119, %v1281
      %v1284 = vadd.f32 %v1120, %v1282
      %v1285 = vstv %s228
      %v1286 = vmul.f32 %v1285, %v202
      %v1287 = vstv %s277
      %v1288 = vmul.f32 %v1287, %v203
      %v1289 = vadd.f32 %v1286, %v1288
      %s1290 = scalar_lea.vmem [#allocation8], 48
      %v1291 = vld [vmem:[%s1290] sm:$0x3]
      %v1293 = vlaneseq
      %v1294 = vshrl.u32 %v1293, 7
      %v1295 = vsub.s32 0, %v1294
      %v1296 = vrot.slane %v1291, %v1295
      %v1297 = vlaneseq
      %v1298 = vshrl.u32 %v1297, 7
      %v1299 = vsub.s32 1, %v1298
      %v1300 = vrot.slane %v1291, %v1299
      %v1301 = vcombine.low %v1296, %v1300
      %v1303 = vunpack.c.l.s4 1983009808
      %v1304 = vunpack.c.0.s8 %v1303
      %v1305 = vlaneseq
      %v1306 = vshrl.u32 %v1305, 7
      %v1307 = vsub.s32 %v1304, %v1306
      %v1308 = vrot.slane %v1301, %v1307
      %v1310 = vmul.f32 %v1289, %v1308
      %v1313 = vunpack.c.l.s4 1983009808
      %v1314 = vunpack.c.0.s8 %v1313
      %v1315 = vlaneseq
      %v1316 = vshrl.u32 %v1315, 7
      %v1317 = vsub.s32 %v1314, %v1316
      %v1318 = vrot.slane %v1310, %v1317
      %v1319 = vcombine.high %v1318, %v1318
      %v1322 = vadd.f32 %v1160, %v1318
      %v1323 = vadd.f32 %v1161, %v1319
      %v1324 = vstv %s229
      %v1325 = vmul.f32 %v1324, %v202
      %v1326 = vstv %s278
      %v1327 = vmul.f32 %v1326, %v203
      %v1328 = vadd.f32 %v1325, %v1327
      %v1331 = vunpack.c.l.s4 1983009808
      %v1332 = vunpack.c.0.s8 %v1331
      %v1333 = vlaneseq
      %v1334 = vshrl.u32 %v1333, 7
      %v1335 = vsub.s32 %v1332, %v1334
      %v1336 = vrot.slane %v1328, %v1335
      %v1337 = vcombine.high %v1336, %v1336
      %1338 = vrot.lane.b32.xlu0 %v1336, 127
      %v1339 = vpop.permute.xlu0 %1338
      %1340 = vrot.lane.b32.xlu0 %v1337, 127
      %v1341 = vpop.permute.xlu0 %1340
      %vm1342 = vcmask 1039360
      %v1343 = vsel %vm1342, %v1339, %v1341
      %v1347 = vsel %vm1342, %v1341, %v1339
      %s1348 = scalar_lea.vmem [#allocation8], 50
      %v1349 = vld [vmem:[%s1348] sm:$0x3]
      %v1351 = vlaneseq
      %v1352 = vshrl.u32 %v1351, 7
      %v1353 = vsub.s32 0, %v1352
      %v1354 = vrot.slane %v1349, %v1353
      %v1355 = vlaneseq
      %v1356 = vshrl.u32 %v1355, 7
      %v1357 = vsub.s32 1, %v1356
      %v1358 = vrot.slane %v1349, %v1357
      %v1361 = vmul.f32 %v1343, %v1354
      %v1362 = vmul.f32 %v1347, %v1358
      %v1363 = vadd.f32 %v1201, %v1361
      %v1364 = vadd.f32 %v1202, %v1362
      %v1365 = vstv %s230
      %v1366 = vmul.f32 %v1365, %v202
      %v1367 = vstv %s279
      %v1368 = vmul.f32 %v1367, %v203
      %v1369 = vadd.f32 %v1366, %v1368
      %v1372 = vunpack.c.l.s4 1983009808
      %v1373 = vunpack.c.0.s8 %v1372
      %v1374 = vlaneseq
      %v1375 = vshrl.u32 %v1374, 7
      %v1376 = vsub.s32 %v1373, %v1375
      %v1377 = vrot.slane %v1369, %v1376
      %v1378 = vcombine.high %v1377, %v1377
      %1379 = vrot.lane.b32.xlu0 %v1377, 126
      %v1380 = vpop.permute.xlu0 %1379
      %1381 = vrot.lane.b32.xlu0 %v1378, 126
      %v1382 = vpop.permute.xlu0 %1381
      %vm1383 = vcmask 1031168
      %v1384 = vsel %vm1383, %v1380, %v1382
      %v1388 = vsel %vm1383, %v1382, %v1380
      %s1389 = scalar_lea.vmem [#allocation8], 52
      %v1390 = vld [vmem:[%s1389] sm:$0x3]
      %v1392 = vlaneseq
      %v1393 = vshrl.u32 %v1392, 7
      %v1394 = vsub.s32 0, %v1393
      %v1395 = vrot.slane %v1390, %v1394
      %v1396 = vlaneseq
      %v1397 = vshrl.u32 %v1396, 7
      %v1398 = vsub.s32 1, %v1397
      %v1399 = vrot.slane %v1390, %v1398
      %v1402 = vmul.f32 %v1384, %v1395
      %v1403 = vmul.f32 %v1388, %v1399
      %v1404 = vadd.f32 %v1242, %v1402
      %v1405 = vadd.f32 %v1243, %v1403
      %v1406 = vstv %s231
      %v1407 = vmul.f32 %v1406, %v202
      %v1408 = vstv %s280
      %v1409 = vmul.f32 %v1408, %v203
      %v1410 = vadd.f32 %v1407, %v1409
      %v1413 = vunpack.c.l.s4 1983009808
      %v1414 = vunpack.c.0.s8 %v1413
      %v1415 = vlaneseq
      %v1416 = vshrl.u32 %v1415, 7
      %v1417 = vsub.s32 %v1414, %v1416
      %v1418 = vrot.slane %v1410, %v1417
      %v1419 = vcombine.high %v1418, %v1418
      %1420 = vrot.lane.b32.xlu0 %v1418, 125
      %v1421 = vpop.permute.xlu0 %1420
      %1422 = vrot.lane.b32.xlu0 %v1419, 125
      %v1423 = vpop.permute.xlu0 %1422
      %vm1424 = vcmask 1022976
      %v1425 = vsel %vm1424, %v1421, %v1423
      %v1429 = vsel %vm1424, %v1423, %v1421
      %s1430 = scalar_lea.vmem [#allocation8], 54
      %v1431 = vld [vmem:[%s1430] sm:$0x3]
      %v1433 = vlaneseq
      %v1434 = vshrl.u32 %v1433, 7
      %v1435 = vsub.s32 0, %v1434
      %v1436 = vrot.slane %v1431, %v1435
      %v1437 = vlaneseq
      %v1438 = vshrl.u32 %v1437, 7
      %v1439 = vsub.s32 1, %v1438
      %v1440 = vrot.slane %v1431, %v1439
      %v1443 = vmul.f32 %v1425, %v1436
      %v1444 = vmul.f32 %v1429, %v1440
      %v1445 = vadd.f32 %v1283, %v1443
      %v1446 = vadd.f32 %v1284, %v1444
      %v1447 = vstv %s232
      %v1448 = vmul.f32 %v1447, %v202
      %v1449 = vstv %s281
      %v1450 = vmul.f32 %v1449, %v203
      %v1451 = vadd.f32 %v1448, %v1450
      %v1454 = vunpack.c.l.s4 1983009808
      %v1455 = vunpack.c.0.s8 %v1454
      %v1456 = vlaneseq
      %v1457 = vshrl.u32 %v1456, 7
      %v1458 = vsub.s32 %v1455, %v1457
      %v1459 = vrot.slane %v1451, %v1458
      %v1460 = vcombine.high %v1459, %v1459
      %1461 = vrot.lane.b32.xlu0 %v1459, 115
      %v1462 = vpop.permute.xlu0 %1461
      %1463 = vrot.lane.b32.xlu0 %v1460, 115
      %v1464 = vpop.permute.xlu0 %1463
      %vm1465 = vcmask 941056
      %v1466 = vsel %vm1465, %v1462, %v1464
      %v1470 = vsel %vm1465, %v1464, %v1462
      %s1471 = scalar_lea.vmem [#allocation8], 56
      %v1472 = vld [vmem:[%s1471] sm:$0x3]
      %v1474 = vlaneseq
      %v1475 = vshrl.u32 %v1474, 7
      %v1476 = vsub.s32 0, %v1475
      %v1477 = vrot.slane %v1472, %v1476
      %v1478 = vlaneseq
      %v1479 = vshrl.u32 %v1478, 7
      %v1480 = vsub.s32 1, %v1479
      %v1481 = vrot.slane %v1472, %v1480
      %v1484 = vmul.f32 %v1466, %v1477
      %v1485 = vmul.f32 %v1470, %v1481
      %v1486 = vadd.f32 %v1322, %v1484
      %v1487 = vadd.f32 %v1323, %v1485
      %v1488 = vstv %s233
      %v1489 = vmul.f32 %v1488, %v202
      %v1490 = vstv %s282
      %v1491 = vmul.f32 %v1490, %v203
      %v1492 = vadd.f32 %v1489, %v1491
      %v1495 = vunpack.c.l.s4 1983009808
      %v1496 = vunpack.c.0.s8 %v1495
      %v1497 = vlaneseq
      %v1498 = vshrl.u32 %v1497, 7
      %v1499 = vsub.s32 %v1496, %v1498
      %v1500 = vrot.slane %v1492, %v1499
      %v1501 = vcombine.high %v1500, %v1500
      %1502 = vrot.lane.b32.xlu0 %v1500, 114
      %v1503 = vpop.permute.xlu0 %1502
      %1504 = vrot.lane.b32.xlu0 %v1501, 114
      %v1505 = vpop.permute.xlu0 %1504
      %vm1506 = vcmask 932864
      %v1507 = vsel %vm1506, %v1503, %v1505
      %v1511 = vsel %vm1506, %v1505, %v1503
      %s1512 = scalar_lea.vmem [#allocation8], 58
      %v1513 = vld [vmem:[%s1512] sm:$0x3]
      %v1515 = vlaneseq
      %v1516 = vshrl.u32 %v1515, 7
      %v1517 = vsub.s32 0, %v1516
      %v1518 = vrot.slane %v1513, %v1517
      %v1519 = vlaneseq
      %v1520 = vshrl.u32 %v1519, 7
      %v1521 = vsub.s32 1, %v1520
      %v1522 = vrot.slane %v1513, %v1521
      %v1525 = vmul.f32 %v1507, %v1518
      %v1526 = vmul.f32 %v1511, %v1522
      %v1527 = vadd.f32 %v1363, %v1525
      %v1528 = vadd.f32 %v1364, %v1526
      %v1529 = vstv %s234
      %v1530 = vmul.f32 %v1529, %v202
      %v1531 = vstv %s283
      %v1532 = vmul.f32 %v1531, %v203
      %v1533 = vadd.f32 %v1530, %v1532
      %v1536 = vunpack.c.l.s4 1983009808
      %v1537 = vunpack.c.0.s8 %v1536
      %v1538 = vlaneseq
      %v1539 = vshrl.u32 %v1538, 7
      %v1540 = vsub.s32 %v1537, %v1539
      %v1541 = vrot.slane %v1533, %v1540
      %v1542 = vcombine.high %v1541, %v1541
      %1543 = vrot.lane.b32.xlu0 %v1541, 113
      %v1544 = vpop.permute.xlu0 %1543
      %1545 = vrot.lane.b32.xlu0 %v1542, 113
      %v1546 = vpop.permute.xlu0 %1545
      %vm1547 = vcmask 924672
      %v1548 = vsel %vm1547, %v1544, %v1546
      %v1552 = vsel %vm1547, %v1546, %v1544
      %s1553 = scalar_lea.vmem [#allocation8], 60
      %v1554 = vld [vmem:[%s1553] sm:$0x3]
      %v1556 = vlaneseq
      %v1557 = vshrl.u32 %v1556, 7
      %v1558 = vsub.s32 0, %v1557
      %v1559 = vrot.slane %v1554, %v1558
      %v1560 = vlaneseq
      %v1561 = vshrl.u32 %v1560, 7
      %v1562 = vsub.s32 1, %v1561
      %v1563 = vrot.slane %v1554, %v1562
      %v1566 = vmul.f32 %v1548, %v1559
      %v1567 = vmul.f32 %v1552, %v1563
      %v1568 = vadd.f32 %v1404, %v1566
      %v1569 = vadd.f32 %v1405, %v1567
      %v1570 = vstv %s235
      %v1571 = vmul.f32 %v1570, %v202
      %v1572 = vstv %s284
      %v1573 = vmul.f32 %v1572, %v203
      %v1574 = vadd.f32 %v1571, %v1573
      %v1577 = vunpack.c.l.s4 1983009808
      %v1578 = vunpack.c.0.s8 %v1577
      %v1579 = vlaneseq
      %v1580 = vshrl.u32 %v1579, 7
      %v1581 = vsub.s32 %v1578, %v1580
      %v1582 = vrot.slane %v1574, %v1581
      %v1583 = vcombine.high %v1582, %v1582
      %1584 = vrot.lane.b32.xlu0 %v1582, 112
      %v1585 = vpop.permute.xlu0 %1584
      %1586 = vrot.lane.b32.xlu0 %v1583, 112
      %v1587 = vpop.permute.xlu0 %1586
      %vm1588 = vcmask 916480
      %v1589 = vsel %vm1588, %v1585, %v1587
      %v1593 = vsel %vm1588, %v1587, %v1585
      %s1594 = scalar_lea.vmem [#allocation8], 62
      %v1595 = vld [vmem:[%s1594] sm:$0x3]
      %v1597 = vlaneseq
      %v1598 = vshrl.u32 %v1597, 7
      %v1599 = vsub.s32 0, %v1598
      %v1600 = vrot.slane %v1595, %v1599
      %v1601 = vlaneseq
      %v1602 = vshrl.u32 %v1601, 7
      %v1603 = vsub.s32 1, %v1602
      %v1604 = vrot.slane %v1595, %v1603
      %v1607 = vmul.f32 %v1589, %v1600
      %v1608 = vmul.f32 %v1593, %v1604
      %v1609 = vadd.f32 %v1445, %v1607
      %v1610 = vadd.f32 %v1446, %v1608
      %v1611 = vstv %s236
      %v1612 = vmul.f32 %v1611, %v202
      %v1613 = vstv %s285
      %v1614 = vmul.f32 %v1613, %v203
      %v1615 = vadd.f32 %v1612, %v1614
      %v1618 = vunpack.c.l.s4 1983009808
      %v1619 = vunpack.c.0.s8 %v1618
      %v1620 = vlaneseq
      %v1621 = vshrl.u32 %v1620, 7
      %v1622 = vsub.s32 %v1619, %v1621
      %v1623 = vrot.slane %v1615, %v1622
      %v1624 = vcombine.high %v1623, %v1623
      %1625 = vrot.lane.b32.xlu0 %v1623, 111
      %v1626 = vpop.permute.xlu0 %1625
      %1627 = vrot.lane.b32.xlu0 %v1624, 111
      %v1628 = vpop.permute.xlu0 %1627
      %vm1629 = vcmask 908288
      %v1630 = vsel %vm1629, %v1626, %v1628
      %v1634 = vsel %vm1629, %v1628, %v1626
      %s1635 = scalar_lea.vmem [#allocation8], 64
      %v1636 = vld [vmem:[%s1635] sm:$0x3]
      %v1638 = vlaneseq
      %v1639 = vshrl.u32 %v1638, 7
      %v1640 = vsub.s32 0, %v1639
      %v1641 = vrot.slane %v1636, %v1640
      %v1642 = vlaneseq
      %v1643 = vshrl.u32 %v1642, 7
      %v1644 = vsub.s32 1, %v1643
      %v1645 = vrot.slane %v1636, %v1644
      %v1648 = vmul.f32 %v1630, %v1641
      %v1649 = vmul.f32 %v1634, %v1645
      %v1650 = vadd.f32 %v1486, %v1648
      %v1651 = vadd.f32 %v1487, %v1649
      %v1652 = vstv %s237
      %v1653 = vmul.f32 %v1652, %v202
      %v1654 = vstv %s286
      %v1655 = vmul.f32 %v1654, %v203
      %v1656 = vadd.f32 %v1653, %v1655
      %v1659 = vunpack.c.l.s4 1983009808
      %v1660 = vunpack.c.0.s8 %v1659
      %v1661 = vlaneseq
      %v1662 = vshrl.u32 %v1661, 7
      %v1663 = vsub.s32 %v1660, %v1662
      %v1664 = vrot.slane %v1656, %v1663
      %v1665 = vcombine.high %v1664, %v1664
      %1666 = vrot.lane.b32.xlu0 %v1664, 110
      %v1667 = vpop.permute.xlu0 %1666
      %1668 = vrot.lane.b32.xlu0 %v1665, 110
      %v1669 = vpop.permute.xlu0 %1668
      %vm1670 = vcmask 900096
      %v1671 = vsel %vm1670, %v1667, %v1669
      %v1675 = vsel %vm1670, %v1669, %v1667
      %s1676 = scalar_lea.vmem [#allocation8], 66
      %v1677 = vld [vmem:[%s1676] sm:$0x3]
      %v1679 = vlaneseq
      %v1680 = vshrl.u32 %v1679, 7
      %v1681 = vsub.s32 0, %v1680
      %v1682 = vrot.slane %v1677, %v1681
      %v1683 = vlaneseq
      %v1684 = vshrl.u32 %v1683, 7
      %v1685 = vsub.s32 1, %v1684
      %v1686 = vrot.slane %v1677, %v1685
      %v1689 = vmul.f32 %v1671, %v1682
      %v1690 = vmul.f32 %v1675, %v1686
      %v1691 = vadd.f32 %v1527, %v1689
      %v1692 = vadd.f32 %v1528, %v1690
      %v1693 = vstv %s238
      %v1694 = vmul.f32 %v1693, %v202
      %v1695 = vstv %s287
      %v1696 = vmul.f32 %v1695, %v203
      %v1697 = vadd.f32 %v1694, %v1696
      %v1700 = vunpack.c.l.s4 1983009808
      %v1701 = vunpack.c.0.s8 %v1700
      %v1702 = vlaneseq
      %v1703 = vshrl.u32 %v1702, 7
      %v1704 = vsub.s32 %v1701, %v1703
      %v1705 = vrot.slane %v1697, %v1704
      %v1706 = vcombine.high %v1705, %v1705
      %1707 = vrot.lane.b32.xlu0 %v1705, 109
      %v1708 = vpop.permute.xlu0 %1707
      %1709 = vrot.lane.b32.xlu0 %v1706, 109
      %v1710 = vpop.permute.xlu0 %1709
      %vm1711 = vcmask 891904
      %v1712 = vsel %vm1711, %v1708, %v1710
      %v1716 = vsel %vm1711, %v1710, %v1708
      %s1717 = scalar_lea.vmem [#allocation8], 68
      %v1718 = vld [vmem:[%s1717] sm:$0x3]
      %v1720 = vlaneseq
      %v1721 = vshrl.u32 %v1720, 7
      %v1722 = vsub.s32 0, %v1721
      %v1723 = vrot.slane %v1718, %v1722
      %v1724 = vlaneseq
      %v1725 = vshrl.u32 %v1724, 7
      %v1726 = vsub.s32 1, %v1725
      %v1727 = vrot.slane %v1718, %v1726
      %v1730 = vmul.f32 %v1712, %v1723
      %v1731 = vmul.f32 %v1716, %v1727
      %v1732 = vadd.f32 %v1568, %v1730
      %v1733 = vadd.f32 %v1569, %v1731
      %v1734 = vstv %s239
      %v1735 = vmul.f32 %v1734, %v202
      %v1736 = vstv %s288
      %v1737 = vmul.f32 %v1736, %v203
      %v1738 = vadd.f32 %v1735, %v1737
      %v1741 = vunpack.c.l.s4 1983009808
      %v1742 = vunpack.c.0.s8 %v1741
      %v1743 = vlaneseq
      %v1744 = vshrl.u32 %v1743, 7
      %v1745 = vsub.s32 %v1742, %v1744
      %v1746 = vrot.slane %v1738, %v1745
      %v1747 = vcombine.high %v1746, %v1746
      %1748 = vrot.lane.b32.xlu0 %v1746, 99
      %v1749 = vpop.permute.xlu0 %1748
      %1750 = vrot.lane.b32.xlu0 %v1747, 99
      %v1751 = vpop.permute.xlu0 %1750
      %vm1752 = vcmask 809984
      %v1753 = vsel %vm1752, %v1749, %v1751
      %v1757 = vsel %vm1752, %v1751, %v1749
      %s1758 = scalar_lea.vmem [#allocation8], 70
      %v1759 = vld [vmem:[%s1758] sm:$0x3]
      %v1761 = vlaneseq
      %v1762 = vshrl.u32 %v1761, 7
      %v1763 = vsub.s32 0, %v1762
      %v1764 = vrot.slane %v1759, %v1763
      %v1765 = vlaneseq
      %v1766 = vshrl.u32 %v1765, 7
      %v1767 = vsub.s32 1, %v1766
      %v1768 = vrot.slane %v1759, %v1767
      %v1771 = vmul.f32 %v1753, %v1764
      %v1772 = vmul.f32 %v1757, %v1768
      %v1773 = vadd.f32 %v1609, %v1771
      %v1774 = vadd.f32 %v1610, %v1772
      %v1775 = vstv %s240
      %v1776 = vmul.f32 %v1775, %v202
      %v1777 = vstv %s289
      %v1778 = vmul.f32 %v1777, %v203
      %v1779 = vadd.f32 %v1776, %v1778
      %v1782 = vunpack.c.l.s4 1983009808
      %v1783 = vunpack.c.0.s8 %v1782
      %v1784 = vlaneseq
      %v1785 = vshrl.u32 %v1784, 7
      %v1786 = vsub.s32 %v1783, %v1785
      %v1787 = vrot.slane %v1779, %v1786
      %v1788 = vcombine.high %v1787, %v1787
      %1789 = vrot.lane.b32.xlu0 %v1787, 98
      %v1790 = vpop.permute.xlu0 %1789
      %1791 = vrot.lane.b32.xlu0 %v1788, 98
      %v1792 = vpop.permute.xlu0 %1791
      %vm1793 = vcmask 801792
      %v1794 = vsel %vm1793, %v1790, %v1792
      %v1798 = vsel %vm1793, %v1792, %v1790
      %s1799 = scalar_lea.vmem [#allocation8], 72
      %v1800 = vld [vmem:[%s1799] sm:$0x3]
      %v1802 = vlaneseq
      %v1803 = vshrl.u32 %v1802, 7
      %v1804 = vsub.s32 0, %v1803
      %v1805 = vrot.slane %v1800, %v1804
      %v1806 = vlaneseq
      %v1807 = vshrl.u32 %v1806, 7
      %v1808 = vsub.s32 1, %v1807
      %v1809 = vrot.slane %v1800, %v1808
      %v1812 = vmul.f32 %v1794, %v1805
      %v1813 = vmul.f32 %v1798, %v1809
      %v1814 = vadd.f32 %v1650, %v1812
      %v1815 = vadd.f32 %v1651, %v1813
      %v1816 = vstv %s241
      %v1817 = vmul.f32 %v1816, %v202
      %v1818 = vstv %s290
      %v1819 = vmul.f32 %v1818, %v203
      %v1820 = vadd.f32 %v1817, %v1819
      %v1823 = vunpack.c.l.s4 1983009808
      %v1824 = vunpack.c.0.s8 %v1823
      %v1825 = vlaneseq
      %v1826 = vshrl.u32 %v1825, 7
      %v1827 = vsub.s32 %v1824, %v1826
      %v1828 = vrot.slane %v1820, %v1827
      %v1829 = vcombine.high %v1828, %v1828
      %1830 = vrot.lane.b32.xlu0 %v1828, 97
      %v1831 = vpop.permute.xlu0 %1830
      %1832 = vrot.lane.b32.xlu0 %v1829, 97
      %v1833 = vpop.permute.xlu0 %1832
      %vm1834 = vcmask 793600
      %v1835 = vsel %vm1834, %v1831, %v1833
      %v1839 = vsel %vm1834, %v1833, %v1831
      %s1840 = scalar_lea.vmem [#allocation8], 74
      %v1841 = vld [vmem:[%s1840] sm:$0x3]
      %v1843 = vlaneseq
      %v1844 = vshrl.u32 %v1843, 7
      %v1845 = vsub.s32 0, %v1844
      %v1846 = vrot.slane %v1841, %v1845
      %v1847 = vlaneseq
      %v1848 = vshrl.u32 %v1847, 7
      %v1849 = vsub.s32 1, %v1848
      %v1850 = vrot.slane %v1841, %v1849
      %v1853 = vmul.f32 %v1835, %v1846
      %v1854 = vmul.f32 %v1839, %v1850
      %v1855 = vadd.f32 %v1691, %v1853
      %v1856 = vadd.f32 %v1692, %v1854
      %v1857 = vstv %s242
      %v1858 = vmul.f32 %v1857, %v202
      %v1859 = vstv %s291
      %v1860 = vmul.f32 %v1859, %v203
      %v1861 = vadd.f32 %v1858, %v1860
      %v1864 = vunpack.c.l.s4 1983009808
      %v1865 = vunpack.c.0.s8 %v1864
      %v1866 = vlaneseq
      %v1867 = vshrl.u32 %v1866, 7
      %v1868 = vsub.s32 %v1865, %v1867
      %v1869 = vrot.slane %v1861, %v1868
      %v1870 = vcombine.high %v1869, %v1869
      %1871 = vrot.lane.b32.xlu0 %v1869, 96
      %v1872 = vpop.permute.xlu0 %1871
      %1873 = vrot.lane.b32.xlu0 %v1870, 96
      %v1874 = vpop.permute.xlu0 %1873
      %vm1875 = vcmask 785408
      %v1876 = vsel %vm1875, %v1872, %v1874
      %v1880 = vsel %vm1875, %v1874, %v1872
      %s1881 = scalar_lea.vmem [#allocation8], 76
      %v1882 = vld [vmem:[%s1881] sm:$0x3]
      %v1884 = vlaneseq
      %v1885 = vshrl.u32 %v1884, 7
      %v1886 = vsub.s32 0, %v1885
      %v1887 = vrot.slane %v1882, %v1886
      %v1888 = vlaneseq
      %v1889 = vshrl.u32 %v1888, 7
      %v1890 = vsub.s32 1, %v1889
      %v1891 = vrot.slane %v1882, %v1890
      %v1894 = vmul.f32 %v1876, %v1887
      %v1895 = vmul.f32 %v1880, %v1891
      %v1896 = vadd.f32 %v1732, %v1894
      %v1897 = vadd.f32 %v1733, %v1895
      %v1898 = vstv %s243
      %v1899 = vmul.f32 %v1898, %v202
      %v1900 = vstv %s292
      %v1901 = vmul.f32 %v1900, %v203
      %v1902 = vadd.f32 %v1899, %v1901
      %v1905 = vunpack.c.l.s4 1983009808
      %v1906 = vunpack.c.0.s8 %v1905
      %v1907 = vlaneseq
      %v1908 = vshrl.u32 %v1907, 7
      %v1909 = vsub.s32 %v1906, %v1908
      %v1910 = vrot.slane %v1902, %v1909
      %v1911 = vcombine.high %v1910, %v1910
      %1912 = vrot.lane.b32.xlu0 %v1910, 95
      %v1913 = vpop.permute.xlu0 %1912
      %1914 = vrot.lane.b32.xlu0 %v1911, 95
      %v1915 = vpop.permute.xlu0 %1914
      %vm1916 = vcmask 777216
      %v1917 = vsel %vm1916, %v1913, %v1915
      %v1921 = vsel %vm1916, %v1915, %v1913
      %s1922 = scalar_lea.vmem [#allocation8], 78
      %v1923 = vld [vmem:[%s1922] sm:$0x3]
      %v1925 = vlaneseq
      %v1926 = vshrl.u32 %v1925, 7
      %v1927 = vsub.s32 0, %v1926
      %v1928 = vrot.slane %v1923, %v1927
      %v1929 = vlaneseq
      %v1930 = vshrl.u32 %v1929, 7
      %v1931 = vsub.s32 1, %v1930
      %v1932 = vrot.slane %v1923, %v1931
      %v1935 = vmul.f32 %v1917, %v1928
      %v1936 = vmul.f32 %v1921, %v1932
      %v1937 = vadd.f32 %v1773, %v1935
      %v1938 = vadd.f32 %v1774, %v1936
      %v1939 = vstv %s244
      %v1940 = vmul.f32 %v1939, %v202
      %v1941 = vstv %s293
      %v1942 = vmul.f32 %v1941, %v203
      %v1943 = vadd.f32 %v1940, %v1942
      %v1946 = vunpack.c.l.s4 1983009808
      %v1947 = vunpack.c.0.s8 %v1946
      %v1948 = vlaneseq
      %v1949 = vshrl.u32 %v1948, 7
      %v1950 = vsub.s32 %v1947, %v1949
      %v1951 = vrot.slane %v1943, %v1950
      %v1952 = vcombine.high %v1951, %v1951
      %1953 = vrot.lane.b32.xlu0 %v1951, 94
      %v1954 = vpop.permute.xlu0 %1953
      %1955 = vrot.lane.b32.xlu0 %v1952, 94
      %v1956 = vpop.permute.xlu0 %1955
      %vm1957 = vcmask 769024
      %v1958 = vsel %vm1957, %v1954, %v1956
      %v1962 = vsel %vm1957, %v1956, %v1954
      %s1963 = scalar_lea.vmem [#allocation8], 80
      %v1964 = vld [vmem:[%s1963] sm:$0x3]
      %v1966 = vlaneseq
      %v1967 = vshrl.u32 %v1966, 7
      %v1968 = vsub.s32 0, %v1967
      %v1969 = vrot.slane %v1964, %v1968
      %v1970 = vlaneseq
      %v1971 = vshrl.u32 %v1970, 7
      %v1972 = vsub.s32 1, %v1971
      %v1973 = vrot.slane %v1964, %v1972
      %v1976 = vmul.f32 %v1958, %v1969
      %v1977 = vmul.f32 %v1962, %v1973
      %v1978 = vadd.f32 %v1814, %v1976
      %v1979 = vadd.f32 %v1815, %v1977
      %v1980 = vstv %s245
      %v1981 = vmul.f32 %v1980, %v202
      %v1982 = vstv %s294
      %v1983 = vmul.f32 %v1982, %v203
      %v1984 = vadd.f32 %v1981, %v1983
      %v1987 = vunpack.c.l.s4 1983009808
      %v1988 = vunpack.c.0.s8 %v1987
      %v1989 = vlaneseq
      %v1990 = vshrl.u32 %v1989, 7
      %v1991 = vsub.s32 %v1988, %v1990
      %v1992 = vrot.slane %v1984, %v1991
      %v1993 = vcombine.high %v1992, %v1992
      %1994 = vrot.lane.b32.xlu0 %v1992, 93
      %v1995 = vpop.permute.xlu0 %1994
      %1996 = vrot.lane.b32.xlu0 %v1993, 93
      %v1997 = vpop.permute.xlu0 %1996
      %vm1998 = vcmask 760832
      %v1999 = vsel %vm1998, %v1995, %v1997
      %v2003 = vsel %vm1998, %v1997, %v1995
      %s2004 = scalar_lea.vmem [#allocation8], 82
      %v2005 = vld [vmem:[%s2004] sm:$0x3]
      %v2007 = vlaneseq
      %v2008 = vshrl.u32 %v2007, 7
      %v2009 = vsub.s32 0, %v2008
      %v2010 = vrot.slane %v2005, %v2009
      %v2011 = vlaneseq
      %v2012 = vshrl.u32 %v2011, 7
      %v2013 = vsub.s32 1, %v2012
      %v2014 = vrot.slane %v2005, %v2013
      %v2017 = vmul.f32 %v1999, %v2010
      %v2018 = vmul.f32 %v2003, %v2014
      %v2019 = vadd.f32 %v1855, %v2017
      %v2020 = vadd.f32 %v1856, %v2018
      %v2021 = vstv %s246
      %v2022 = vmul.f32 %v2021, %v202
      %v2023 = vstv %s295
      %v2024 = vmul.f32 %v2023, %v203
      %v2025 = vadd.f32 %v2022, %v2024
      %v2028 = vunpack.c.l.s4 1983009808
      %v2029 = vunpack.c.0.s8 %v2028
      %v2030 = vlaneseq
      %v2031 = vshrl.u32 %v2030, 7
      %v2032 = vsub.s32 %v2029, %v2031
      %v2033 = vrot.slane %v2025, %v2032
      %v2034 = vcombine.high %v2033, %v2033
      %2035 = vrot.lane.b32.xlu0 %v2033, 83
      %v2036 = vpop.permute.xlu0 %2035
      %2037 = vrot.lane.b32.xlu0 %v2034, 83
      %v2038 = vpop.permute.xlu0 %2037
      %vm2039 = vcmask 678912
      %v2040 = vsel %vm2039, %v2036, %v2038
      %v2044 = vsel %vm2039, %v2038, %v2036
      %s2045 = scalar_lea.vmem [#allocation8], 84
      %v2046 = vld [vmem:[%s2045] sm:$0x3]
      %v2048 = vlaneseq
      %v2049 = vshrl.u32 %v2048, 7
      %v2050 = vsub.s32 0, %v2049
      %v2051 = vrot.slane %v2046, %v2050
      %v2052 = vlaneseq
      %v2053 = vshrl.u32 %v2052, 7
      %v2054 = vsub.s32 1, %v2053
      %v2055 = vrot.slane %v2046, %v2054
      %v2058 = vmul.f32 %v2040, %v2051
      %v2059 = vmul.f32 %v2044, %v2055
      %v2060 = vadd.f32 %v1896, %v2058
      %v2061 = vadd.f32 %v1897, %v2059
      %v2062 = vstv %s247
      %v2063 = vmul.f32 %v2062, %v202
      %v2064 = vstv %s296
      %v2065 = vmul.f32 %v2064, %v203
      %v2066 = vadd.f32 %v2063, %v2065
      %v2069 = vunpack.c.l.s4 1983009808
      %v2070 = vunpack.c.0.s8 %v2069
      %v2071 = vlaneseq
      %v2072 = vshrl.u32 %v2071, 7
      %v2073 = vsub.s32 %v2070, %v2072
      %v2074 = vrot.slane %v2066, %v2073
      %v2075 = vcombine.high %v2074, %v2074
      %2076 = vrot.lane.b32.xlu0 %v2074, 82
      %v2077 = vpop.permute.xlu0 %2076
      %2078 = vrot.lane.b32.xlu0 %v2075, 82
      %v2079 = vpop.permute.xlu0 %2078
      %vm2080 = vcmask 670720
      %v2081 = vsel %vm2080, %v2077, %v2079
      %v2085 = vsel %vm2080, %v2079, %v2077
      %s2086 = scalar_lea.vmem [#allocation8], 86
      %v2087 = vld [vmem:[%s2086] sm:$0x3]
      %v2089 = vlaneseq
      %v2090 = vshrl.u32 %v2089, 7
      %v2091 = vsub.s32 0, %v2090
      %v2092 = vrot.slane %v2087, %v2091
      %v2093 = vlaneseq
      %v2094 = vshrl.u32 %v2093, 7
      %v2095 = vsub.s32 1, %v2094
      %v2096 = vrot.slane %v2087, %v2095
      %v2099 = vmul.f32 %v2081, %v2092
      %v2100 = vmul.f32 %v2085, %v2096
      %v2101 = vadd.f32 %v1937, %v2099
      %v2102 = vadd.f32 %v1938, %v2100
      %v2103 = vstv %s248
      %v2104 = vmul.f32 %v2103, %v202
      %v2105 = vstv %s297
      %v2106 = vmul.f32 %v2105, %v203
      %v2107 = vadd.f32 %v2104, %v2106
      %v2110 = vunpack.c.l.s4 1983009808
      %v2111 = vunpack.c.0.s8 %v2110
      %v2112 = vlaneseq
      %v2113 = vshrl.u32 %v2112, 7
      %v2114 = vsub.s32 %v2111, %v2113
      %v2115 = vrot.slane %v2107, %v2114
      %v2116 = vcombine.high %v2115, %v2115
      %2117 = vrot.lane.b32.xlu0 %v2115, 81
      %v2118 = vpop.permute.xlu0 %2117
      %2119 = vrot.lane.b32.xlu0 %v2116, 81
      %v2120 = vpop.permute.xlu0 %2119
      %vm2121 = vcmask 662528
      %v2122 = vsel %vm2121, %v2118, %v2120
      %v2126 = vsel %vm2121, %v2120, %v2118
      %s2127 = scalar_lea.vmem [#allocation8], 88
      %v2128 = vld [vmem:[%s2127] sm:$0x3]
      %v2130 = vlaneseq
      %v2131 = vshrl.u32 %v2130, 7
      %v2132 = vsub.s32 0, %v2131
      %v2133 = vrot.slane %v2128, %v2132
      %v2134 = vlaneseq
      %v2135 = vshrl.u32 %v2134, 7
      %v2136 = vsub.s32 1, %v2135
      %v2137 = vrot.slane %v2128, %v2136
      %v2140 = vmul.f32 %v2122, %v2133
      %v2141 = vmul.f32 %v2126, %v2137
      %v2142 = vadd.f32 %v1978, %v2140
      %v2143 = vadd.f32 %v1979, %v2141
      %v2144 = vstv %s249
      %v2145 = vmul.f32 %v2144, %v202
      %v2146 = vstv %s298
      %v2147 = vmul.f32 %v2146, %v203
      %v2148 = vadd.f32 %v2145, %v2147
      %v2151 = vunpack.c.l.s4 1983009808
      %v2152 = vunpack.c.0.s8 %v2151
      %v2153 = vlaneseq
      %v2154 = vshrl.u32 %v2153, 7
      %v2155 = vsub.s32 %v2152, %v2154
      %v2156 = vrot.slane %v2148, %v2155
      %v2157 = vcombine.high %v2156, %v2156
      %2158 = vrot.lane.b32.xlu0 %v2156, 80
      %v2159 = vpop.permute.xlu0 %2158
      %2160 = vrot.lane.b32.xlu0 %v2157, 80
      %v2161 = vpop.permute.xlu0 %2160
      %vm2162 = vcmask 654336
      %v2163 = vsel %vm2162, %v2159, %v2161
      %v2167 = vsel %vm2162, %v2161, %v2159
      %s2168 = scalar_lea.vmem [#allocation8], 90
      %v2169 = vld [vmem:[%s2168] sm:$0x3]
      %v2171 = vlaneseq
      %v2172 = vshrl.u32 %v2171, 7
      %v2173 = vsub.s32 0, %v2172
      %v2174 = vrot.slane %v2169, %v2173
      %v2175 = vlaneseq
      %v2176 = vshrl.u32 %v2175, 7
      %v2177 = vsub.s32 1, %v2176
      %v2178 = vrot.slane %v2169, %v2177
      %v2181 = vmul.f32 %v2163, %v2174
      %v2182 = vmul.f32 %v2167, %v2178
      %v2183 = vadd.f32 %v2019, %v2181
      %v2184 = vadd.f32 %v2020, %v2182
      %v2185 = vstv %s250
      %v2186 = vmul.f32 %v2185, %v202
      %v2187 = vstv %s299
      %v2188 = vmul.f32 %v2187, %v203
      %v2189 = vadd.f32 %v2186, %v2188
      %v2192 = vunpack.c.l.s4 1983009808
      %v2193 = vunpack.c.0.s8 %v2192
      %v2194 = vlaneseq
      %v2195 = vshrl.u32 %v2194, 7
      %v2196 = vsub.s32 %v2193, %v2195
      %v2197 = vrot.slane %v2189, %v2196
      %v2198 = vcombine.high %v2197, %v2197
      %2199 = vrot.lane.b32.xlu0 %v2197, 79
      %v2200 = vpop.permute.xlu0 %2199
      %2201 = vrot.lane.b32.xlu0 %v2198, 79
      %v2202 = vpop.permute.xlu0 %2201
      %vm2203 = vcmask 646144
      %v2204 = vsel %vm2203, %v2200, %v2202
      %v2208 = vsel %vm2203, %v2202, %v2200
      %s2209 = scalar_lea.vmem [#allocation8], 92
      %v2210 = vld [vmem:[%s2209] sm:$0x3]
      %v2212 = vlaneseq
      %v2213 = vshrl.u32 %v2212, 7
      %v2214 = vsub.s32 0, %v2213
      %v2215 = vrot.slane %v2210, %v2214
      %v2216 = vlaneseq
      %v2217 = vshrl.u32 %v2216, 7
      %v2218 = vsub.s32 1, %v2217
      %v2219 = vrot.slane %v2210, %v2218
      %v2222 = vmul.f32 %v2204, %v2215
      %v2223 = vmul.f32 %v2208, %v2219
      %v2224 = vadd.f32 %v2060, %v2222
      %v2225 = vadd.f32 %v2061, %v2223
      %v2226 = vstv %s251
      %v2227 = vmul.f32 %v2226, %v202
      %v2228 = vstv %s300
      %v2229 = vmul.f32 %v2228, %v203
      %v2230 = vadd.f32 %v2227, %v2229
      %v2233 = vunpack.c.l.s4 1983009808
      %v2234 = vunpack.c.0.s8 %v2233
      %v2235 = vlaneseq
      %v2236 = vshrl.u32 %v2235, 7
      %v2237 = vsub.s32 %v2234, %v2236
      %v2238 = vrot.slane %v2230, %v2237
      %v2239 = vcombine.high %v2238, %v2238
      %2240 = vrot.lane.b32.xlu0 %v2238, 78
      %v2241 = vpop.permute.xlu0 %2240
      %2242 = vrot.lane.b32.xlu0 %v2239, 78
      %v2243 = vpop.permute.xlu0 %2242
      %vm2244 = vcmask 637952
      %v2245 = vsel %vm2244, %v2241, %v2243
      %v2249 = vsel %vm2244, %v2243, %v2241
      %s2250 = scalar_lea.vmem [#allocation8], 94
      %v2251 = vld [vmem:[%s2250] sm:$0x3]
      %v2253 = vlaneseq
      %v2254 = vshrl.u32 %v2253, 7
      %v2255 = vsub.s32 0, %v2254
      %v2256 = vrot.slane %v2251, %v2255
      %v2257 = vlaneseq
      %v2258 = vshrl.u32 %v2257, 7
      %v2259 = vsub.s32 1, %v2258
      %v2260 = vrot.slane %v2251, %v2259
      %v2263 = vmul.f32 %v2245, %v2256
      %v2264 = vmul.f32 %v2249, %v2260
      %v2265 = vadd.f32 %v2101, %v2263
      %v2266 = vadd.f32 %v2102, %v2264
      %v2267 = vstv %s252
      %v2268 = vmul.f32 %v2267, %v202
      %v2269 = vstv %s301
      %v2270 = vmul.f32 %v2269, %v203
      %v2271 = vadd.f32 %v2268, %v2270
      %v2274 = vunpack.c.l.s4 1983009808
      %v2275 = vunpack.c.0.s8 %v2274
      %v2276 = vlaneseq
      %v2277 = vshrl.u32 %v2276, 7
      %v2278 = vsub.s32 %v2275, %v2277
      %v2279 = vrot.slane %v2271, %v2278
      %v2280 = vcombine.high %v2279, %v2279
      %2281 = vrot.lane.b32.xlu0 %v2279, 77
      %v2282 = vpop.permute.xlu0 %2281
      %2283 = vrot.lane.b32.xlu0 %v2280, 77
      %v2284 = vpop.permute.xlu0 %2283
      %vm2285 = vcmask 629760
      %v2286 = vsel %vm2285, %v2282, %v2284
      %v2290 = vsel %vm2285, %v2284, %v2282
      %s2291 = scalar_lea.vmem [#allocation8], 96
      %v2292 = vld [vmem:[%s2291] sm:$0x3]
      %v2294 = vlaneseq
      %v2295 = vshrl.u32 %v2294, 7
      %v2296 = vsub.s32 0, %v2295
      %v2297 = vrot.slane %v2292, %v2296
      %v2298 = vlaneseq
      %v2299 = vshrl.u32 %v2298, 7
      %v2300 = vsub.s32 1, %v2299
      %v2301 = vrot.slane %v2292, %v2300
      %v2304 = vmul.f32 %v2286, %v2297
      %v2305 = vmul.f32 %v2290, %v2301
      %v2306 = vadd.f32 %v2142, %v2304
      %v2307 = vadd.f32 %v2143, %v2305
      %v2308 = vadd.f32 %v2306, %v2183
      %v2309 = vadd.f32 %v2307, %v2184
      %v2310 = vadd.f32 %v2224, %v2265
      %v2311 = vadd.f32 %v2225, %v2266
      %v2312 = vadd.f32 %v2308, %v2310
      %v2313 = vadd.f32 %v2309, %v2311
      %v2314 = vxor.u32 %v2312, 2147483648
      %v2315 = vxor.u32 %v2313, 2147483648
      %v2316 = vmul.f32 %v2314, 1.442695
      %v2317 = vpow.pop %v2316
      %v2318 = vmul.f32 %v2315, 1.442695
      %v2319 = vpow.pop %v2318
      %v2320 = vadd.f32 %v2317, 1.0
      %v2321 = vadd.f32 %v2319, 1.0
      %v2322 = vrcp.pop %v2320
      %v2323 = vmul.f32 1.0, %v2322
      %v2324 = vrcp.pop %v2321
      %v2325 = vmul.f32 1.0, %v2324
      %v2328 = vcombine.low %v2323, %v2325
      %v2330 = vunpack.c.l.s4 1983009808
      %v2331 = vunpack.c.0.s8 %v2330
      %v2332 = vlaneseq
      %v2333 = vshrl.u32 %v2332, 7
      %v2334 = vsub.s32 %v2331, %v2333
      %v2335 = vrot.slane %v2328, %v2334
      %2337 = vst [vmem:[#allocation11] sm:$0xf] %v2335
    $region37: #{tpu_custom_call.1} parent=1 // pred_fallthru
      _
    // Predicated region
    $region38: #{tpu_custom_call.1} parent=1 // pred_check
      _
    $region39: #{tpu_custom_call.1} parent=1 // pred_check_branch
      %2339 = sbr.rel (0) target = $region41
    $region40: #{tpu_custom_call.1} parent=1 // pred_region
      %s2341 = ssub.s32 64, 64
      %2342 = vsyncadd [#allocation6], %s2341
      %s2344 = sshll.u32 [#allocation11], 4
      %s2345 = int_to_ptr.vmem [resolvable:$true] %s2344
      %2347 = dma.vmem_to_hbm [thread:$0]  %s2345, 64, %s3, [#allocation6]
    $region41: #{tpu_custom_call.1} parent=1 // pred_fallthru
      _
    // Predicated region
    $region42: #{tpu_custom_call.1} parent=1 // pred_check
      _
    $region43: #{tpu_custom_call.1} parent=1 // pred_check_branch
      %2349 = sbr.rel (0) target = $region45
    $region44: #{tpu_custom_call.1} parent=1 // pred_region
      %2350 = dma.done [#allocation6], 64
    $region45: #{tpu_custom_call.1} parent=1 // pred_fallthru
      _
    %2351 = vsyncpa [#allocation5], 1
    %2352 = vsyncpa [#allocation10], 1
    %2353 = vsyncpa [#allocation6], 1
    %2354 = vsyncpa [#allocation7], 1

</llo_original>
